<compile_context>
chip_gen: v5e
topology: v5e:2x2
jax: 0.10.0
libtpu: 0.0.40
codegen_flags: <defaults>
</compile_context>

<pallas_src>
import jax
import jax.numpy as jnp
from jax.experimental import pallas as pl
from jax.experimental.pallas import tpu as pltpu

IN_DIM = 3645
HID = 200

# (8,128)-aligned padded sizes; zero padding keeps the math exact.
IN_PAD = 3712     # 29 * 128
HID_PAD = 256     # 2  * 128
CLS_PAD = 128     # lane-dense output block


def mlp_kernel(x_ref, w1_ref, b1_ref, w2_ref, b2_ref, w3_ref, b3_ref, out_ref):
    # x: (T, IN_PAD) bf16 ; w*: bf16 ; b*: f32 ; accumulate in f32 on the MXU.
    x = x_ref[...]

    h1 = jnp.dot(x, w1_ref[...], preferred_element_type=jnp.float32) + b1_ref[...]
    h1 = jnp.maximum(h1, 0.0).astype(jnp.bfloat16)       # ReLU (dropout: eval no-op)

    h2 = jnp.dot(h1, w2_ref[...], preferred_element_type=jnp.float32) + b2_ref[...]
    h2 = jnp.maximum(h2, 0.0)                            # ReLU (dropout: eval no-op)

    # mean over timesteps commutes with the final affine layer:
    #   mean_t(h2_t @ W3 + b3) == mean_t(h2_t) @ W3 + b3
    h2m = jnp.mean(h2, axis=0, keepdims=True).astype(jnp.bfloat16)   # (1, HID_PAD)
    out_ref[...] = (
        jnp.dot(h2m, w3_ref[...], preferred_element_type=jnp.float32) + b3_ref[...]
    )


def prepare_params(params):
    """One-time: zero-pad to aligned shapes, cast weights to bf16 (biases f32)."""
    w1, b1, w2, b2, w3, b3 = params
    num_cls = w3.shape[1]
    w1p = (jnp.zeros((IN_PAD, HID_PAD), jnp.float32)
           .at[:IN_DIM, :HID].set(w1).astype(jnp.bfloat16))
    w2p = (jnp.zeros((HID_PAD, HID_PAD), jnp.float32)
           .at[:HID, :HID].set(w2).astype(jnp.bfloat16))
    w3p = (jnp.zeros((HID_PAD, CLS_PAD), jnp.float32)
           .at[:HID, :num_cls].set(w3).astype(jnp.bfloat16))
    b1p = jnp.zeros((1, HID_PAD), jnp.float32).at[:, :HID].set(b1)
    b2p = jnp.zeros((1, HID_PAD), jnp.float32).at[:, :HID].set(b2)
    b3p = jnp.zeros((1, CLS_PAD), jnp.float32).at[:, :num_cls].set(b3)
    return (w1p, b1p, w2p, b2p, w3p, b3p), num_cls


def mlp_forward(x, prepped_params, num_cls):
    """x: (1, T, C, H, W) with C*H*W == 3645. Returns (1, num_cls) float32."""
    w1, b1, w2, b2, w3, b3 = prepped_params
    b, t, c, h, w = x.shape
    assert b == 1 and c * h * w == IN_DIM

    # Flatten each timestep (row-major == torch .view), zero-pad lanes, cast bf16.
    x2d = x.reshape(t, IN_DIM).astype(jnp.float32)
    x2d = jnp.zeros((t, IN_PAD), jnp.float32).at[:, :IN_DIM].set(x2d)
    x2d = x2d.astype(jnp.bfloat16)

    full = lambda shape: pl.BlockSpec(shape, lambda i: (0,) * len(shape))

    out = pl.pallas_call(
        mlp_kernel,
        out_shape=jax.ShapeDtypeStruct((1, CLS_PAD), jnp.float32),
        grid=(1,),
        in_specs=[
            full((t, IN_PAD)),         # x
            full((IN_PAD, HID_PAD)),   # w1
            full((1, HID_PAD)),        # b1
            full((HID_PAD, HID_PAD)),  # w2
            full((1, HID_PAD)),        # b2
            full((HID_PAD, CLS_PAD)),  # w3
            full((1, CLS_PAD)),        # b3
        ],
        out_specs=full((1, CLS_PAD)),
        compiler_params=pltpu.CompilerParams(
            dimension_semantics=("arbitrary",),
        ),
    )(x2d, w1, b1, w2, b2, w3, b3)
    return out[:, :num_cls]


def init_params(key, num_cls):
    """Deterministic f32 parameter init (uniform, Linear-style fan-in scaling)."""
    ks = jax.random.split(key, 6)

    def lin(kw, kb, fan_in, fan_out):
        bound = 1.0 / jnp.sqrt(fan_in)
        w = jax.random.uniform(kw, (fan_in, fan_out), jnp.float32, -bound, bound)
        bias = jax.random.uniform(kb, (1, fan_out), jnp.float32, -bound, bound)
        return w, bias

    w1, b1 = lin(ks[0], ks[1], IN_DIM, HID)
    w2, b2 = lin(ks[2], ks[3], HID, HID)
    w3, b3 = lin(ks[4], ks[5], HID, num_cls)
    return (w1, b1, w2, b2, w3, b3)


def reference_forward(x, params):
    """Pure-JAX f32 reference mirroring the PyTorch loop (eval mode)."""
    w1, b1, w2, b2, w3, b3 = params
    b, t, c, h, w = x.shape
    outs = []
    for i in range(t):
        xi = x[:, i].reshape(1, IN_DIM)
        h1 = jnp.maximum(xi @ w1 + b1, 0.0)
        h2 = jnp.maximum(h1 @ w2 + b2, 0.0)
        outs.append(h2 @ w3 + b3)
    return jnp.mean(jnp.stack(outs, axis=1), axis=1)


if __name__ == "__main__":
    num_cls = 10
    key = jax.random.PRNGKey(0)
    k_x, k_p = jax.random.split(key)

    # (b=1, t=8, c=5, h=27, w=27)  ->  5*27*27 = 3645
    x = jax.random.normal(k_x, (1, 8, 5, 27, 27), dtype=jnp.float32)
    params = init_params(k_p, num_cls)
    prepped, ncls = prepare_params(params)

    out = mlp_forward(x, prepped, ncls)
    out = jax.block_until_ready(out)

    ref = reference_forward(x, params)   # full-f32 reference (PyTorch semantics)
    assert out.shape == (1, num_cls)
    # bf16 weight/activation streaming -> loosened tolerance vs f32 reference.
    assert jnp.allclose(out, ref, atol=5e-2, rtol=5e-2), (out, ref)

    print("KERNEL_OK")
</pallas_src>

<mosaic_0001>
module attributes {stable_mosaic.version = 11 : i64} {
  func.func @mlp_kernel(%arg0: i32, %arg1: memref<8x3712xbf16, #tpu.memory_space<vmem>>, %arg2: memref<3712x256xbf16, #tpu.memory_space<vmem>>, %arg3: memref<1x256xf32, #tpu.memory_space<vmem>>, %arg4: memref<256x256xbf16, #tpu.memory_space<vmem>>, %arg5: memref<1x256xf32, #tpu.memory_space<vmem>>, %arg6: memref<256x128xbf16, #tpu.memory_space<vmem>>, %arg7: memref<1x128xf32, #tpu.memory_space<vmem>>, %arg8: memref<1x128xf32, #tpu.memory_space<vmem>>) attributes {dimension_semantics = [#tpu.dimension_semantics<arbitrary>], iteration_bounds = array<i64: 1>, scalar_prefetch = 0 : i64, scratch_operands = 0 : i64, tpu.core_type = #tpu.core_type<tc>, window_params = [{pipeline_mode = #tpu.pipeline_mode<synchronous>, transform_indices = @transform_0, window_bounds = array<i64: 8, 3712>}, {pipeline_mode = #tpu.pipeline_mode<synchronous>, transform_indices = @transform_1, window_bounds = array<i64: 3712, 256>}, {pipeline_mode = #tpu.pipeline_mode<synchronous>, transform_indices = @transform_2, window_bounds = array<i64: 1, 256>}, {pipeline_mode = #tpu.pipeline_mode<synchronous>, transform_indices = @transform_3, window_bounds = array<i64: 256, 256>}, {pipeline_mode = #tpu.pipeline_mode<synchronous>, transform_indices = @transform_4, window_bounds = array<i64: 1, 256>}, {pipeline_mode = #tpu.pipeline_mode<synchronous>, transform_indices = @transform_5, window_bounds = array<i64: 256, 128>}, {pipeline_mode = #tpu.pipeline_mode<synchronous>, transform_indices = @transform_6, window_bounds = array<i64: 1, 128>}, {pipeline_mode = #tpu.pipeline_mode<synchronous>, transform_indices = @transform_7, window_bounds = array<i64: 1, 128>}]} {
    %c0 = arith.constant 0 : index
    %c0_0 = arith.constant 0 : index
    %0 = vector.load %arg1[%c0, %c0_0] : memref<8x3712xbf16, #tpu.memory_space<vmem>>, vector<8x3712xbf16>
    %c0_1 = arith.constant 0 : index
    %c0_2 = arith.constant 0 : index
    %1 = vector.load %arg2[%c0_1, %c0_2] : memref<3712x256xbf16, #tpu.memory_space<vmem>>, vector<3712x256xbf16>
    %cst = arith.constant dense<0.000000e+00> : vector<8x256xf32>
    %2 = tpu.matmul %0, %1, %cst {dimension_numbers = #tpu.dot_dimension_numbers<[1], [0], [0], [1], [0, 0, 1, 1], [], []>} : vector<8x3712xbf16>, vector<3712x256xbf16>, vector<8x256xf32> -> vector<8x256xf32>
    %c0_3 = arith.constant 0 : index
    %c0_4 = arith.constant 0 : index
    %3 = vector.load %arg3[%c0_3, %c0_4] : memref<1x256xf32, #tpu.memory_space<vmem>>, vector<1x256xf32>
    %4 = vector.broadcast %3 : vector<1x256xf32> to vector<8x256xf32>
    %5 = arith.addf %2, %4 : vector<8x256xf32>
    %cst_5 = arith.constant 0.000000e+00 : f32
    %6 = vector.broadcast %cst_5 : f32 to vector<8x256xf32>
    %7 = arith.maximumf %5, %6 : vector<8x256xf32>
    %8 = arith.truncf %7 : vector<8x256xf32> to vector<8x256xbf16>
    %c0_6 = arith.constant 0 : index
    %c0_7 = arith.constant 0 : index
    %9 = vector.load %arg4[%c0_6, %c0_7] : memref<256x256xbf16, #tpu.memory_space<vmem>>, vector<256x256xbf16>
    %cst_8 = arith.constant dense<0.000000e+00> : vector<8x256xf32>
    %10 = tpu.matmul %8, %9, %cst_8 {dimension_numbers = #tpu.dot_dimension_numbers<[1], [0], [0], [1], [0, 0, 1, 1], [], []>} : vector<8x256xbf16>, vector<256x256xbf16>, vector<8x256xf32> -> vector<8x256xf32>
    %c0_9 = arith.constant 0 : index
    %c0_10 = arith.constant 0 : index
    %11 = vector.load %arg5[%c0_9, %c0_10] : memref<1x256xf32, #tpu.memory_space<vmem>>, vector<1x256xf32>
    %12 = vector.broadcast %11 : vector<1x256xf32> to vector<8x256xf32>
    %13 = arith.addf %10, %12 : vector<8x256xf32>
    %cst_11 = arith.constant 0.000000e+00 : f32
    %14 = vector.broadcast %cst_11 : f32 to vector<8x256xf32>
    %15 = arith.maximumf %13, %14 : vector<8x256xf32>
    %cst_12 = arith.constant dense<0.000000e+00> : vector<256xf32>
    %16 = vector.multi_reduction <add>, %15, %cst_12 [0] : vector<8x256xf32> to vector<256xf32>
    %17 = vector.shape_cast %16 : vector<256xf32> to vector<1x256xf32>
    %cst_13 = arith.constant 8.000000e+00 : f32
    %18 = vector.broadcast %cst_13 : f32 to vector<1x256xf32>
    %19 = arith.divf %17, %18 : vector<1x256xf32>
    %20 = arith.truncf %19 : vector<1x256xf32> to vector<1x256xbf16>
    %c0_14 = arith.constant 0 : index
    %c0_15 = arith.constant 0 : index
    %21 = vector.load %arg6[%c0_14, %c0_15] : memref<256x128xbf16, #tpu.memory_space<vmem>>, vector<256x128xbf16>
    %cst_16 = arith.constant dense<0.000000e+00> : vector<1x128xf32>
    %22 = tpu.matmul %20, %21, %cst_16 {dimension_numbers = #tpu.dot_dimension_numbers<[1], [0], [0], [1], [0, 0, 1, 1], [], []>} : vector<1x256xbf16>, vector<256x128xbf16>, vector<1x128xf32> -> vector<1x128xf32>
    %c0_17 = arith.constant 0 : index
    %c0_18 = arith.constant 0 : index
    %23 = vector.load %arg7[%c0_17, %c0_18] : memref<1x128xf32, #tpu.memory_space<vmem>>, vector<1x128xf32>
    %24 = arith.addf %22, %23 : vector<1x128xf32>
    %c0_19 = arith.constant 0 : index
    %c0_20 = arith.constant 0 : index
    %25 = vector.load %arg8[%c0_19, %c0_20] : memref<1x128xf32, #tpu.memory_space<vmem>>, vector<1x128xf32>
    tpu.vector_store %arg8[%c0_19, %c0_20], %24 {strides = array<i32>} : memref<1x128xf32, #tpu.memory_space<vmem>>, vector<1x128xf32>,
    return
  }
  func.func @transform_0(%arg0: i32) -> (i32, i32) {
    %c0_i32 = arith.constant 0 : i32
    %c0_i32_0 = arith.constant 0 : i32
    %c0_i32_1 = arith.constant 0 : i32
    return %c0_i32, %c0_i32_0 : i32, i32
  }
  func.func @transform_1(%arg0: i32) -> (i32, i32) {
    %c0_i32 = arith.constant 0 : i32
    %c0_i32_0 = arith.constant 0 : i32
    %c0_i32_1 = arith.constant 0 : i32
    return %c0_i32, %c0_i32_0 : i32, i32
  }
  func.func @transform_2(%arg0: i32) -> (i32, i32) {
    %c0_i32 = arith.constant 0 : i32
    %c0_i32_0 = arith.constant 0 : i32
    %c0_i32_1 = arith.constant 0 : i32
    return %c0_i32, %c0_i32_0 : i32, i32
  }
  func.func @transform_3(%arg0: i32) -> (i32, i32) {
    %c0_i32 = arith.constant 0 : i32
    %c0_i32_0 = arith.constant 0 : i32
    %c0_i32_1 = arith.constant 0 : i32
    return %c0_i32, %c0_i32_0 : i32, i32
  }
  func.func @transform_4(%arg0: i32) -> (i32, i32) {
    %c0_i32 = arith.constant 0 : i32
    %c0_i32_0 = arith.constant 0 : i32
    %c0_i32_1 = arith.constant 0 : i32
    return %c0_i32, %c0_i32_0 : i32, i32
  }
  func.func @transform_5(%arg0: i32) -> (i32, i32) {
    %c0_i32 = arith.constant 0 : i32
    %c0_i32_0 = arith.constant 0 : i32
    %c0_i32_1 = arith.constant 0 : i32
    return %c0_i32, %c0_i32_0 : i32, i32
  }
  func.func @transform_6(%arg0: i32) -> (i32, i32) {
    %c0_i32 = arith.constant 0 : i32
    %c0_i32_0 = arith.constant 0 : i32
    %c0_i32_1 = arith.constant 0 : i32
    return %c0_i32, %c0_i32_0 : i32, i32
  }
  func.func @transform_7(%arg0: i32) -> (i32, i32) {
    %c0_i32 = arith.constant 0 : i32
    %c0_i32_0 = arith.constant 0 : i32
    %c0_i32_1 = arith.constant 0 : i32
    return %c0_i32, %c0_i32_0 : i32, i32
  }
}

</mosaic_0001>

<llo_original>
// kernel: tpu_custom_call.1
$region0: #{tpu_custom_call.1}
  #allocation0 [shape = 'u32[]', space=smem, size = 0x4, offset = 0x4, fixed_abs, tag = 'smem constant byte address 0x4 - core index']
  #allocation1 [shape = 'u32[72,128]{1,0:T(1,128)}', space=vmem, size = 0x9000, scoped, tag = 'internal scratch']
  %s0 = inlined_call_operand.hbm [shape: bf16[8,3712], index: 0, kind: input, shape index: {}]
  %s1 = inlined_call_operand.hbm [shape: bf16[3712,256], index: 1, kind: input, shape index: {}]
  %s2 = inlined_call_operand.hbm [shape: f32[1,256], index: 2, kind: input, shape index: {}]
  %s3 = inlined_call_operand.hbm [shape: bf16[256,256], index: 3, kind: input, shape index: {}]
  %s4 = inlined_call_operand.hbm [shape: f32[1,256], index: 4, kind: input, shape index: {}]
  %s5 = inlined_call_operand.hbm [shape: bf16[256,128], index: 5, kind: input, shape index: {}]
  %s6 = inlined_call_operand.hbm [shape: f32[1,128], index: 6, kind: input, shape index: {}]
  %s7 = inlined_call_operand.hbm [shape: f32[1,128], index: 7, kind: output, shape index: {}]
  %s8 = sld [smem:[#allocation0]]
  $region66: #{tpu_custom_call.1} parent=0
    _
  %s10 = ssub.s32 1, %s8
  %s11 = scalar_select 0, %s10, %s8
  $region1: #{tpu_custom_call.1} parent=0
    #allocation2 [shape = 'u8[59392]{0}', space=vmem, size = 0xe800, scoped, tag = 'input window, operand 0, single buffered']
    #allocation3 [shape = 's32[1]{0}', space=sflag, size = 0x4, scoped, tag = 'scoped memory for tpu_custom_call.1']
    #allocation4 [shape = 's32[1]{0}', space=sflag, size = 0x4, scoped, tag = 'scoped memory for tpu_custom_call.1']
    #allocation5 [shape = 'u8[1900544]{0}', space=vmem, size = 0x1d0000, scoped, tag = 'input window, operand 1, single buffered']
    #allocation6 [shape = 's32[1]{0}', space=sflag, size = 0x4, scoped, tag = 'scoped memory for tpu_custom_call.1']
    #allocation7 [shape = 'u8[1024]{0}', space=vmem, size = 0x400, scoped, tag = 'input window, operand 2, single buffered']
    #allocation8 [shape = 'u8[131072]{0}', space=vmem, size = 0x20000, scoped, tag = 'input window, operand 3, single buffered']
    #allocation9 [shape = 's32[1]{0}', space=sflag, size = 0x4, scoped, tag = 'scoped memory for tpu_custom_call.1']
    #allocation10 [shape = 'u8[1024]{0}', space=vmem, size = 0x400, scoped, tag = 'input window, operand 4, single buffered']
    #allocation11 [shape = 'u8[65536]{0}', space=vmem, size = 0x10000, scoped, tag = 'input window, operand 5, single buffered']
    #allocation12 [shape = 's32[1]{0}', space=sflag, size = 0x4, scoped, tag = 'scoped memory for tpu_custom_call.1']
    #allocation13 [shape = 'u8[512]{0}', space=vmem, size = 0x400, scoped, tag = 'input window, operand 6, single buffered']
    #allocation14 [shape = 'u8[512]{0}', space=vmem, size = 0x400, scoped, tag = 'output window, operand 0, single buffered']
    %12 = vsyncpa [#allocation3], 0
    %13 = vsyncpa [#allocation6], 0
    %14 = vsyncpa [#allocation9], 0
    %15 = vsyncpa [#allocation12], 0
    %16 = vsyncpa [#allocation4], 0
    // Predicated region
    $region2: #{tpu_custom_call.1} parent=1 // pred_check
      _
    $region3: #{tpu_custom_call.1} parent=1 // pred_check_branch
      %18 = sbr.rel (0) target = $region5
    $region4: #{tpu_custom_call.1} parent=1 // pred_region
      %20 = vsyncadd [#allocation3], 0
      %s22 = sshll.u32 %s0, 4
      %s23 = int_to_ptr.hbm [resolvable:$true] %s22
      %s24 = sshll.u32 [#allocation2], 4
      %s25 = int_to_ptr.vmem [resolvable:$true] %s24
      %27 = dma.hbm_to_vmem [thread:$0]  %s23, 1856, %s25, [#allocation3]
    $region5: #{tpu_custom_call.1} parent=1 // pred_fallthru
      _
    // Predicated region
    $region6: #{tpu_custom_call.1} parent=1 // pred_check
      _
    $region7: #{tpu_custom_call.1} parent=1 // pred_check_branch
      %29 = sbr.rel (0) target = $region9
    $region8: #{tpu_custom_call.1} parent=1 // pred_region
      %31 = vsyncadd [#allocation6], 0
      %s32 = sshll.u32 %s1, 4
      %s33 = int_to_ptr.hbm [resolvable:$true] %s32
      %s34 = sshll.u32 [#allocation5], 4
      %s35 = int_to_ptr.vmem [resolvable:$true] %s34
      %40 = dma.hbm_to_vmem [thread:$0]  %s33, 59392, %s35, [#allocation6], 128, 128, 8
    $region9: #{tpu_custom_call.1} parent=1 // pred_fallthru
      _
    // Predicated region
    $region10: #{tpu_custom_call.1} parent=1 // pred_check
      _
    $region11: #{tpu_custom_call.1} parent=1 // pred_check_branch
      %42 = sbr.rel (0) target = $region13
    $region12: #{tpu_custom_call.1} parent=1 // pred_region
      %44 = vsyncadd [#allocation6], 0
      %s46 = sshll.u32 %s2, 4
      %s47 = int_to_ptr.hbm [resolvable:$true] %s46
      %s48 = sshll.u32 [#allocation7], 4
      %s49 = int_to_ptr.vmem [resolvable:$true] %s48
      %51 = dma.hbm_to_vmem [thread:$0]  %s47, 32, %s49, [#allocation6]
    $region13: #{tpu_custom_call.1} parent=1 // pred_fallthru
      _
    // Predicated region
    $region14: #{tpu_custom_call.1} parent=1 // pred_check
      _
    $region15: #{tpu_custom_call.1} parent=1 // pred_check_branch
      %53 = sbr.rel (0) target = $region17
    $region16: #{tpu_custom_call.1} parent=1 // pred_region
      %55 = vsyncadd [#allocation9], 0
      %s56 = sshll.u32 %s3, 4
      %s57 = int_to_ptr.hbm [resolvable:$true] %s56
      %s58 = sshll.u32 [#allocation8], 4
      %s59 = int_to_ptr.vmem [resolvable:$true] %s58
      %64 = dma.hbm_to_vmem [thread:$0]  %s57, 4096, %s59, [#allocation9], 128, 128, 8
    $region17: #{tpu_custom_call.1} parent=1 // pred_fallthru
      _
    // Predicated region
    $region18: #{tpu_custom_call.1} parent=1 // pred_check
      _
    $region19: #{tpu_custom_call.1} parent=1 // pred_check_branch
      %66 = sbr.rel (0) target = $region21
    $region20: #{tpu_custom_call.1} parent=1 // pred_region
      %68 = vsyncadd [#allocation9], 0
      %s70 = sshll.u32 %s4, 4
      %s71 = int_to_ptr.hbm [resolvable:$true] %s70
      %s72 = sshll.u32 [#allocation10], 4
      %s73 = int_to_ptr.vmem [resolvable:$true] %s72
      %75 = dma.hbm_to_vmem [thread:$0]  %s71, 32, %s73, [#allocation9]
    $region21: #{tpu_custom_call.1} parent=1 // pred_fallthru
      _
    // Predicated region
    $region22: #{tpu_custom_call.1} parent=1 // pred_check
      _
    $region23: #{tpu_custom_call.1} parent=1 // pred_check_branch
      %77 = sbr.rel (0) target = $region25
    $region24: #{tpu_custom_call.1} parent=1 // pred_region
      %79 = vsyncadd [#allocation12], 0
      %s80 = sshll.u32 %s5, 4
      %s81 = int_to_ptr.hbm [resolvable:$true] %s80
      %s82 = sshll.u32 [#allocation11], 4
      %s83 = int_to_ptr.vmem [resolvable:$true] %s82
      %88 = dma.hbm_to_vmem [thread:$0]  %s81, 2048, %s83, [#allocation12], 64, 64, 4
    $region25: #{tpu_custom_call.1} parent=1 // pred_fallthru
      _
    // Predicated region
    $region26: #{tpu_custom_call.1} parent=1 // pred_check
      _
    $region27: #{tpu_custom_call.1} parent=1 // pred_check_branch
      %90 = sbr.rel (0) target = $region29
    $region28: #{tpu_custom_call.1} parent=1 // pred_region
      %92 = vsyncadd [#allocation12], 0
      %s94 = sshll.u32 %s6, 4
      %s95 = int_to_ptr.hbm [resolvable:$true] %s94
      %s96 = sshll.u32 [#allocation13], 4
      %s97 = int_to_ptr.vmem [resolvable:$true] %s96
      %99 = dma.hbm_to_vmem [thread:$0]  %s95, 16, %s97, [#allocation12]
    $region29: #{tpu_custom_call.1} parent=1 // pred_fallthru
      _
    // Predicated region
    $region30: #{tpu_custom_call.1} parent=1 // pred_check
      _
    $region31: #{tpu_custom_call.1} parent=1 // pred_check_branch
      %101 = sbr.rel (0) target = $region33
    $region32: #{tpu_custom_call.1} parent=1 // pred_region
      %103 = dma.done [#allocation3], 1856
    $region33: #{tpu_custom_call.1} parent=1 // pred_fallthru
      _
    // Predicated region
    $region34: #{tpu_custom_call.1} parent=1 // pred_check
      _
    $region35: #{tpu_custom_call.1} parent=1 // pred_check_branch
      %105 = sbr.rel (0) target = $region37
    $region36: #{tpu_custom_call.1} parent=1 // pred_region
      %107 = dma.done [#allocation6], 59392
    $region37: #{tpu_custom_call.1} parent=1 // pred_fallthru
      _
    // Predicated region
    $region38: #{tpu_custom_call.1} parent=1 // pred_check
      _
    $region39: #{tpu_custom_call.1} parent=1 // pred_check_branch
      %109 = sbr.rel (0) target = $region41
    $region40: #{tpu_custom_call.1} parent=1 // pred_region
      %111 = dma.done [#allocation6], 32
    $region41: #{tpu_custom_call.1} parent=1 // pred_fallthru
      _
    // Predicated region
    $region42: #{tpu_custom_call.1} parent=1 // pred_check
      _
    $region43: #{tpu_custom_call.1} parent=1 // pred_check_branch
      %113 = sbr.rel (0) target = $region45
    $region44: #{tpu_custom_call.1} parent=1 // pred_region
      %115 = dma.done [#allocation9], 4096
    $region45: #{tpu_custom_call.1} parent=1 // pred_fallthru
      _
    // Predicated region
    $region46: #{tpu_custom_call.1} parent=1 // pred_check
      _
    $region47: #{tpu_custom_call.1} parent=1 // pred_check_branch
      %117 = sbr.rel (0) target = $region49
    $region48: #{tpu_custom_call.1} parent=1 // pred_region
      %119 = dma.done [#allocation9], 32
    $region49: #{tpu_custom_call.1} parent=1 // pred_fallthru
      _
    // Predicated region
    $region50: #{tpu_custom_call.1} parent=1 // pred_check
      _
    $region51: #{tpu_custom_call.1} parent=1 // pred_check_branch
      %121 = sbr.rel (0) target = $region53
    $region52: #{tpu_custom_call.1} parent=1 // pred_region
      %123 = dma.done [#allocation12], 2048
    $region53: #{tpu_custom_call.1} parent=1 // pred_fallthru
      _
    // Predicated region
    $region54: #{tpu_custom_call.1} parent=1 // pred_check
      _
    $region55: #{tpu_custom_call.1} parent=1 // pred_check_branch
      %125 = sbr.rel (0) target = $region57
    $region56: #{tpu_custom_call.1} parent=1 // pred_region
      %127 = dma.done [#allocation12], 16
    $region57: #{tpu_custom_call.1} parent=1 // pred_fallthru
      _
    %v128 = vld [vmem:[#allocation2] sm:$0xff]
    %v129 = vld [vmem:[#allocation2 + $0x8] sm:$0xff]
    %v130 = vld [vmem:[#allocation2 + $0x10] sm:$0xff]
    %v131 = vld [vmem:[#allocation2 + $0x18] sm:$0xff]
    %v132 = vld [vmem:[#allocation2 + $0x20] sm:$0xff]
    %v133 = vld [vmem:[#allocation2 + $0x28] sm:$0xff]
    %v134 = vld [vmem:[#allocation2 + $0x30] sm:$0xff]
    %v135 = vld [vmem:[#allocation2 + $0x38] sm:$0xff]
    %v136 = vld [vmem:[#allocation2 + $0x40] sm:$0xff]
    %v137 = vld [vmem:[#allocation2 + $0x48] sm:$0xff]
    %v138 = vld [vmem:[#allocation2 + $0x50] sm:$0xff]
    %v139 = vld [vmem:[#allocation2 + $0x58] sm:$0xff]
    %v140 = vld [vmem:[#allocation2 + $0x60] sm:$0xff]
    %v141 = vld [vmem:[#allocation2 + $0x68] sm:$0xff]
    %v142 = vld [vmem:[#allocation2 + $0x70] sm:$0xf]
    %v143 = vld [vmem:[#allocation5] sm:$0xff]
    %v144 = vld [vmem:[#allocation5 + $0x8] sm:$0xff]
    %v145 = vld [vmem:[#allocation5 + $0x10] sm:$0xff]
    %v146 = vld [vmem:[#allocation5 + $0x18] sm:$0xff]
    %v147 = vld [vmem:[#allocation5 + $0x20] sm:$0xff]
    %v148 = vld [vmem:[#allocation5 + $0x28] sm:$0xff]
    %v149 = vld [vmem:[#allocation5 + $0x30] sm:$0xff]
    %v150 = vld [vmem:[#allocation5 + $0x38] sm:$0xff]
    %v151 = vld [vmem:[#allocation5 + $0x40] sm:$0xff]
    %v152 = vld [vmem:[#allocation5 + $0x48] sm:$0xff]
    %v153 = vld [vmem:[#allocation5 + $0x50] sm:$0xff]
    %v154 = vld [vmem:[#allocation5 + $0x58] sm:$0xff]
    %v155 = vld [vmem:[#allocation5 + $0x60] sm:$0xff]
    %v156 = vld [vmem:[#allocation5 + $0x68] sm:$0xff]
    %v157 = vld [vmem:[#allocation5 + $0x70] sm:$0xff]
    %v158 = vld [vmem:[#allocation5 + $0x78] sm:$0xff]
    %v159 = vld [vmem:[#allocation5 + $0x80] sm:$0xff]
    %v160 = vld [vmem:[#allocation5 + $0x88] sm:$0xff]
    %v161 = vld [vmem:[#allocation5 + $0x90] sm:$0xff]
    %v162 = vld [vmem:[#allocation5 + $0x98] sm:$0xff]
    %v163 = vld [vmem:[#allocation5 + $0xa0] sm:$0xff]
    %v164 = vld [vmem:[#allocation5 + $0xa8] sm:$0xff]
    %v165 = vld [vmem:[#allocation5 + $0xb0] sm:$0xff]
    %v166 = vld [vmem:[#allocation5 + $0xb8] sm:$0xff]
    %v167 = vld [vmem:[#allocation5 + $0xc0] sm:$0xff]
    %v168 = vld [vmem:[#allocation5 + $0xc8] sm:$0xff]
    %v169 = vld [vmem:[#allocation5 + $0xd0] sm:$0xff]
    %v170 = vld [vmem:[#allocation5 + $0xd8] sm:$0xff]
    %v171 = vld [vmem:[#allocation5 + $0xe0] sm:$0xff]
    %v172 = vld [vmem:[#allocation5 + $0xe8] sm:$0xff]
    %v173 = vld [vmem:[#allocation5 + $0xf0] sm:$0xff]
    %v174 = vld [vmem:[#allocation5 + $0xf8] sm:$0xff]
    %v175 = vld [vmem:[#allocation5 + $0x100] sm:$0xff]
    %v176 = vld [vmem:[#allocation5 + $0x108] sm:$0xff]
    %v177 = vld [vmem:[#allocation5 + $0x110] sm:$0xff]
    %v178 = vld [vmem:[#allocation5 + $0x118] sm:$0xff]
    %v179 = vld [vmem:[#allocation5 + $0x120] sm:$0xff]
    %v180 = vld [vmem:[#allocation5 + $0x128] sm:$0xff]
    %v181 = vld [vmem:[#allocation5 + $0x130] sm:$0xff]
    %v182 = vld [vmem:[#allocation5 + $0x138] sm:$0xff]
    %v183 = vld [vmem:[#allocation5 + $0x140] sm:$0xff]
    %v184 = vld [vmem:[#allocation5 + $0x148] sm:$0xff]
    %v185 = vld [vmem:[#allocation5 + $0x150] sm:$0xff]
    %v186 = vld [vmem:[#allocation5 + $0x158] sm:$0xff]
    %v187 = vld [vmem:[#allocation5 + $0x160] sm:$0xff]
    %v188 = vld [vmem:[#allocation5 + $0x168] sm:$0xff]
    %v189 = vld [vmem:[#allocation5 + $0x170] sm:$0xff]
    %v190 = vld [vmem:[#allocation5 + $0x178] sm:$0xff]
    %v191 = vld [vmem:[#allocation5 + $0x180] sm:$0xff]
    %v192 = vld [vmem:[#allocation5 + $0x188] sm:$0xff]
    %v193 = vld [vmem:[#allocation5 + $0x190] sm:$0xff]
    %v194 = vld [vmem:[#allocation5 + $0x198] sm:$0xff]
    %v195 = vld [vmem:[#allocation5 + $0x1a0] sm:$0xff]
    %v196 = vld [vmem:[#allocation5 + $0x1a8] sm:$0xff]
    %v197 = vld [vmem:[#allocation5 + $0x1b0] sm:$0xff]
    %v198 = vld [vmem:[#allocation5 + $0x1b8] sm:$0xff]
    %v199 = vld [vmem:[#allocation5 + $0x1c0] sm:$0xff]
    %v200 = vld [vmem:[#allocation5 + $0x1c8] sm:$0xff]
    %v201 = vld [vmem:[#allocation5 + $0x1d0] sm:$0xff]
    %v202 = vld [vmem:[#allocation5 + $0x1d8] sm:$0xff]
    %v203 = vld [vmem:[#allocation5 + $0x1e0] sm:$0xff]
    %v204 = vld [vmem:[#allocation5 + $0x1e8] sm:$0xff]
    %v205 = vld [vmem:[#allocation5 + $0x1f0] sm:$0xff]
    %v206 = vld [vmem:[#allocation5 + $0x1f8] sm:$0xff]
    %v207 = vld [vmem:[#allocation5 + $0x200] sm:$0xff]
    %v208 = vld [vmem:[#allocation5 + $0x208] sm:$0xff]
    %v209 = vld [vmem:[#allocation5 + $0x210] sm:$0xff]
    %v210 = vld [vmem:[#allocation5 + $0x218] sm:$0xff]
    %v211 = vld [vmem:[#allocation5 + $0x220] sm:$0xff]
    %v212 = vld [vmem:[#allocation5 + $0x228] sm:$0xff]
    %v213 = vld [vmem:[#allocation5 + $0x230] sm:$0xff]
    %v214 = vld [vmem:[#allocation5 + $0x238] sm:$0xff]
    %v215 = vld [vmem:[#allocation5 + $0x240] sm:$0xff]
    %v216 = vld [vmem:[#allocation5 + $0x248] sm:$0xff]
    %v217 = vld [vmem:[#allocation5 + $0x250] sm:$0xff]
    %v218 = vld [vmem:[#allocation5 + $0x258] sm:$0xff]
    %v219 = vld [vmem:[#allocation5 + $0x260] sm:$0xff]
    %v220 = vld [vmem:[#allocation5 + $0x268] sm:$0xff]
    %v221 = vld [vmem:[#allocation5 + $0x270] sm:$0xff]
    %v222 = vld [vmem:[#allocation5 + $0x278] sm:$0xff]
    %v223 = vld [vmem:[#allocation5 + $0x280] sm:$0xff]
    %v224 = vld [vmem:[#allocation5 + $0x288] sm:$0xff]
    %v225 = vld [vmem:[#allocation5 + $0x290] sm:$0xff]
    %v226 = vld [vmem:[#allocation5 + $0x298] sm:$0xff]
    %v227 = vld [vmem:[#allocation5 + $0x2a0] sm:$0xff]
    %v228 = vld [vmem:[#allocation5 + $0x2a8] sm:$0xff]
    %v229 = vld [vmem:[#allocation5 + $0x2b0] sm:$0xff]
    %v230 = vld [vmem:[#allocation5 + $0x2b8] sm:$0xff]
    %v231 = vld [vmem:[#allocation5 + $0x2c0] sm:$0xff]
    %v232 = vld [vmem:[#allocation5 + $0x2c8] sm:$0xff]
    %v233 = vld [vmem:[#allocation5 + $0x2d0] sm:$0xff]
    %v234 = vld [vmem:[#allocation5 + $0x2d8] sm:$0xff]
    %v235 = vld [vmem:[#allocation5 + $0x2e0] sm:$0xff]
    %v236 = vld [vmem:[#allocation5 + $0x2e8] sm:$0xff]
    %v237 = vld [vmem:[#allocation5 + $0x2f0] sm:$0xff]
    %v238 = vld [vmem:[#allocation5 + $0x2f8] sm:$0xff]
    %v239 = vld [vmem:[#allocation5 + $0x300] sm:$0xff]
    %v240 = vld [vmem:[#allocation5 + $0x308] sm:$0xff]
    %v241 = vld [vmem:[#allocation5 + $0x310] sm:$0xff]
    %v242 = vld [vmem:[#allocation5 + $0x318] sm:$0xff]
    %v243 = vld [vmem:[#allocation5 + $0x320] sm:$0xff]
    %v244 = vld [vmem:[#allocation5 + $0x328] sm:$0xff]
    %v245 = vld [vmem:[#allocation5 + $0x330] sm:$0xff]
    %v246 = vld [vmem:[#allocation5 + $0x338] sm:$0xff]
    %v247 = vld [vmem:[#allocation5 + $0x340] sm:$0xff]
    %v248 = vld [vmem:[#allocation5 + $0x348] sm:$0xff]
    %v249 = vld [vmem:[#allocation5 + $0x350] sm:$0xff]
    %v250 = vld [vmem:[#allocation5 + $0x358] sm:$0xff]
    %v251 = vld [vmem:[#allocation5 + $0x360] sm:$0xff]
    %v252 = vld [vmem:[#allocation5 + $0x368] sm:$0xff]
    %v253 = vld [vmem:[#allocation5 + $0x370] sm:$0xff]
    %v254 = vld [vmem:[#allocation5 + $0x378] sm:$0xff]
    %v255 = vld [vmem:[#allocation5 + $0x380] sm:$0xff]
    %v256 = vld [vmem:[#allocation5 + $0x388] sm:$0xff]
    %v257 = vld [vmem:[#allocation5 + $0x390] sm:$0xff]
    %v258 = vld [vmem:[#allocation5 + $0x398] sm:$0xff]
    %v259 = vld [vmem:[#allocation5 + $0x3a0] sm:$0xff]
    %v260 = vld [vmem:[#allocation5 + $0x3a8] sm:$0xff]
    %v261 = vld [vmem:[#allocation5 + $0x3b0] sm:$0xff]
    %v262 = vld [vmem:[#allocation5 + $0x3b8] sm:$0xff]
    %v263 = vld [vmem:[#allocation5 + $0x3c0] sm:$0xff]
    %v264 = vld [vmem:[#allocation5 + $0x3c8] sm:$0xff]
    %v265 = vld [vmem:[#allocation5 + $0x3d0] sm:$0xff]
    %v266 = vld [vmem:[#allocation5 + $0x3d8] sm:$0xff]
    %v267 = vld [vmem:[#allocation5 + $0x3e0] sm:$0xff]
    %v268 = vld [vmem:[#allocation5 + $0x3e8] sm:$0xff]
    %v269 = vld [vmem:[#allocation5 + $0x3f0] sm:$0xff]
    %v270 = vld [vmem:[#allocation5 + $0x3f8] sm:$0xff]
    %v271 = vld [vmem:[#allocation5 + $0x400] sm:$0xff]
    %v272 = vld [vmem:[#allocation5 + $0x408] sm:$0xff]
    %v273 = vld [vmem:[#allocation5 + $0x410] sm:$0xff]
    %v274 = vld [vmem:[#allocation5 + $0x418] sm:$0xff]
    %v275 = vld [vmem:[#allocation5 + $0x420] sm:$0xff]
    %v276 = vld [vmem:[#allocation5 + $0x428] sm:$0xff]
    %v277 = vld [vmem:[#allocation5 + $0x430] sm:$0xff]
    %v278 = vld [vmem:[#allocation5 + $0x438] sm:$0xff]
    %v279 = vld [vmem:[#allocation5 + $0x440] sm:$0xff]
    %v280 = vld [vmem:[#allocation5 + $0x448] sm:$0xff]
    %v281 = vld [vmem:[#allocation5 + $0x450] sm:$0xff]
    %v282 = vld [vmem:[#allocation5 + $0x458] sm:$0xff]
    %v283 = vld [vmem:[#allocation5 + $0x460] sm:$0xff]
    %v284 = vld [vmem:[#allocation5 + $0x468] sm:$0xff]
    %v285 = vld [vmem:[#allocation5 + $0x470] sm:$0xff]
    %v286 = vld [vmem:[#allocation5 + $0x478] sm:$0xff]
    %v287 = vld [vmem:[#allocation5 + $0x480] sm:$0xff]
    %v288 = vld [vmem:[#allocation5 + $0x488] sm:$0xff]
    %v289 = vld [vmem:[#allocation5 + $0x490] sm:$0xff]
    %v290 = vld [vmem:[#allocation5 + $0x498] sm:$0xff]
    %v291 = vld [vmem:[#allocation5 + $0x4a0] sm:$0xff]
    %v292 = vld [vmem:[#allocation5 + $0x4a8] sm:$0xff]
    %v293 = vld [vmem:[#allocation5 + $0x4b0] sm:$0xff]
    %v294 = vld [vmem:[#allocation5 + $0x4b8] sm:$0xff]
    %v295 = vld [vmem:[#allocation5 + $0x4c0] sm:$0xff]
    %v296 = vld [vmem:[#allocation5 + $0x4c8] sm:$0xff]
    %v297 = vld [vmem:[#allocation5 + $0x4d0] sm:$0xff]
    %v298 = vld [vmem:[#allocation5 + $0x4d8] sm:$0xff]
    %v299 = vld [vmem:[#allocation5 + $0x4e0] sm:$0xff]
    %v300 = vld [vmem:[#allocation5 + $0x4e8] sm:$0xff]
    %v301 = vld [vmem:[#allocation5 + $0x4f0] sm:$0xff]
    %v302 = vld [vmem:[#allocation5 + $0x4f8] sm:$0xff]
    %v303 = vld [vmem:[#allocation5 + $0x500] sm:$0xff]
    %v304 = vld [vmem:[#allocation5 + $0x508] sm:$0xff]
    %v305 = vld [vmem:[#allocation5 + $0x510] sm:$0xff]
    %v306 = vld [vmem:[#allocation5 + $0x518] sm:$0xff]
    %v307 = vld [vmem:[#allocation5 + $0x520] sm:$0xff]
    %v308 = vld [vmem:[#allocation5 + $0x528] sm:$0xff]
    %v309 = vld [vmem:[#allocation5 + $0x530] sm:$0xff]
    %v310 = vld [vmem:[#allocation5 + $0x538] sm:$0xff]
    %v311 = vld [vmem:[#allocation5 + $0x540] sm:$0xff]
    %v312 = vld [vmem:[#allocation5 + $0x548] sm:$0xff]
    %v313 = vld [vmem:[#allocation5 + $0x550] sm:$0xff]
    %v314 = vld [vmem:[#allocation5 + $0x558] sm:$0xff]
    %v315 = vld [vmem:[#allocation5 + $0x560] sm:$0xff]
    %v316 = vld [vmem:[#allocation5 + $0x568] sm:$0xff]
    %v317 = vld [vmem:[#allocation5 + $0x570] sm:$0xff]
    %v318 = vld [vmem:[#allocation5 + $0x578] sm:$0xff]
    %v319 = vld [vmem:[#allocation5 + $0x580] sm:$0xff]
    %v320 = vld [vmem:[#allocation5 + $0x588] sm:$0xff]
    %v321 = vld [vmem:[#allocation5 + $0x590] sm:$0xff]
    %v322 = vld [vmem:[#allocation5 + $0x598] sm:$0xff]
    %v323 = vld [vmem:[#allocation5 + $0x5a0] sm:$0xff]
    %v324 = vld [vmem:[#allocation5 + $0x5a8] sm:$0xff]
    %v325 = vld [vmem:[#allocation5 + $0x5b0] sm:$0xff]
    %v326 = vld [vmem:[#allocation5 + $0x5b8] sm:$0xff]
    %v327 = vld [vmem:[#allocation5 + $0x5c0] sm:$0xff]
    %v328 = vld [vmem:[#allocation5 + $0x5c8] sm:$0xff]
    %v329 = vld [vmem:[#allocation5 + $0x5d0] sm:$0xff]
    %v330 = vld [vmem:[#allocation5 + $0x5d8] sm:$0xff]
    %v331 = vld [vmem:[#allocation5 + $0x5e0] sm:$0xff]
    %v332 = vld [vmem:[#allocation5 + $0x5e8] sm:$0xff]
    %v333 = vld [vmem:[#allocation5 + $0x5f0] sm:$0xff]
    %v334 = vld [vmem:[#allocation5 + $0x5f8] sm:$0xff]
    %v335 = vld [vmem:[#allocation5 + $0x600] sm:$0xff]
    %v336 = vld [vmem:[#allocation5 + $0x608] sm:$0xff]
    %v337 = vld [vmem:[#allocation5 + $0x610] sm:$0xff]
    %v338 = vld [vmem:[#allocation5 + $0x618] sm:$0xff]
    %v339 = vld [vmem:[#allocation5 + $0x620] sm:$0xff]
    %v340 = vld [vmem:[#allocation5 + $0x628] sm:$0xff]
    %v341 = vld [vmem:[#allocation5 + $0x630] sm:$0xff]
    %v342 = vld [vmem:[#allocation5 + $0x638] sm:$0xff]
    %v343 = vld [vmem:[#allocation5 + $0x640] sm:$0xff]
    %v344 = vld [vmem:[#allocation5 + $0x648] sm:$0xff]
    %v345 = vld [vmem:[#allocation5 + $0x650] sm:$0xff]
    %v346 = vld [vmem:[#allocation5 + $0x658] sm:$0xff]
    %v347 = vld [vmem:[#allocation5 + $0x660] sm:$0xff]
    %v348 = vld [vmem:[#allocation5 + $0x668] sm:$0xff]
    %v349 = vld [vmem:[#allocation5 + $0x670] sm:$0xff]
    %v350 = vld [vmem:[#allocation5 + $0x678] sm:$0xff]
    %v351 = vld [vmem:[#allocation5 + $0x680] sm:$0xff]
    %v352 = vld [vmem:[#allocation5 + $0x688] sm:$0xff]
    %v353 = vld [vmem:[#allocation5 + $0x690] sm:$0xff]
    %v354 = vld [vmem:[#allocation5 + $0x698] sm:$0xff]
    %v355 = vld [vmem:[#allocation5 + $0x6a0] sm:$0xff]
    %v356 = vld [vmem:[#allocation5 + $0x6a8] sm:$0xff]
    %v357 = vld [vmem:[#allocation5 + $0x6b0] sm:$0xff]
    %v358 = vld [vmem:[#allocation5 + $0x6b8] sm:$0xff]
    %v359 = vld [vmem:[#allocation5 + $0x6c0] sm:$0xff]
    %v360 = vld [vmem:[#allocation5 + $0x6c8] sm:$0xff]
    %v361 = vld [vmem:[#allocation5 + $0x6d0] sm:$0xff]
    %v362 = vld [vmem:[#allocation5 + $0x6d8] sm:$0xff]
    %v363 = vld [vmem:[#allocation5 + $0x6e0] sm:$0xff]
    %v364 = vld [vmem:[#allocation5 + $0x6e8] sm:$0xff]
    %v365 = vld [vmem:[#allocation5 + $0x6f0] sm:$0xff]
    %v366 = vld [vmem:[#allocation5 + $0x6f8] sm:$0xff]
    %v367 = vld [vmem:[#allocation5 + $0x700] sm:$0xff]
    %v368 = vld [vmem:[#allocation5 + $0x708] sm:$0xff]
    %v369 = vld [vmem:[#allocation5 + $0x710] sm:$0xff]
    %v370 = vld [vmem:[#allocation5 + $0x718] sm:$0xff]
    %v371 = vld [vmem:[#allocation5 + $0x720] sm:$0xff]
    %v372 = vld [vmem:[#allocation5 + $0x728] sm:$0xff]
    %v373 = vld [vmem:[#allocation5 + $0x730] sm:$0xff]
    %v374 = vld [vmem:[#allocation5 + $0x738] sm:$0xff]
    %v375 = vld [vmem:[#allocation5 + $0x740] sm:$0xff]
    %v376 = vld [vmem:[#allocation5 + $0x748] sm:$0xff]
    %v377 = vld [vmem:[#allocation5 + $0x750] sm:$0xff]
    %v378 = vld [vmem:[#allocation5 + $0x758] sm:$0xff]
    %v379 = vld [vmem:[#allocation5 + $0x760] sm:$0xff]
    %v380 = vld [vmem:[#allocation5 + $0x768] sm:$0xff]
    %v381 = vld [vmem:[#allocation5 + $0x770] sm:$0xff]
    %v382 = vld [vmem:[#allocation5 + $0x778] sm:$0xff]
    %v383 = vld [vmem:[#allocation5 + $0x780] sm:$0xff]
    %v384 = vld [vmem:[#allocation5 + $0x788] sm:$0xff]
    %v385 = vld [vmem:[#allocation5 + $0x790] sm:$0xff]
    %v386 = vld [vmem:[#allocation5 + $0x798] sm:$0xff]
    %v387 = vld [vmem:[#allocation5 + $0x7a0] sm:$0xff]
    %v388 = vld [vmem:[#allocation5 + $0x7a8] sm:$0xff]
    %v389 = vld [vmem:[#allocation5 + $0x7b0] sm:$0xff]
    %v390 = vld [vmem:[#allocation5 + $0x7b8] sm:$0xff]
    %v391 = vld [vmem:[#allocation5 + $0x7c0] sm:$0xff]
    %v392 = vld [vmem:[#allocation5 + $0x7c8] sm:$0xff]
    %v393 = vld [vmem:[#allocation5 + $0x7d0] sm:$0xff]
    %v394 = vld [vmem:[#allocation5 + $0x7d8] sm:$0xff]
    %v395 = vld [vmem:[#allocation5 + $0x7e0] sm:$0xff]
    %v396 = vld [vmem:[#allocation5 + $0x7e8] sm:$0xff]
    %v397 = vld [vmem:[#allocation5 + $0x7f0] sm:$0xff]
    %v398 = vld [vmem:[#allocation5 + $0x7f8] sm:$0xff]
    %v399 = vld [vmem:[#allocation5 + $0x800] sm:$0xff]
    %v400 = vld [vmem:[#allocation5 + $0x808] sm:$0xff]
    %v401 = vld [vmem:[#allocation5 + $0x810] sm:$0xff]
    %v402 = vld [vmem:[#allocation5 + $0x818] sm:$0xff]
    %v403 = vld [vmem:[#allocation5 + $0x820] sm:$0xff]
    %v404 = vld [vmem:[#allocation5 + $0x828] sm:$0xff]
    %v405 = vld [vmem:[#allocation5 + $0x830] sm:$0xff]
    %v406 = vld [vmem:[#allocation5 + $0x838] sm:$0xff]
    %v407 = vld [vmem:[#allocation5 + $0x840] sm:$0xff]
    %v408 = vld [vmem:[#allocation5 + $0x848] sm:$0xff]
    %v409 = vld [vmem:[#allocation5 + $0x850] sm:$0xff]
    %v410 = vld [vmem:[#allocation5 + $0x858] sm:$0xff]
    %v411 = vld [vmem:[#allocation5 + $0x860] sm:$0xff]
    %v412 = vld [vmem:[#allocation5 + $0x868] sm:$0xff]
    %v413 = vld [vmem:[#allocation5 + $0x870] sm:$0xff]
    %v414 = vld [vmem:[#allocation5 + $0x878] sm:$0xff]
    %v415 = vld [vmem:[#allocation5 + $0x880] sm:$0xff]
    %v416 = vld [vmem:[#allocation5 + $0x888] sm:$0xff]
    %v417 = vld [vmem:[#allocation5 + $0x890] sm:$0xff]
    %v418 = vld [vmem:[#allocation5 + $0x898] sm:$0xff]
    %v419 = vld [vmem:[#allocation5 + $0x8a0] sm:$0xff]
    %v420 = vld [vmem:[#allocation5 + $0x8a8] sm:$0xff]
    %v421 = vld [vmem:[#allocation5 + $0x8b0] sm:$0xff]
    %v422 = vld [vmem:[#allocation5 + $0x8b8] sm:$0xff]
    %v423 = vld [vmem:[#allocation5 + $0x8c0] sm:$0xff]
    %v424 = vld [vmem:[#allocation5 + $0x8c8] sm:$0xff]
    %v425 = vld [vmem:[#allocation5 + $0x8d0] sm:$0xff]
    %v426 = vld [vmem:[#allocation5 + $0x8d8] sm:$0xff]
    %v427 = vld [vmem:[#allocation5 + $0x8e0] sm:$0xff]
    %v428 = vld [vmem:[#allocation5 + $0x8e8] sm:$0xff]
    %v429 = vld [vmem:[#allocation5 + $0x8f0] sm:$0xff]
    %v430 = vld [vmem:[#allocation5 + $0x8f8] sm:$0xff]
    %v431 = vld [vmem:[#allocation5 + $0x900] sm:$0xff]
    %v432 = vld [vmem:[#allocation5 + $0x908] sm:$0xff]
    %v433 = vld [vmem:[#allocation5 + $0x910] sm:$0xff]
    %v434 = vld [vmem:[#allocation5 + $0x918] sm:$0xff]
    %v435 = vld [vmem:[#allocation5 + $0x920] sm:$0xff]
    %v436 = vld [vmem:[#allocation5 + $0x928] sm:$0xff]
    %v437 = vld [vmem:[#allocation5 + $0x930] sm:$0xff]
    %v438 = vld [vmem:[#allocation5 + $0x938] sm:$0xff]
    %v439 = vld [vmem:[#allocation5 + $0x940] sm:$0xff]
    %v440 = vld [vmem:[#allocation5 + $0x948] sm:$0xff]
    %v441 = vld [vmem:[#allocation5 + $0x950] sm:$0xff]
    %v442 = vld [vmem:[#allocation5 + $0x958] sm:$0xff]
    %v443 = vld [vmem:[#allocation5 + $0x960] sm:$0xff]
    %v444 = vld [vmem:[#allocation5 + $0x968] sm:$0xff]
    %v445 = vld [vmem:[#allocation5 + $0x970] sm:$0xff]
    %v446 = vld [vmem:[#allocation5 + $0x978] sm:$0xff]
    %v447 = vld [vmem:[#allocation5 + $0x980] sm:$0xff]
    %v448 = vld [vmem:[#allocation5 + $0x988] sm:$0xff]
    %v449 = vld [vmem:[#allocation5 + $0x990] sm:$0xff]
    %v450 = vld [vmem:[#allocation5 + $0x998] sm:$0xff]
    %v451 = vld [vmem:[#allocation5 + $0x9a0] sm:$0xff]
    %v452 = vld [vmem:[#allocation5 + $0x9a8] sm:$0xff]
    %v453 = vld [vmem:[#allocation5 + $0x9b0] sm:$0xff]
    %v454 = vld [vmem:[#allocation5 + $0x9b8] sm:$0xff]
    %v455 = vld [vmem:[#allocation5 + $0x9c0] sm:$0xff]
    %v456 = vld [vmem:[#allocation5 + $0x9c8] sm:$0xff]
    %v457 = vld [vmem:[#allocation5 + $0x9d0] sm:$0xff]
    %v458 = vld [vmem:[#allocation5 + $0x9d8] sm:$0xff]
    %v459 = vld [vmem:[#allocation5 + $0x9e0] sm:$0xff]
    %v460 = vld [vmem:[#allocation5 + $0x9e8] sm:$0xff]
    %v461 = vld [vmem:[#allocation5 + $0x9f0] sm:$0xff]
    %v462 = vld [vmem:[#allocation5 + $0x9f8] sm:$0xff]
    %v463 = vld [vmem:[#allocation5 + $0xa00] sm:$0xff]
    %v464 = vld [vmem:[#allocation5 + $0xa08] sm:$0xff]
    %v465 = vld [vmem:[#allocation5 + $0xa10] sm:$0xff]
    %v466 = vld [vmem:[#allocation5 + $0xa18] sm:$0xff]
    %v467 = vld [vmem:[#allocation5 + $0xa20] sm:$0xff]
    %v468 = vld [vmem:[#allocation5 + $0xa28] sm:$0xff]
    %v469 = vld [vmem:[#allocation5 + $0xa30] sm:$0xff]
    %v470 = vld [vmem:[#allocation5 + $0xa38] sm:$0xff]
    %v471 = vld [vmem:[#allocation5 + $0xa40] sm:$0xff]
    %v472 = vld [vmem:[#allocation5 + $0xa48] sm:$0xff]
    %v473 = vld [vmem:[#allocation5 + $0xa50] sm:$0xff]
    %v474 = vld [vmem:[#allocation5 + $0xa58] sm:$0xff]
    %v475 = vld [vmem:[#allocation5 + $0xa60] sm:$0xff]
    %v476 = vld [vmem:[#allocation5 + $0xa68] sm:$0xff]
    %v477 = vld [vmem:[#allocation5 + $0xa70] sm:$0xff]
    %v478 = vld [vmem:[#allocation5 + $0xa78] sm:$0xff]
    %v479 = vld [vmem:[#allocation5 + $0xa80] sm:$0xff]
    %v480 = vld [vmem:[#allocation5 + $0xa88] sm:$0xff]
    %v481 = vld [vmem:[#allocation5 + $0xa90] sm:$0xff]
    %v482 = vld [vmem:[#allocation5 + $0xa98] sm:$0xff]
    %v483 = vld [vmem:[#allocation5 + $0xaa0] sm:$0xff]
    %v484 = vld [vmem:[#allocation5 + $0xaa8] sm:$0xff]
    %v485 = vld [vmem:[#allocation5 + $0xab0] sm:$0xff]
    %v486 = vld [vmem:[#allocation5 + $0xab8] sm:$0xff]
    %v487 = vld [vmem:[#allocation5 + $0xac0] sm:$0xff]
    %v488 = vld [vmem:[#allocation5 + $0xac8] sm:$0xff]
    %v489 = vld [vmem:[#allocation5 + $0xad0] sm:$0xff]
    %v490 = vld [vmem:[#allocation5 + $0xad8] sm:$0xff]
    %v491 = vld [vmem:[#allocation5 + $0xae0] sm:$0xff]
    %v492 = vld [vmem:[#allocation5 + $0xae8] sm:$0xff]
    %v493 = vld [vmem:[#allocation5 + $0xaf0] sm:$0xff]
    %v494 = vld [vmem:[#allocation5 + $0xaf8] sm:$0xff]
    %v495 = vld [vmem:[#allocation5 + $0xb00] sm:$0xff]
    %v496 = vld [vmem:[#allocation5 + $0xb08] sm:$0xff]
    %v497 = vld [vmem:[#allocation5 + $0xb10] sm:$0xff]
    %v498 = vld [vmem:[#allocation5 + $0xb18] sm:$0xff]
    %v499 = vld [vmem:[#allocation5 + $0xb20] sm:$0xff]
    %v500 = vld [vmem:[#allocation5 + $0xb28] sm:$0xff]
    %v501 = vld [vmem:[#allocation5 + $0xb30] sm:$0xff]
    %v502 = vld [vmem:[#allocation5 + $0xb38] sm:$0xff]
    %v503 = vld [vmem:[#allocation5 + $0xb40] sm:$0xff]
    %v504 = vld [vmem:[#allocation5 + $0xb48] sm:$0xff]
    %v505 = vld [vmem:[#allocation5 + $0xb50] sm:$0xff]
    %v506 = vld [vmem:[#allocation5 + $0xb58] sm:$0xff]
    %v507 = vld [vmem:[#allocation5 + $0xb60] sm:$0xff]
    %v508 = vld [vmem:[#allocation5 + $0xb68] sm:$0xff]
    %v509 = vld [vmem:[#allocation5 + $0xb70] sm:$0xff]
    %v510 = vld [vmem:[#allocation5 + $0xb78] sm:$0xff]
    %v511 = vld [vmem:[#allocation5 + $0xb80] sm:$0xff]
    %v512 = vld [vmem:[#allocation5 + $0xb88] sm:$0xff]
    %v513 = vld [vmem:[#allocation5 + $0xb90] sm:$0xff]
    %v514 = vld [vmem:[#allocation5 + $0xb98] sm:$0xff]
    %v515 = vld [vmem:[#allocation5 + $0xba0] sm:$0xff]
    %v516 = vld [vmem:[#allocation5 + $0xba8] sm:$0xff]
    %v517 = vld [vmem:[#allocation5 + $0xbb0] sm:$0xff]
    %v518 = vld [vmem:[#allocation5 + $0xbb8] sm:$0xff]
    %v519 = vld [vmem:[#allocation5 + $0xbc0] sm:$0xff]
    %v520 = vld [vmem:[#allocation5 + $0xbc8] sm:$0xff]
    %v521 = vld [vmem:[#allocation5 + $0xbd0] sm:$0xff]
    %v522 = vld [vmem:[#allocation5 + $0xbd8] sm:$0xff]
    %v523 = vld [vmem:[#allocation5 + $0xbe0] sm:$0xff]
    %v524 = vld [vmem:[#allocation5 + $0xbe8] sm:$0xff]
    %v525 = vld [vmem:[#allocation5 + $0xbf0] sm:$0xff]
    %v526 = vld [vmem:[#allocation5 + $0xbf8] sm:$0xff]
    %v527 = vld [vmem:[#allocation5 + $0xc00] sm:$0xff]
    %v528 = vld [vmem:[#allocation5 + $0xc08] sm:$0xff]
    %v529 = vld [vmem:[#allocation5 + $0xc10] sm:$0xff]
    %v530 = vld [vmem:[#allocation5 + $0xc18] sm:$0xff]
    %v531 = vld [vmem:[#allocation5 + $0xc20] sm:$0xff]
    %v532 = vld [vmem:[#allocation5 + $0xc28] sm:$0xff]
    %v533 = vld [vmem:[#allocation5 + $0xc30] sm:$0xff]
    %v534 = vld [vmem:[#allocation5 + $0xc38] sm:$0xff]
    %v535 = vld [vmem:[#allocation5 + $0xc40] sm:$0xff]
    %v536 = vld [vmem:[#allocation5 + $0xc48] sm:$0xff]
    %v537 = vld [vmem:[#allocation5 + $0xc50] sm:$0xff]
    %v538 = vld [vmem:[#allocation5 + $0xc58] sm:$0xff]
    %v539 = vld [vmem:[#allocation5 + $0xc60] sm:$0xff]
    %v540 = vld [vmem:[#allocation5 + $0xc68] sm:$0xff]
    %v541 = vld [vmem:[#allocation5 + $0xc70] sm:$0xff]
    %v542 = vld [vmem:[#allocation5 + $0xc78] sm:$0xff]
    %v543 = vld [vmem:[#allocation5 + $0xc80] sm:$0xff]
    %v544 = vld [vmem:[#allocation5 + $0xc88] sm:$0xff]
    %v545 = vld [vmem:[#allocation5 + $0xc90] sm:$0xff]
    %v546 = vld [vmem:[#allocation5 + $0xc98] sm:$0xff]
    %v547 = vld [vmem:[#allocation5 + $0xca0] sm:$0xff]
    %v548 = vld [vmem:[#allocation5 + $0xca8] sm:$0xff]
    %v549 = vld [vmem:[#allocation5 + $0xcb0] sm:$0xff]
    %v550 = vld [vmem:[#allocation5 + $0xcb8] sm:$0xff]
    %v551 = vld [vmem:[#allocation5 + $0xcc0] sm:$0xff]
    %v552 = vld [vmem:[#allocation5 + $0xcc8] sm:$0xff]
    %v553 = vld [vmem:[#allocation5 + $0xcd0] sm:$0xff]
    %v554 = vld [vmem:[#allocation5 + $0xcd8] sm:$0xff]
    %v555 = vld [vmem:[#allocation5 + $0xce0] sm:$0xff]
    %v556 = vld [vmem:[#allocation5 + $0xce8] sm:$0xff]
    %v557 = vld [vmem:[#allocation5 + $0xcf0] sm:$0xff]
    %v558 = vld [vmem:[#allocation5 + $0xcf8] sm:$0xff]
    %v559 = vld [vmem:[#allocation5 + $0xd00] sm:$0xff]
    %v560 = vld [vmem:[#allocation5 + $0xd08] sm:$0xff]
    %v561 = vld [vmem:[#allocation5 + $0xd10] sm:$0xff]
    %v562 = vld [vmem:[#allocation5 + $0xd18] sm:$0xff]
    %v563 = vld [vmem:[#allocation5 + $0xd20] sm:$0xff]
    %v564 = vld [vmem:[#allocation5 + $0xd28] sm:$0xff]
    %v565 = vld [vmem:[#allocation5 + $0xd30] sm:$0xff]
    %v566 = vld [vmem:[#allocation5 + $0xd38] sm:$0xff]
    %v567 = vld [vmem:[#allocation5 + $0xd40] sm:$0xff]
    %v568 = vld [vmem:[#allocation5 + $0xd48] sm:$0xff]
    %v569 = vld [vmem:[#allocation5 + $0xd50] sm:$0xff]
    %v570 = vld [vmem:[#allocation5 + $0xd58] sm:$0xff]
    %v571 = vld [vmem:[#allocation5 + $0xd60] sm:$0xff]
    %v572 = vld [vmem:[#allocation5 + $0xd68] sm:$0xff]
    %v573 = vld [vmem:[#allocation5 + $0xd70] sm:$0xff]
    %v574 = vld [vmem:[#allocation5 + $0xd78] sm:$0xff]
    %v575 = vld [vmem:[#allocation5 + $0xd80] sm:$0xff]
    %v576 = vld [vmem:[#allocation5 + $0xd88] sm:$0xff]
    %v577 = vld [vmem:[#allocation5 + $0xd90] sm:$0xff]
    %v578 = vld [vmem:[#allocation5 + $0xd98] sm:$0xff]
    %v579 = vld [vmem:[#allocation5 + $0xda0] sm:$0xff]
    %v580 = vld [vmem:[#allocation5 + $0xda8] sm:$0xff]
    %v581 = vld [vmem:[#allocation5 + $0xdb0] sm:$0xff]
    %v582 = vld [vmem:[#allocation5 + $0xdb8] sm:$0xff]
    %v583 = vld [vmem:[#allocation5 + $0xdc0] sm:$0xff]
    %v584 = vld [vmem:[#allocation5 + $0xdc8] sm:$0xff]
    %v585 = vld [vmem:[#allocation5 + $0xdd0] sm:$0xff]
    %v586 = vld [vmem:[#allocation5 + $0xdd8] sm:$0xff]
    %v587 = vld [vmem:[#allocation5 + $0xde0] sm:$0xff]
    %v588 = vld [vmem:[#allocation5 + $0xde8] sm:$0xff]
    %v589 = vld [vmem:[#allocation5 + $0xdf0] sm:$0xff]
    %v590 = vld [vmem:[#allocation5 + $0xdf8] sm:$0xff]
    %v591 = vld [vmem:[#allocation5 + $0xe00] sm:$0xff]
    %v592 = vld [vmem:[#allocation5 + $0xe08] sm:$0xff]
    %v593 = vld [vmem:[#allocation5 + $0xe10] sm:$0xff]
    %v594 = vld [vmem:[#allocation5 + $0xe18] sm:$0xff]
    %v595 = vld [vmem:[#allocation5 + $0xe20] sm:$0xff]
    %v596 = vld [vmem:[#allocation5 + $0xe28] sm:$0xff]
    %v597 = vld [vmem:[#allocation5 + $0xe30] sm:$0xff]
    %v598 = vld [vmem:[#allocation5 + $0xe38] sm:$0xff]
    %v599 = vld [vmem:[#allocation5 + $0xe40] sm:$0xff]
    %v600 = vld [vmem:[#allocation5 + $0xe48] sm:$0xff]
    %v601 = vld [vmem:[#allocation5 + $0xe50] sm:$0xff]
    %v602 = vld [vmem:[#allocation5 + $0xe58] sm:$0xff]
    %v603 = vld [vmem:[#allocation5 + $0xe60] sm:$0xff]
    %v604 = vld [vmem:[#allocation5 + $0xe68] sm:$0xff]
    %v605 = vld [vmem:[#allocation5 + $0xe70] sm:$0xff]
    %v606 = vld [vmem:[#allocation5 + $0xe78] sm:$0xff]
    %v607 = vld [vmem:[#allocation7] sm:$0x3]
    %v609 = vperm.slane %v607, 0
    %v610 = vperm.slane %v607, 1
    %v628 = vunpack.c.l.b16 %v128
    %v629 = vunpack.c.h.b16 %v128
    %v630 = vunpack.c.l.b16 %v129
    %v631 = vunpack.c.h.b16 %v129
    %v632 = vunpack.c.l.b16 %v130
    %v633 = vunpack.c.h.b16 %v130
    %v634 = vunpack.c.l.b16 %v131
    %v635 = vunpack.c.h.b16 %v131
    %v636 = vunpack.c.l.b16 %v132
    %v637 = vunpack.c.h.b16 %v132
    %v638 = vunpack.c.l.b16 %v133
    %v639 = vunpack.c.h.b16 %v133
    %v640 = vunpack.c.l.b16 %v134
    %v641 = vunpack.c.h.b16 %v134
    %v642 = vunpack.c.l.b16 %v135
    %v643 = vunpack.c.h.b16 %v135
    %v644 = vunpack.c.l.b16 %v136
    %v645 = vunpack.c.h.b16 %v136
    %v646 = vunpack.c.l.b16 %v137
    %v647 = vunpack.c.h.b16 %v137
    %v648 = vunpack.c.l.b16 %v138
    %v649 = vunpack.c.h.b16 %v138
    %v650 = vunpack.c.l.b16 %v139
    %v651 = vunpack.c.h.b16 %v139
    %v652 = vunpack.c.l.b16 %v140
    %v653 = vunpack.c.h.b16 %v140
    %v654 = vunpack.c.l.b16 %v141
    %v655 = vunpack.c.h.b16 %v141
    %v656 = vunpack.c.l.b16 %v142
    %v657 = vpack.c.b16 %v628, %v628
    %v658 = vpack.c.b16 %v629, %v629
    %v659 = vpack.c.b16 %v630, %v630
    %v660 = vpack.c.b16 %v631, %v631
    %v661 = vpack.c.b16 %v632, %v632
    %v662 = vpack.c.b16 %v633, %v633
    %v663 = vpack.c.b16 %v634, %v634
    %v664 = vpack.c.b16 %v635, %v635
    %v665 = vpack.c.b16 %v636, %v636
    %v666 = vpack.c.b16 %v637, %v637
    %v667 = vpack.c.b16 %v638, %v638
    %v668 = vpack.c.b16 %v639, %v639
    %v669 = vpack.c.b16 %v640, %v640
    %v670 = vpack.c.b16 %v641, %v641
    %v671 = vpack.c.b16 %v642, %v642
    %v672 = vpack.c.b16 %v643, %v643
    %v673 = vpack.c.b16 %v644, %v644
    %v674 = vpack.c.b16 %v645, %v645
    %v675 = vpack.c.b16 %v646, %v646
    %v676 = vpack.c.b16 %v647, %v647
    %v677 = vpack.c.b16 %v648, %v648
    %v678 = vpack.c.b16 %v649, %v649
    %v679 = vpack.c.b16 %v650, %v650
    %v680 = vpack.c.b16 %v651, %v651
    %v681 = vpack.c.b16 %v652, %v652
    %v682 = vpack.c.b16 %v653, %v653
    %v683 = vpack.c.b16 %v654, %v654
    %v684 = vpack.c.b16 %v655, %v655
    %v685 = vpack.c.b16 %v656, %v656
    %v1179 = vunpack.c.l.b16 %v143
    %v1180 = vunpack.c.h.b16 %v143
    %v1181 = vunpack.c.l.b16 %v144
    %v1182 = vunpack.c.h.b16 %v144
    %v1183 = vunpack.c.l.b16 %v145
    %v1184 = vunpack.c.h.b16 %v145
    %v1185 = vunpack.c.l.b16 %v146
    %v1186 = vunpack.c.h.b16 %v146
    %v1187 = vunpack.c.l.b16 %v147
    %v1188 = vunpack.c.h.b16 %v147
    %v1189 = vunpack.c.l.b16 %v148
    %v1190 = vunpack.c.h.b16 %v148
    %v1191 = vunpack.c.l.b16 %v149
    %v1192 = vunpack.c.h.b16 %v149
    %v1193 = vunpack.c.l.b16 %v150
    %v1194 = vunpack.c.h.b16 %v150
    %v1195 = vunpack.c.l.b16 %v151
    %v1196 = vunpack.c.h.b16 %v151
    %v1197 = vunpack.c.l.b16 %v152
    %v1198 = vunpack.c.h.b16 %v152
    %v1199 = vunpack.c.l.b16 %v153
    %v1200 = vunpack.c.h.b16 %v153
    %v1201 = vunpack.c.l.b16 %v154
    %v1202 = vunpack.c.h.b16 %v154
    %v1203 = vunpack.c.l.b16 %v155
    %v1204 = vunpack.c.h.b16 %v155
    %v1205 = vunpack.c.l.b16 %v156
    %v1206 = vunpack.c.h.b16 %v156
    %v1207 = vunpack.c.l.b16 %v157
    %v1208 = vunpack.c.h.b16 %v157
    %v1209 = vunpack.c.l.b16 %v158
    %v1210 = vunpack.c.h.b16 %v158
    %v1211 = vunpack.c.l.b16 %v159
    %v1212 = vunpack.c.h.b16 %v159
    %v1213 = vunpack.c.l.b16 %v160
    %v1214 = vunpack.c.h.b16 %v160
    %v1215 = vunpack.c.l.b16 %v161
    %v1216 = vunpack.c.h.b16 %v161
    %v1217 = vunpack.c.l.b16 %v162
    %v1218 = vunpack.c.h.b16 %v162
    %v1219 = vunpack.c.l.b16 %v163
    %v1220 = vunpack.c.h.b16 %v163
    %v1221 = vunpack.c.l.b16 %v164
    %v1222 = vunpack.c.h.b16 %v164
    %v1223 = vunpack.c.l.b16 %v165
    %v1224 = vunpack.c.h.b16 %v165
    %v1225 = vunpack.c.l.b16 %v166
    %v1226 = vunpack.c.h.b16 %v166
    %v1227 = vunpack.c.l.b16 %v167
    %v1228 = vunpack.c.h.b16 %v167
    %v1229 = vunpack.c.l.b16 %v168
    %v1230 = vunpack.c.h.b16 %v168
    %v1231 = vunpack.c.l.b16 %v169
    %v1232 = vunpack.c.h.b16 %v169
    %v1233 = vunpack.c.l.b16 %v170
    %v1234 = vunpack.c.h.b16 %v170
    %v1235 = vunpack.c.l.b16 %v171
    %v1236 = vunpack.c.h.b16 %v171
    %v1237 = vunpack.c.l.b16 %v172
    %v1238 = vunpack.c.h.b16 %v172
    %v1239 = vunpack.c.l.b16 %v173
    %v1240 = vunpack.c.h.b16 %v173
    %v1241 = vunpack.c.l.b16 %v174
    %v1242 = vunpack.c.h.b16 %v174
    %v1243 = vunpack.c.l.b16 %v175
    %v1244 = vunpack.c.h.b16 %v175
    %v1245 = vunpack.c.l.b16 %v176
    %v1246 = vunpack.c.h.b16 %v176
    %v1247 = vunpack.c.l.b16 %v177
    %v1248 = vunpack.c.h.b16 %v177
    %v1249 = vunpack.c.l.b16 %v178
    %v1250 = vunpack.c.h.b16 %v178
    %v1251 = vunpack.c.l.b16 %v179
    %v1252 = vunpack.c.h.b16 %v179
    %v1253 = vunpack.c.l.b16 %v180
    %v1254 = vunpack.c.h.b16 %v180
    %v1255 = vunpack.c.l.b16 %v181
    %v1256 = vunpack.c.h.b16 %v181
    %v1257 = vunpack.c.l.b16 %v182
    %v1258 = vunpack.c.h.b16 %v182
    %v1259 = vunpack.c.l.b16 %v183
    %v1260 = vunpack.c.h.b16 %v183
    %v1261 = vunpack.c.l.b16 %v184
    %v1262 = vunpack.c.h.b16 %v184
    %v1263 = vunpack.c.l.b16 %v185
    %v1264 = vunpack.c.h.b16 %v185
    %v1265 = vunpack.c.l.b16 %v186
    %v1266 = vunpack.c.h.b16 %v186
    %v1267 = vunpack.c.l.b16 %v187
    %v1268 = vunpack.c.h.b16 %v187
    %v1269 = vunpack.c.l.b16 %v188
    %v1270 = vunpack.c.h.b16 %v188
    %v1271 = vunpack.c.l.b16 %v189
    %v1272 = vunpack.c.h.b16 %v189
    %v1273 = vunpack.c.l.b16 %v190
    %v1274 = vunpack.c.h.b16 %v190
    %v1275 = vunpack.c.l.b16 %v191
    %v1276 = vunpack.c.h.b16 %v191
    %v1277 = vunpack.c.l.b16 %v192
    %v1278 = vunpack.c.h.b16 %v192
    %v1279 = vunpack.c.l.b16 %v193
    %v1280 = vunpack.c.h.b16 %v193
    %v1281 = vunpack.c.l.b16 %v194
    %v1282 = vunpack.c.h.b16 %v194
    %v1283 = vunpack.c.l.b16 %v195
    %v1284 = vunpack.c.h.b16 %v195
    %v1285 = vunpack.c.l.b16 %v196
    %v1286 = vunpack.c.h.b16 %v196
    %v1287 = vunpack.c.l.b16 %v197
    %v1288 = vunpack.c.h.b16 %v197
    %v1289 = vunpack.c.l.b16 %v198
    %v1290 = vunpack.c.h.b16 %v198
    %v1291 = vunpack.c.l.b16 %v199
    %v1292 = vunpack.c.h.b16 %v199
    %v1293 = vunpack.c.l.b16 %v200
    %v1294 = vunpack.c.h.b16 %v200
    %v1295 = vunpack.c.l.b16 %v201
    %v1296 = vunpack.c.h.b16 %v201
    %v1297 = vunpack.c.l.b16 %v202
    %v1298 = vunpack.c.h.b16 %v202
    %v1299 = vunpack.c.l.b16 %v203
    %v1300 = vunpack.c.h.b16 %v203
    %v1301 = vunpack.c.l.b16 %v204
    %v1302 = vunpack.c.h.b16 %v204
    %v1303 = vunpack.c.l.b16 %v205
    %v1304 = vunpack.c.h.b16 %v205
    %v1305 = vunpack.c.l.b16 %v206
    %v1306 = vunpack.c.h.b16 %v206
    %v1307 = vunpack.c.l.b16 %v207
    %v1308 = vunpack.c.h.b16 %v207
    %v1309 = vunpack.c.l.b16 %v208
    %v1310 = vunpack.c.h.b16 %v208
    %v1311 = vunpack.c.l.b16 %v209
    %v1312 = vunpack.c.h.b16 %v209
    %v1313 = vunpack.c.l.b16 %v210
    %v1314 = vunpack.c.h.b16 %v210
    %v1315 = vunpack.c.l.b16 %v211
    %v1316 = vunpack.c.h.b16 %v211
    %v1317 = vunpack.c.l.b16 %v212
    %v1318 = vunpack.c.h.b16 %v212
    %v1319 = vunpack.c.l.b16 %v213
    %v1320 = vunpack.c.h.b16 %v213
    %v1321 = vunpack.c.l.b16 %v214
    %v1322 = vunpack.c.h.b16 %v214
    %v1323 = vunpack.c.l.b16 %v215
    %v1324 = vunpack.c.h.b16 %v215
    %v1325 = vunpack.c.l.b16 %v216
    %v1326 = vunpack.c.h.b16 %v216
    %v1327 = vunpack.c.l.b16 %v217
    %v1328 = vunpack.c.h.b16 %v217
    %v1329 = vunpack.c.l.b16 %v218
    %v1330 = vunpack.c.h.b16 %v218
    %v1331 = vunpack.c.l.b16 %v219
    %v1332 = vunpack.c.h.b16 %v219
    %v1333 = vunpack.c.l.b16 %v220
    %v1334 = vunpack.c.h.b16 %v220
    %v1335 = vunpack.c.l.b16 %v221
    %v1336 = vunpack.c.h.b16 %v221
    %v1337 = vunpack.c.l.b16 %v222
    %v1338 = vunpack.c.h.b16 %v222
    %v1339 = vunpack.c.l.b16 %v223
    %v1340 = vunpack.c.h.b16 %v223
    %v1341 = vunpack.c.l.b16 %v224
    %v1342 = vunpack.c.h.b16 %v224
    %v1343 = vunpack.c.l.b16 %v225
    %v1344 = vunpack.c.h.b16 %v225
    %v1345 = vunpack.c.l.b16 %v226
    %v1346 = vunpack.c.h.b16 %v226
    %v1347 = vunpack.c.l.b16 %v227
    %v1348 = vunpack.c.h.b16 %v227
    %v1349 = vunpack.c.l.b16 %v228
    %v1350 = vunpack.c.h.b16 %v228
    %v1351 = vunpack.c.l.b16 %v229
    %v1352 = vunpack.c.h.b16 %v229
    %v1353 = vunpack.c.l.b16 %v230
    %v1354 = vunpack.c.h.b16 %v230
    %v1355 = vunpack.c.l.b16 %v231
    %v1356 = vunpack.c.h.b16 %v231
    %v1357 = vunpack.c.l.b16 %v232
    %v1358 = vunpack.c.h.b16 %v232
    %v1359 = vunpack.c.l.b16 %v233
    %v1360 = vunpack.c.h.b16 %v233
    %v1361 = vunpack.c.l.b16 %v234
    %v1362 = vunpack.c.h.b16 %v234
    %v1363 = vunpack.c.l.b16 %v235
    %v1364 = vunpack.c.h.b16 %v235
    %v1365 = vunpack.c.l.b16 %v236
    %v1366 = vunpack.c.h.b16 %v236
    %v1367 = vunpack.c.l.b16 %v237
    %v1368 = vunpack.c.h.b16 %v237
    %v1369 = vunpack.c.l.b16 %v238
    %v1370 = vunpack.c.h.b16 %v238
    %v1371 = vunpack.c.l.b16 %v239
    %v1372 = vunpack.c.h.b16 %v239
    %v1373 = vunpack.c.l.b16 %v240
    %v1374 = vunpack.c.h.b16 %v240
    %v1375 = vunpack.c.l.b16 %v241
    %v1376 = vunpack.c.h.b16 %v241
    %v1377 = vunpack.c.l.b16 %v242
    %v1378 = vunpack.c.h.b16 %v242
    %v1379 = vunpack.c.l.b16 %v243
    %v1380 = vunpack.c.h.b16 %v243
    %v1381 = vunpack.c.l.b16 %v244
    %v1382 = vunpack.c.h.b16 %v244
    %v1383 = vunpack.c.l.b16 %v245
    %v1384 = vunpack.c.h.b16 %v245
    %v1385 = vunpack.c.l.b16 %v246
    %v1386 = vunpack.c.h.b16 %v246
    %v1387 = vunpack.c.l.b16 %v247
    %v1388 = vunpack.c.h.b16 %v247
    %v1389 = vunpack.c.l.b16 %v248
    %v1390 = vunpack.c.h.b16 %v248
    %v1391 = vunpack.c.l.b16 %v249
    %v1392 = vunpack.c.h.b16 %v249
    %v1393 = vunpack.c.l.b16 %v250
    %v1394 = vunpack.c.h.b16 %v250
    %v1395 = vunpack.c.l.b16 %v251
    %v1396 = vunpack.c.h.b16 %v251
    %v1397 = vunpack.c.l.b16 %v252
    %v1398 = vunpack.c.h.b16 %v252
    %v1399 = vunpack.c.l.b16 %v253
    %v1400 = vunpack.c.h.b16 %v253
    %v1401 = vunpack.c.l.b16 %v254
    %v1402 = vunpack.c.h.b16 %v254
    %v1403 = vunpack.c.l.b16 %v255
    %v1404 = vunpack.c.h.b16 %v255
    %v1405 = vunpack.c.l.b16 %v256
    %v1406 = vunpack.c.h.b16 %v256
    %v1407 = vunpack.c.l.b16 %v257
    %v1408 = vunpack.c.h.b16 %v257
    %v1409 = vunpack.c.l.b16 %v258
    %v1410 = vunpack.c.h.b16 %v258
    %v1411 = vunpack.c.l.b16 %v259
    %v1412 = vunpack.c.h.b16 %v259
    %v1413 = vunpack.c.l.b16 %v260
    %v1414 = vunpack.c.h.b16 %v260
    %v1415 = vunpack.c.l.b16 %v261
    %v1416 = vunpack.c.h.b16 %v261
    %v1417 = vunpack.c.l.b16 %v262
    %v1418 = vunpack.c.h.b16 %v262
    %v1419 = vunpack.c.l.b16 %v263
    %v1420 = vunpack.c.h.b16 %v263
    %v1421 = vunpack.c.l.b16 %v264
    %v1422 = vunpack.c.h.b16 %v264
    %v1423 = vunpack.c.l.b16 %v265
    %v1424 = vunpack.c.h.b16 %v265
    %v1425 = vunpack.c.l.b16 %v266
    %v1426 = vunpack.c.h.b16 %v266
    %v1427 = vunpack.c.l.b16 %v267
    %v1428 = vunpack.c.h.b16 %v267
    %v1429 = vunpack.c.l.b16 %v268
    %v1430 = vunpack.c.h.b16 %v268
    %v1431 = vunpack.c.l.b16 %v269
    %v1432 = vunpack.c.h.b16 %v269
    %v1433 = vunpack.c.l.b16 %v270
    %v1434 = vunpack.c.h.b16 %v270
    %v1435 = vunpack.c.l.b16 %v271
    %v1436 = vunpack.c.h.b16 %v271
    %v1437 = vunpack.c.l.b16 %v272
    %v1438 = vunpack.c.h.b16 %v272
    %v1439 = vunpack.c.l.b16 %v273
    %v1440 = vunpack.c.h.b16 %v273
    %v1441 = vunpack.c.l.b16 %v274
    %v1442 = vunpack.c.h.b16 %v274
    %v1443 = vunpack.c.l.b16 %v275
    %v1444 = vunpack.c.h.b16 %v275
    %v1445 = vunpack.c.l.b16 %v276
    %v1446 = vunpack.c.h.b16 %v276
    %v1447 = vunpack.c.l.b16 %v277
    %v1448 = vunpack.c.h.b16 %v277
    %v1449 = vunpack.c.l.b16 %v278
    %v1450 = vunpack.c.h.b16 %v278
    %v1451 = vunpack.c.l.b16 %v279
    %v1452 = vunpack.c.h.b16 %v279
    %v1453 = vunpack.c.l.b16 %v280
    %v1454 = vunpack.c.h.b16 %v280
    %v1455 = vunpack.c.l.b16 %v281
    %v1456 = vunpack.c.h.b16 %v281
    %v1457 = vunpack.c.l.b16 %v282
    %v1458 = vunpack.c.h.b16 %v282
    %v1459 = vunpack.c.l.b16 %v283
    %v1460 = vunpack.c.h.b16 %v283
    %v1461 = vunpack.c.l.b16 %v284
    %v1462 = vunpack.c.h.b16 %v284
    %v1463 = vunpack.c.l.b16 %v285
    %v1464 = vunpack.c.h.b16 %v285
    %v1465 = vunpack.c.l.b16 %v286
    %v1466 = vunpack.c.h.b16 %v286
    %v1467 = vunpack.c.l.b16 %v287
    %v1468 = vunpack.c.h.b16 %v287
    %v1469 = vunpack.c.l.b16 %v288
    %v1470 = vunpack.c.h.b16 %v288
    %v1471 = vunpack.c.l.b16 %v289
    %v1472 = vunpack.c.h.b16 %v289
    %v1473 = vunpack.c.l.b16 %v290
    %v1474 = vunpack.c.h.b16 %v290
    %v1475 = vunpack.c.l.b16 %v291
    %v1476 = vunpack.c.h.b16 %v291
    %v1477 = vunpack.c.l.b16 %v292
    %v1478 = vunpack.c.h.b16 %v292
    %v1479 = vunpack.c.l.b16 %v293
    %v1480 = vunpack.c.h.b16 %v293
    %v1481 = vunpack.c.l.b16 %v294
    %v1482 = vunpack.c.h.b16 %v294
    %v1483 = vunpack.c.l.b16 %v295
    %v1484 = vunpack.c.h.b16 %v295
    %v1485 = vunpack.c.l.b16 %v296
    %v1486 = vunpack.c.h.b16 %v296
    %v1487 = vunpack.c.l.b16 %v297
    %v1488 = vunpack.c.h.b16 %v297
    %v1489 = vunpack.c.l.b16 %v298
    %v1490 = vunpack.c.h.b16 %v298
    %v1491 = vunpack.c.l.b16 %v299
    %v1492 = vunpack.c.h.b16 %v299
    %v1493 = vunpack.c.l.b16 %v300
    %v1494 = vunpack.c.h.b16 %v300
    %v1495 = vunpack.c.l.b16 %v301
    %v1496 = vunpack.c.h.b16 %v301
    %v1497 = vunpack.c.l.b16 %v302
    %v1498 = vunpack.c.h.b16 %v302
    %v1499 = vunpack.c.l.b16 %v303
    %v1500 = vunpack.c.h.b16 %v303
    %v1501 = vunpack.c.l.b16 %v304
    %v1502 = vunpack.c.h.b16 %v304
    %v1503 = vunpack.c.l.b16 %v305
    %v1504 = vunpack.c.h.b16 %v305
    %v1505 = vunpack.c.l.b16 %v306
    %v1506 = vunpack.c.h.b16 %v306
    %v1507 = vunpack.c.l.b16 %v307
    %v1508 = vunpack.c.h.b16 %v307
    %v1509 = vunpack.c.l.b16 %v308
    %v1510 = vunpack.c.h.b16 %v308
    %v1511 = vunpack.c.l.b16 %v309
    %v1512 = vunpack.c.h.b16 %v309
    %v1513 = vunpack.c.l.b16 %v310
    %v1514 = vunpack.c.h.b16 %v310
    %v1515 = vunpack.c.l.b16 %v311
    %v1516 = vunpack.c.h.b16 %v311
    %v1517 = vunpack.c.l.b16 %v312
    %v1518 = vunpack.c.h.b16 %v312
    %v1519 = vunpack.c.l.b16 %v313
    %v1520 = vunpack.c.h.b16 %v313
    %v1521 = vunpack.c.l.b16 %v314
    %v1522 = vunpack.c.h.b16 %v314
    %v1523 = vunpack.c.l.b16 %v315
    %v1524 = vunpack.c.h.b16 %v315
    %v1525 = vunpack.c.l.b16 %v316
    %v1526 = vunpack.c.h.b16 %v316
    %v1527 = vunpack.c.l.b16 %v317
    %v1528 = vunpack.c.h.b16 %v317
    %v1529 = vunpack.c.l.b16 %v318
    %v1530 = vunpack.c.h.b16 %v318
    %v1531 = vunpack.c.l.b16 %v319
    %v1532 = vunpack.c.h.b16 %v319
    %v1533 = vunpack.c.l.b16 %v320
    %v1534 = vunpack.c.h.b16 %v320
    %v1535 = vunpack.c.l.b16 %v321
    %v1536 = vunpack.c.h.b16 %v321
    %v1537 = vunpack.c.l.b16 %v322
    %v1538 = vunpack.c.h.b16 %v322
    %v1539 = vunpack.c.l.b16 %v323
    %v1540 = vunpack.c.h.b16 %v323
    %v1541 = vunpack.c.l.b16 %v324
    %v1542 = vunpack.c.h.b16 %v324
    %v1543 = vunpack.c.l.b16 %v325
    %v1544 = vunpack.c.h.b16 %v325
    %v1545 = vunpack.c.l.b16 %v326
    %v1546 = vunpack.c.h.b16 %v326
    %v1547 = vunpack.c.l.b16 %v327
    %v1548 = vunpack.c.h.b16 %v327
    %v1549 = vunpack.c.l.b16 %v328
    %v1550 = vunpack.c.h.b16 %v328
    %v1551 = vunpack.c.l.b16 %v329
    %v1552 = vunpack.c.h.b16 %v329
    %v1553 = vunpack.c.l.b16 %v330
    %v1554 = vunpack.c.h.b16 %v330
    %v1555 = vunpack.c.l.b16 %v331
    %v1556 = vunpack.c.h.b16 %v331
    %v1557 = vunpack.c.l.b16 %v332
    %v1558 = vunpack.c.h.b16 %v332
    %v1559 = vunpack.c.l.b16 %v333
    %v1560 = vunpack.c.h.b16 %v333
    %v1561 = vunpack.c.l.b16 %v334
    %v1562 = vunpack.c.h.b16 %v334
    %v1563 = vunpack.c.l.b16 %v335
    %v1564 = vunpack.c.h.b16 %v335
    %v1565 = vunpack.c.l.b16 %v336
    %v1566 = vunpack.c.h.b16 %v336
    %v1567 = vunpack.c.l.b16 %v337
    %v1568 = vunpack.c.h.b16 %v337
    %v1569 = vunpack.c.l.b16 %v338
    %v1570 = vunpack.c.h.b16 %v338
    %v1571 = vunpack.c.l.b16 %v339
    %v1572 = vunpack.c.h.b16 %v339
    %v1573 = vunpack.c.l.b16 %v340
    %v1574 = vunpack.c.h.b16 %v340
    %v1575 = vunpack.c.l.b16 %v341
    %v1576 = vunpack.c.h.b16 %v341
    %v1577 = vunpack.c.l.b16 %v342
    %v1578 = vunpack.c.h.b16 %v342
    %v1579 = vunpack.c.l.b16 %v343
    %v1580 = vunpack.c.h.b16 %v343
    %v1581 = vunpack.c.l.b16 %v344
    %v1582 = vunpack.c.h.b16 %v344
    %v1583 = vunpack.c.l.b16 %v345
    %v1584 = vunpack.c.h.b16 %v345
    %v1585 = vunpack.c.l.b16 %v346
    %v1586 = vunpack.c.h.b16 %v346
    %v1587 = vunpack.c.l.b16 %v347
    %v1588 = vunpack.c.h.b16 %v347
    %v1589 = vunpack.c.l.b16 %v348
    %v1590 = vunpack.c.h.b16 %v348
    %v1591 = vunpack.c.l.b16 %v349
    %v1592 = vunpack.c.h.b16 %v349
    %v1593 = vunpack.c.l.b16 %v350
    %v1594 = vunpack.c.h.b16 %v350
    %v1595 = vunpack.c.l.b16 %v351
    %v1596 = vunpack.c.h.b16 %v351
    %v1597 = vunpack.c.l.b16 %v352
    %v1598 = vunpack.c.h.b16 %v352
    %v1599 = vunpack.c.l.b16 %v353
    %v1600 = vunpack.c.h.b16 %v353
    %v1601 = vunpack.c.l.b16 %v354
    %v1602 = vunpack.c.h.b16 %v354
    %v1603 = vunpack.c.l.b16 %v355
    %v1604 = vunpack.c.h.b16 %v355
    %v1605 = vunpack.c.l.b16 %v356
    %v1606 = vunpack.c.h.b16 %v356
    %v1607 = vunpack.c.l.b16 %v357
    %v1608 = vunpack.c.h.b16 %v357
    %v1609 = vunpack.c.l.b16 %v358
    %v1610 = vunpack.c.h.b16 %v358
    %v1611 = vunpack.c.l.b16 %v359
    %v1612 = vunpack.c.h.b16 %v359
    %v1613 = vunpack.c.l.b16 %v360
    %v1614 = vunpack.c.h.b16 %v360
    %v1615 = vunpack.c.l.b16 %v361
    %v1616 = vunpack.c.h.b16 %v361
    %v1617 = vunpack.c.l.b16 %v362
    %v1618 = vunpack.c.h.b16 %v362
    %v1619 = vunpack.c.l.b16 %v363
    %v1620 = vunpack.c.h.b16 %v363
    %v1621 = vunpack.c.l.b16 %v364
    %v1622 = vunpack.c.h.b16 %v364
    %v1623 = vunpack.c.l.b16 %v365
    %v1624 = vunpack.c.h.b16 %v365
    %v1625 = vunpack.c.l.b16 %v366
    %v1626 = vunpack.c.h.b16 %v366
    %v1627 = vunpack.c.l.b16 %v367
    %v1628 = vunpack.c.h.b16 %v367
    %v1629 = vunpack.c.l.b16 %v368
    %v1630 = vunpack.c.h.b16 %v368
    %v1631 = vunpack.c.l.b16 %v369
    %v1632 = vunpack.c.h.b16 %v369
    %v1633 = vunpack.c.l.b16 %v370
    %v1634 = vunpack.c.h.b16 %v370
    %v1635 = vunpack.c.l.b16 %v371
    %v1636 = vunpack.c.h.b16 %v371
    %v1637 = vunpack.c.l.b16 %v372
    %v1638 = vunpack.c.h.b16 %v372
    %v1639 = vunpack.c.l.b16 %v373
    %v1640 = vunpack.c.h.b16 %v373
    %v1641 = vunpack.c.l.b16 %v374
    %v1642 = vunpack.c.h.b16 %v374
    %v1643 = vunpack.c.l.b16 %v375
    %v1644 = vunpack.c.h.b16 %v375
    %v1645 = vunpack.c.l.b16 %v376
    %v1646 = vunpack.c.h.b16 %v376
    %v1647 = vunpack.c.l.b16 %v377
    %v1648 = vunpack.c.h.b16 %v377
    %v1649 = vunpack.c.l.b16 %v378
    %v1650 = vunpack.c.h.b16 %v378
    %v1651 = vunpack.c.l.b16 %v379
    %v1652 = vunpack.c.h.b16 %v379
    %v1653 = vunpack.c.l.b16 %v380
    %v1654 = vunpack.c.h.b16 %v380
    %v1655 = vunpack.c.l.b16 %v381
    %v1656 = vunpack.c.h.b16 %v381
    %v1657 = vunpack.c.l.b16 %v382
    %v1658 = vunpack.c.h.b16 %v382
    %v1659 = vunpack.c.l.b16 %v383
    %v1660 = vunpack.c.h.b16 %v383
    %v1661 = vunpack.c.l.b16 %v384
    %v1662 = vunpack.c.h.b16 %v384
    %v1663 = vunpack.c.l.b16 %v385
    %v1664 = vunpack.c.h.b16 %v385
    %v1665 = vunpack.c.l.b16 %v386
    %v1666 = vunpack.c.h.b16 %v386
    %v1667 = vunpack.c.l.b16 %v387
    %v1668 = vunpack.c.h.b16 %v387
    %v1669 = vunpack.c.l.b16 %v388
    %v1670 = vunpack.c.h.b16 %v388
    %v1671 = vunpack.c.l.b16 %v389
    %v1672 = vunpack.c.h.b16 %v389
    %v1673 = vunpack.c.l.b16 %v390
    %v1674 = vunpack.c.h.b16 %v390
    %v1675 = vunpack.c.l.b16 %v391
    %v1676 = vunpack.c.h.b16 %v391
    %v1677 = vunpack.c.l.b16 %v392
    %v1678 = vunpack.c.h.b16 %v392
    %v1679 = vunpack.c.l.b16 %v393
    %v1680 = vunpack.c.h.b16 %v393
    %v1681 = vunpack.c.l.b16 %v394
    %v1682 = vunpack.c.h.b16 %v394
    %v1683 = vunpack.c.l.b16 %v395
    %v1684 = vunpack.c.h.b16 %v395
    %v1685 = vunpack.c.l.b16 %v396
    %v1686 = vunpack.c.h.b16 %v396
    %v1687 = vunpack.c.l.b16 %v397
    %v1688 = vunpack.c.h.b16 %v397
    %v1689 = vunpack.c.l.b16 %v398
    %v1690 = vunpack.c.h.b16 %v398
    %v1691 = vunpack.c.l.b16 %v399
    %v1692 = vunpack.c.h.b16 %v399
    %v1693 = vunpack.c.l.b16 %v400
    %v1694 = vunpack.c.h.b16 %v400
    %v1695 = vunpack.c.l.b16 %v401
    %v1696 = vunpack.c.h.b16 %v401
    %v1697 = vunpack.c.l.b16 %v402
    %v1698 = vunpack.c.h.b16 %v402
    %v1699 = vunpack.c.l.b16 %v403
    %v1700 = vunpack.c.h.b16 %v403
    %v1701 = vunpack.c.l.b16 %v404
    %v1702 = vunpack.c.h.b16 %v404
    %v1703 = vunpack.c.l.b16 %v405
    %v1704 = vunpack.c.h.b16 %v405
    %v1705 = vunpack.c.l.b16 %v406
    %v1706 = vunpack.c.h.b16 %v406
    %v1707 = vunpack.c.l.b16 %v407
    %v1708 = vunpack.c.h.b16 %v407
    %v1709 = vunpack.c.l.b16 %v408
    %v1710 = vunpack.c.h.b16 %v408
    %v1711 = vunpack.c.l.b16 %v409
    %v1712 = vunpack.c.h.b16 %v409
    %v1713 = vunpack.c.l.b16 %v410
    %v1714 = vunpack.c.h.b16 %v410
    %v1715 = vunpack.c.l.b16 %v411
    %v1716 = vunpack.c.h.b16 %v411
    %v1717 = vunpack.c.l.b16 %v412
    %v1718 = vunpack.c.h.b16 %v412
    %v1719 = vunpack.c.l.b16 %v413
    %v1720 = vunpack.c.h.b16 %v413
    %v1721 = vunpack.c.l.b16 %v414
    %v1722 = vunpack.c.h.b16 %v414
    %v1723 = vunpack.c.l.b16 %v415
    %v1724 = vunpack.c.h.b16 %v415
    %v1725 = vunpack.c.l.b16 %v416
    %v1726 = vunpack.c.h.b16 %v416
    %v1727 = vunpack.c.l.b16 %v417
    %v1728 = vunpack.c.h.b16 %v417
    %v1729 = vunpack.c.l.b16 %v418
    %v1730 = vunpack.c.h.b16 %v418
    %v1731 = vunpack.c.l.b16 %v419
    %v1732 = vunpack.c.h.b16 %v419
    %v1733 = vunpack.c.l.b16 %v420
    %v1734 = vunpack.c.h.b16 %v420
    %v1735 = vunpack.c.l.b16 %v421
    %v1736 = vunpack.c.h.b16 %v421
    %v1737 = vunpack.c.l.b16 %v422
    %v1738 = vunpack.c.h.b16 %v422
    %v1739 = vunpack.c.l.b16 %v423
    %v1740 = vunpack.c.h.b16 %v423
    %v1741 = vunpack.c.l.b16 %v424
    %v1742 = vunpack.c.h.b16 %v424
    %v1743 = vunpack.c.l.b16 %v425
    %v1744 = vunpack.c.h.b16 %v425
    %v1745 = vunpack.c.l.b16 %v426
    %v1746 = vunpack.c.h.b16 %v426
    %v1747 = vunpack.c.l.b16 %v427
    %v1748 = vunpack.c.h.b16 %v427
    %v1749 = vunpack.c.l.b16 %v428
    %v1750 = vunpack.c.h.b16 %v428
    %v1751 = vunpack.c.l.b16 %v429
    %v1752 = vunpack.c.h.b16 %v429
    %v1753 = vunpack.c.l.b16 %v430
    %v1754 = vunpack.c.h.b16 %v430
    %v1755 = vunpack.c.l.b16 %v431
    %v1756 = vunpack.c.h.b16 %v431
    %v1757 = vunpack.c.l.b16 %v432
    %v1758 = vunpack.c.h.b16 %v432
    %v1759 = vunpack.c.l.b16 %v433
    %v1760 = vunpack.c.h.b16 %v433
    %v1761 = vunpack.c.l.b16 %v434
    %v1762 = vunpack.c.h.b16 %v434
    %v1763 = vunpack.c.l.b16 %v435
    %v1764 = vunpack.c.h.b16 %v435
    %v1765 = vunpack.c.l.b16 %v436
    %v1766 = vunpack.c.h.b16 %v436
    %v1767 = vunpack.c.l.b16 %v437
    %v1768 = vunpack.c.h.b16 %v437
    %v1769 = vunpack.c.l.b16 %v438
    %v1770 = vunpack.c.h.b16 %v438
    %v1771 = vunpack.c.l.b16 %v439
    %v1772 = vunpack.c.h.b16 %v439
    %v1773 = vunpack.c.l.b16 %v440
    %v1774 = vunpack.c.h.b16 %v440
    %v1775 = vunpack.c.l.b16 %v441
    %v1776 = vunpack.c.h.b16 %v441
    %v1777 = vunpack.c.l.b16 %v442
    %v1778 = vunpack.c.h.b16 %v442
    %v1779 = vunpack.c.l.b16 %v443
    %v1780 = vunpack.c.h.b16 %v443
    %v1781 = vunpack.c.l.b16 %v444
    %v1782 = vunpack.c.h.b16 %v444
    %v1783 = vunpack.c.l.b16 %v445
    %v1784 = vunpack.c.h.b16 %v445
    %v1785 = vunpack.c.l.b16 %v446
    %v1786 = vunpack.c.h.b16 %v446
    %v1787 = vunpack.c.l.b16 %v447
    %v1788 = vunpack.c.h.b16 %v447
    %v1789 = vunpack.c.l.b16 %v448
    %v1790 = vunpack.c.h.b16 %v448
    %v1791 = vunpack.c.l.b16 %v449
    %v1792 = vunpack.c.h.b16 %v449
    %v1793 = vunpack.c.l.b16 %v450
    %v1794 = vunpack.c.h.b16 %v450
    %v1795 = vunpack.c.l.b16 %v451
    %v1796 = vunpack.c.h.b16 %v451
    %v1797 = vunpack.c.l.b16 %v452
    %v1798 = vunpack.c.h.b16 %v452
    %v1799 = vunpack.c.l.b16 %v453
    %v1800 = vunpack.c.h.b16 %v453
    %v1801 = vunpack.c.l.b16 %v454
    %v1802 = vunpack.c.h.b16 %v454
    %v1803 = vunpack.c.l.b16 %v455
    %v1804 = vunpack.c.h.b16 %v455
    %v1805 = vunpack.c.l.b16 %v456
    %v1806 = vunpack.c.h.b16 %v456
    %v1807 = vunpack.c.l.b16 %v457
    %v1808 = vunpack.c.h.b16 %v457
    %v1809 = vunpack.c.l.b16 %v458
    %v1810 = vunpack.c.h.b16 %v458
    %v1811 = vunpack.c.l.b16 %v459
    %v1812 = vunpack.c.h.b16 %v459
    %v1813 = vunpack.c.l.b16 %v460
    %v1814 = vunpack.c.h.b16 %v460
    %v1815 = vunpack.c.l.b16 %v461
    %v1816 = vunpack.c.h.b16 %v461
    %v1817 = vunpack.c.l.b16 %v462
    %v1818 = vunpack.c.h.b16 %v462
    %v1819 = vunpack.c.l.b16 %v463
    %v1820 = vunpack.c.h.b16 %v463
    %v1821 = vunpack.c.l.b16 %v464
    %v1822 = vunpack.c.h.b16 %v464
    %v1823 = vunpack.c.l.b16 %v465
    %v1824 = vunpack.c.h.b16 %v465
    %v1825 = vunpack.c.l.b16 %v466
    %v1826 = vunpack.c.h.b16 %v466
    %v1827 = vunpack.c.l.b16 %v467
    %v1828 = vunpack.c.h.b16 %v467
    %v1829 = vunpack.c.l.b16 %v468
    %v1830 = vunpack.c.h.b16 %v468
    %v1831 = vunpack.c.l.b16 %v469
    %v1832 = vunpack.c.h.b16 %v469
    %v1833 = vunpack.c.l.b16 %v470
    %v1834 = vunpack.c.h.b16 %v470
    %v1835 = vunpack.c.l.b16 %v471
    %v1836 = vunpack.c.h.b16 %v471
    %v1837 = vunpack.c.l.b16 %v472
    %v1838 = vunpack.c.h.b16 %v472
    %v1839 = vunpack.c.l.b16 %v473
    %v1840 = vunpack.c.h.b16 %v473
    %v1841 = vunpack.c.l.b16 %v474
    %v1842 = vunpack.c.h.b16 %v474
    %v1843 = vunpack.c.l.b16 %v475
    %v1844 = vunpack.c.h.b16 %v475
    %v1845 = vunpack.c.l.b16 %v476
    %v1846 = vunpack.c.h.b16 %v476
    %v1847 = vunpack.c.l.b16 %v477
    %v1848 = vunpack.c.h.b16 %v477
    %v1849 = vunpack.c.l.b16 %v478
    %v1850 = vunpack.c.h.b16 %v478
    %v1851 = vunpack.c.l.b16 %v479
    %v1852 = vunpack.c.h.b16 %v479
    %v1853 = vunpack.c.l.b16 %v480
    %v1854 = vunpack.c.h.b16 %v480
    %v1855 = vunpack.c.l.b16 %v481
    %v1856 = vunpack.c.h.b16 %v481
    %v1857 = vunpack.c.l.b16 %v482
    %v1858 = vunpack.c.h.b16 %v482
    %v1859 = vunpack.c.l.b16 %v483
    %v1860 = vunpack.c.h.b16 %v483
    %v1861 = vunpack.c.l.b16 %v484
    %v1862 = vunpack.c.h.b16 %v484
    %v1863 = vunpack.c.l.b16 %v485
    %v1864 = vunpack.c.h.b16 %v485
    %v1865 = vunpack.c.l.b16 %v486
    %v1866 = vunpack.c.h.b16 %v486
    %v1867 = vunpack.c.l.b16 %v487
    %v1868 = vunpack.c.h.b16 %v487
    %v1869 = vunpack.c.l.b16 %v488
    %v1870 = vunpack.c.h.b16 %v488
    %v1871 = vunpack.c.l.b16 %v489
    %v1872 = vunpack.c.h.b16 %v489
    %v1873 = vunpack.c.l.b16 %v490
    %v1874 = vunpack.c.h.b16 %v490
    %v1875 = vunpack.c.l.b16 %v491
    %v1876 = vunpack.c.h.b16 %v491
    %v1877 = vunpack.c.l.b16 %v492
    %v1878 = vunpack.c.h.b16 %v492
    %v1879 = vunpack.c.l.b16 %v493
    %v1880 = vunpack.c.h.b16 %v493
    %v1881 = vunpack.c.l.b16 %v494
    %v1882 = vunpack.c.h.b16 %v494
    %v1883 = vunpack.c.l.b16 %v495
    %v1884 = vunpack.c.h.b16 %v495
    %v1885 = vunpack.c.l.b16 %v496
    %v1886 = vunpack.c.h.b16 %v496
    %v1887 = vunpack.c.l.b16 %v497
    %v1888 = vunpack.c.h.b16 %v497
    %v1889 = vunpack.c.l.b16 %v498
    %v1890 = vunpack.c.h.b16 %v498
    %v1891 = vunpack.c.l.b16 %v499
    %v1892 = vunpack.c.h.b16 %v499
    %v1893 = vunpack.c.l.b16 %v500
    %v1894 = vunpack.c.h.b16 %v500
    %v1895 = vunpack.c.l.b16 %v501
    %v1896 = vunpack.c.h.b16 %v501
    %v1897 = vunpack.c.l.b16 %v502
    %v1898 = vunpack.c.h.b16 %v502
    %v1899 = vunpack.c.l.b16 %v503
    %v1900 = vunpack.c.h.b16 %v503
    %v1901 = vunpack.c.l.b16 %v504
    %v1902 = vunpack.c.h.b16 %v504
    %v1903 = vunpack.c.l.b16 %v505
    %v1904 = vunpack.c.h.b16 %v505
    %v1905 = vunpack.c.l.b16 %v506
    %v1906 = vunpack.c.h.b16 %v506
    %v1907 = vunpack.c.l.b16 %v507
    %v1908 = vunpack.c.h.b16 %v507
    %v1909 = vunpack.c.l.b16 %v508
    %v1910 = vunpack.c.h.b16 %v508
    %v1911 = vunpack.c.l.b16 %v509
    %v1912 = vunpack.c.h.b16 %v509
    %v1913 = vunpack.c.l.b16 %v510
    %v1914 = vunpack.c.h.b16 %v510
    %v1915 = vunpack.c.l.b16 %v511
    %v1916 = vunpack.c.h.b16 %v511
    %v1917 = vunpack.c.l.b16 %v512
    %v1918 = vunpack.c.h.b16 %v512
    %v1919 = vunpack.c.l.b16 %v513
    %v1920 = vunpack.c.h.b16 %v513
    %v1921 = vunpack.c.l.b16 %v514
    %v1922 = vunpack.c.h.b16 %v514
    %v1923 = vunpack.c.l.b16 %v515
    %v1924 = vunpack.c.h.b16 %v515
    %v1925 = vunpack.c.l.b16 %v516
    %v1926 = vunpack.c.h.b16 %v516
    %v1927 = vunpack.c.l.b16 %v517
    %v1928 = vunpack.c.h.b16 %v517
    %v1929 = vunpack.c.l.b16 %v518
    %v1930 = vunpack.c.h.b16 %v518
    %v1931 = vunpack.c.l.b16 %v519
    %v1932 = vunpack.c.h.b16 %v519
    %v1933 = vunpack.c.l.b16 %v520
    %v1934 = vunpack.c.h.b16 %v520
    %v1935 = vunpack.c.l.b16 %v521
    %v1936 = vunpack.c.h.b16 %v521
    %v1937 = vunpack.c.l.b16 %v522
    %v1938 = vunpack.c.h.b16 %v522
    %v1939 = vunpack.c.l.b16 %v523
    %v1940 = vunpack.c.h.b16 %v523
    %v1941 = vunpack.c.l.b16 %v524
    %v1942 = vunpack.c.h.b16 %v524
    %v1943 = vunpack.c.l.b16 %v525
    %v1944 = vunpack.c.h.b16 %v525
    %v1945 = vunpack.c.l.b16 %v526
    %v1946 = vunpack.c.h.b16 %v526
    %v1947 = vunpack.c.l.b16 %v527
    %v1948 = vunpack.c.h.b16 %v527
    %v1949 = vunpack.c.l.b16 %v528
    %v1950 = vunpack.c.h.b16 %v528
    %v1951 = vunpack.c.l.b16 %v529
    %v1952 = vunpack.c.h.b16 %v529
    %v1953 = vunpack.c.l.b16 %v530
    %v1954 = vunpack.c.h.b16 %v530
    %v1955 = vunpack.c.l.b16 %v531
    %v1956 = vunpack.c.h.b16 %v531
    %v1957 = vunpack.c.l.b16 %v532
    %v1958 = vunpack.c.h.b16 %v532
    %v1959 = vunpack.c.l.b16 %v533
    %v1960 = vunpack.c.h.b16 %v533
    %v1961 = vunpack.c.l.b16 %v534
    %v1962 = vunpack.c.h.b16 %v534
    %v1963 = vunpack.c.l.b16 %v535
    %v1964 = vunpack.c.h.b16 %v535
    %v1965 = vunpack.c.l.b16 %v536
    %v1966 = vunpack.c.h.b16 %v536
    %v1967 = vunpack.c.l.b16 %v537
    %v1968 = vunpack.c.h.b16 %v537
    %v1969 = vunpack.c.l.b16 %v538
    %v1970 = vunpack.c.h.b16 %v538
    %v1971 = vunpack.c.l.b16 %v539
    %v1972 = vunpack.c.h.b16 %v539
    %v1973 = vunpack.c.l.b16 %v540
    %v1974 = vunpack.c.h.b16 %v540
    %v1975 = vunpack.c.l.b16 %v541
    %v1976 = vunpack.c.h.b16 %v541
    %v1977 = vunpack.c.l.b16 %v542
    %v1978 = vunpack.c.h.b16 %v542
    %v1979 = vunpack.c.l.b16 %v543
    %v1980 = vunpack.c.h.b16 %v543
    %v1981 = vunpack.c.l.b16 %v544
    %v1982 = vunpack.c.h.b16 %v544
    %v1983 = vunpack.c.l.b16 %v545
    %v1984 = vunpack.c.h.b16 %v545
    %v1985 = vunpack.c.l.b16 %v546
    %v1986 = vunpack.c.h.b16 %v546
    %v1987 = vunpack.c.l.b16 %v547
    %v1988 = vunpack.c.h.b16 %v547
    %v1989 = vunpack.c.l.b16 %v548
    %v1990 = vunpack.c.h.b16 %v548
    %v1991 = vunpack.c.l.b16 %v549
    %v1992 = vunpack.c.h.b16 %v549
    %v1993 = vunpack.c.l.b16 %v550
    %v1994 = vunpack.c.h.b16 %v550
    %v1995 = vunpack.c.l.b16 %v551
    %v1996 = vunpack.c.h.b16 %v551
    %v1997 = vunpack.c.l.b16 %v552
    %v1998 = vunpack.c.h.b16 %v552
    %v1999 = vunpack.c.l.b16 %v553
    %v2000 = vunpack.c.h.b16 %v553
    %v2001 = vunpack.c.l.b16 %v554
    %v2002 = vunpack.c.h.b16 %v554
    %v2003 = vunpack.c.l.b16 %v555
    %v2004 = vunpack.c.h.b16 %v555
    %v2005 = vunpack.c.l.b16 %v556
    %v2006 = vunpack.c.h.b16 %v556
    %v2007 = vunpack.c.l.b16 %v557
    %v2008 = vunpack.c.h.b16 %v557
    %v2009 = vunpack.c.l.b16 %v558
    %v2010 = vunpack.c.h.b16 %v558
    %v2011 = vunpack.c.l.b16 %v559
    %v2012 = vunpack.c.h.b16 %v559
    %v2013 = vunpack.c.l.b16 %v560
    %v2014 = vunpack.c.h.b16 %v560
    %v2015 = vunpack.c.l.b16 %v561
    %v2016 = vunpack.c.h.b16 %v561
    %v2017 = vunpack.c.l.b16 %v562
    %v2018 = vunpack.c.h.b16 %v562
    %v2019 = vunpack.c.l.b16 %v563
    %v2020 = vunpack.c.h.b16 %v563
    %v2021 = vunpack.c.l.b16 %v564
    %v2022 = vunpack.c.h.b16 %v564
    %v2023 = vunpack.c.l.b16 %v565
    %v2024 = vunpack.c.h.b16 %v565
    %v2025 = vunpack.c.l.b16 %v566
    %v2026 = vunpack.c.h.b16 %v566
    %v2027 = vunpack.c.l.b16 %v567
    %v2028 = vunpack.c.h.b16 %v567
    %v2029 = vunpack.c.l.b16 %v568
    %v2030 = vunpack.c.h.b16 %v568
    %v2031 = vunpack.c.l.b16 %v569
    %v2032 = vunpack.c.h.b16 %v569
    %v2033 = vunpack.c.l.b16 %v570
    %v2034 = vunpack.c.h.b16 %v570
    %v2035 = vunpack.c.l.b16 %v571
    %v2036 = vunpack.c.h.b16 %v571
    %v2037 = vunpack.c.l.b16 %v572
    %v2038 = vunpack.c.h.b16 %v572
    %v2039 = vunpack.c.l.b16 %v573
    %v2040 = vunpack.c.h.b16 %v573
    %v2041 = vunpack.c.l.b16 %v574
    %v2042 = vunpack.c.h.b16 %v574
    %v2043 = vunpack.c.l.b16 %v575
    %v2044 = vunpack.c.h.b16 %v575
    %v2045 = vunpack.c.l.b16 %v576
    %v2046 = vunpack.c.h.b16 %v576
    %v2047 = vunpack.c.l.b16 %v577
    %v2048 = vunpack.c.h.b16 %v577
    %v2049 = vunpack.c.l.b16 %v578
    %v2050 = vunpack.c.h.b16 %v578
    %v2051 = vunpack.c.l.b16 %v579
    %v2052 = vunpack.c.h.b16 %v579
    %v2053 = vunpack.c.l.b16 %v580
    %v2054 = vunpack.c.h.b16 %v580
    %v2055 = vunpack.c.l.b16 %v581
    %v2056 = vunpack.c.h.b16 %v581
    %v2057 = vunpack.c.l.b16 %v582
    %v2058 = vunpack.c.h.b16 %v582
    %v2059 = vunpack.c.l.b16 %v583
    %v2060 = vunpack.c.h.b16 %v583
    %v2061 = vunpack.c.l.b16 %v584
    %v2062 = vunpack.c.h.b16 %v584
    %v2063 = vunpack.c.l.b16 %v585
    %v2064 = vunpack.c.h.b16 %v585
    %v2065 = vunpack.c.l.b16 %v586
    %v2066 = vunpack.c.h.b16 %v586
    %v2067 = vunpack.c.l.b16 %v587
    %v2068 = vunpack.c.h.b16 %v587
    %v2069 = vunpack.c.l.b16 %v588
    %v2070 = vunpack.c.h.b16 %v588
    %v2071 = vunpack.c.l.b16 %v589
    %v2072 = vunpack.c.h.b16 %v589
    %v2073 = vunpack.c.l.b16 %v590
    %v2074 = vunpack.c.h.b16 %v590
    %v2075 = vunpack.c.l.b16 %v591
    %v2076 = vunpack.c.h.b16 %v591
    %v2077 = vunpack.c.l.b16 %v592
    %v2078 = vunpack.c.h.b16 %v592
    %v2079 = vunpack.c.l.b16 %v593
    %v2080 = vunpack.c.h.b16 %v593
    %v2081 = vunpack.c.l.b16 %v594
    %v2082 = vunpack.c.h.b16 %v594
    %v2083 = vunpack.c.l.b16 %v595
    %v2084 = vunpack.c.h.b16 %v595
    %v2085 = vunpack.c.l.b16 %v596
    %v2086 = vunpack.c.h.b16 %v596
    %v2087 = vunpack.c.l.b16 %v597
    %v2088 = vunpack.c.h.b16 %v597
    %v2089 = vunpack.c.l.b16 %v598
    %v2090 = vunpack.c.h.b16 %v598
    %v2091 = vunpack.c.l.b16 %v599
    %v2092 = vunpack.c.h.b16 %v599
    %v2093 = vunpack.c.l.b16 %v600
    %v2094 = vunpack.c.h.b16 %v600
    %v2095 = vunpack.c.l.b16 %v601
    %v2096 = vunpack.c.h.b16 %v601
    %v2097 = vunpack.c.l.b16 %v602
    %v2098 = vunpack.c.h.b16 %v602
    %v2099 = vunpack.c.l.b16 %v603
    %v2100 = vunpack.c.h.b16 %v603
    %v2101 = vunpack.c.l.b16 %v604
    %v2102 = vunpack.c.h.b16 %v604
    %v2103 = vunpack.c.l.b16 %v605
    %v2104 = vunpack.c.h.b16 %v605
    %v2105 = vunpack.c.l.b16 %v606
    %v2106 = vunpack.c.h.b16 %v606
    %v2107 = vpack.c.b16 %v1181, %v1179
    %v2108 = vpack.c.b16 %v1182, %v1180
    %v2109 = vpack.c.b16 %v1185, %v1183
    %v2110 = vpack.c.b16 %v1186, %v1184
    %v2111 = vpack.c.b16 %v1189, %v1187
    %v2112 = vpack.c.b16 %v1190, %v1188
    %v2113 = vpack.c.b16 %v1193, %v1191
    %v2114 = vpack.c.b16 %v1194, %v1192
    %v2115 = vpack.c.b16 %v1197, %v1195
    %v2116 = vpack.c.b16 %v1198, %v1196
    %v2117 = vpack.c.b16 %v1201, %v1199
    %v2118 = vpack.c.b16 %v1202, %v1200
    %v2119 = vpack.c.b16 %v1205, %v1203
    %v2120 = vpack.c.b16 %v1206, %v1204
    %v2121 = vpack.c.b16 %v1209, %v1207
    %v2122 = vpack.c.b16 %v1210, %v1208
    %v2123 = vpack.c.b16 %v1213, %v1211
    %v2124 = vpack.c.b16 %v1214, %v1212
    %v2125 = vpack.c.b16 %v1217, %v1215
    %v2126 = vpack.c.b16 %v1218, %v1216
    %v2127 = vpack.c.b16 %v1221, %v1219
    %v2128 = vpack.c.b16 %v1222, %v1220
    %v2129 = vpack.c.b16 %v1225, %v1223
    %v2130 = vpack.c.b16 %v1226, %v1224
    %v2131 = vpack.c.b16 %v1229, %v1227
    %v2132 = vpack.c.b16 %v1230, %v1228
    %v2133 = vpack.c.b16 %v1233, %v1231
    %v2134 = vpack.c.b16 %v1234, %v1232
    %v2135 = vpack.c.b16 %v1237, %v1235
    %v2136 = vpack.c.b16 %v1238, %v1236
    %v2137 = vpack.c.b16 %v1241, %v1239
    %v2138 = vpack.c.b16 %v1242, %v1240
    %v2139 = vpack.c.b16 %v1245, %v1243
    %v2140 = vpack.c.b16 %v1246, %v1244
    %v2141 = vpack.c.b16 %v1249, %v1247
    %v2142 = vpack.c.b16 %v1250, %v1248
    %v2143 = vpack.c.b16 %v1253, %v1251
    %v2144 = vpack.c.b16 %v1254, %v1252
    %v2145 = vpack.c.b16 %v1257, %v1255
    %v2146 = vpack.c.b16 %v1258, %v1256
    %v2147 = vpack.c.b16 %v1261, %v1259
    %v2148 = vpack.c.b16 %v1262, %v1260
    %v2149 = vpack.c.b16 %v1265, %v1263
    %v2150 = vpack.c.b16 %v1266, %v1264
    %v2151 = vpack.c.b16 %v1269, %v1267
    %v2152 = vpack.c.b16 %v1270, %v1268
    %v2153 = vpack.c.b16 %v1273, %v1271
    %v2154 = vpack.c.b16 %v1274, %v1272
    %v2155 = vpack.c.b16 %v1277, %v1275
    %v2156 = vpack.c.b16 %v1278, %v1276
    %v2157 = vpack.c.b16 %v1281, %v1279
    %v2158 = vpack.c.b16 %v1282, %v1280
    %v2159 = vpack.c.b16 %v1285, %v1283
    %v2160 = vpack.c.b16 %v1286, %v1284
    %v2161 = vpack.c.b16 %v1289, %v1287
    %v2162 = vpack.c.b16 %v1290, %v1288
    %v2163 = vpack.c.b16 %v1293, %v1291
    %v2164 = vpack.c.b16 %v1294, %v1292
    %v2165 = vpack.c.b16 %v1297, %v1295
    %v2166 = vpack.c.b16 %v1298, %v1296
    %v2167 = vpack.c.b16 %v1301, %v1299
    %v2168 = vpack.c.b16 %v1302, %v1300
    %v2169 = vpack.c.b16 %v1305, %v1303
    %v2170 = vpack.c.b16 %v1306, %v1304
    %v2171 = vpack.c.b16 %v1309, %v1307
    %v2172 = vpack.c.b16 %v1310, %v1308
    %v2173 = vpack.c.b16 %v1313, %v1311
    %v2174 = vpack.c.b16 %v1314, %v1312
    %v2175 = vpack.c.b16 %v1317, %v1315
    %v2176 = vpack.c.b16 %v1318, %v1316
    %v2177 = vpack.c.b16 %v1321, %v1319
    %v2178 = vpack.c.b16 %v1322, %v1320
    %v2179 = vpack.c.b16 %v1325, %v1323
    %v2180 = vpack.c.b16 %v1326, %v1324
    %v2181 = vpack.c.b16 %v1329, %v1327
    %v2182 = vpack.c.b16 %v1330, %v1328
    %v2183 = vpack.c.b16 %v1333, %v1331
    %v2184 = vpack.c.b16 %v1334, %v1332
    %v2185 = vpack.c.b16 %v1337, %v1335
    %v2186 = vpack.c.b16 %v1338, %v1336
    %v2187 = vpack.c.b16 %v1341, %v1339
    %v2188 = vpack.c.b16 %v1342, %v1340
    %v2189 = vpack.c.b16 %v1345, %v1343
    %v2190 = vpack.c.b16 %v1346, %v1344
    %v2191 = vpack.c.b16 %v1349, %v1347
    %v2192 = vpack.c.b16 %v1350, %v1348
    %v2193 = vpack.c.b16 %v1353, %v1351
    %v2194 = vpack.c.b16 %v1354, %v1352
    %v2195 = vpack.c.b16 %v1357, %v1355
    %v2196 = vpack.c.b16 %v1358, %v1356
    %v2197 = vpack.c.b16 %v1361, %v1359
    %v2198 = vpack.c.b16 %v1362, %v1360
    %v2199 = vpack.c.b16 %v1365, %v1363
    %v2200 = vpack.c.b16 %v1366, %v1364
    %v2201 = vpack.c.b16 %v1369, %v1367
    %v2202 = vpack.c.b16 %v1370, %v1368
    %v2203 = vpack.c.b16 %v1373, %v1371
    %v2204 = vpack.c.b16 %v1374, %v1372
    %v2205 = vpack.c.b16 %v1377, %v1375
    %v2206 = vpack.c.b16 %v1378, %v1376
    %v2207 = vpack.c.b16 %v1381, %v1379
    %v2208 = vpack.c.b16 %v1382, %v1380
    %v2209 = vpack.c.b16 %v1385, %v1383
    %v2210 = vpack.c.b16 %v1386, %v1384
    %v2211 = vpack.c.b16 %v1389, %v1387
    %v2212 = vpack.c.b16 %v1390, %v1388
    %v2213 = vpack.c.b16 %v1393, %v1391
    %v2214 = vpack.c.b16 %v1394, %v1392
    %v2215 = vpack.c.b16 %v1397, %v1395
    %v2216 = vpack.c.b16 %v1398, %v1396
    %v2217 = vpack.c.b16 %v1401, %v1399
    %v2218 = vpack.c.b16 %v1402, %v1400
    %v2219 = vpack.c.b16 %v1405, %v1403
    %v2220 = vpack.c.b16 %v1406, %v1404
    %v2221 = vpack.c.b16 %v1409, %v1407
    %v2222 = vpack.c.b16 %v1410, %v1408
    %v2223 = vpack.c.b16 %v1413, %v1411
    %v2224 = vpack.c.b16 %v1414, %v1412
    %v2225 = vpack.c.b16 %v1417, %v1415
    %v2226 = vpack.c.b16 %v1418, %v1416
    %v2227 = vpack.c.b16 %v1421, %v1419
    %v2228 = vpack.c.b16 %v1422, %v1420
    %v2229 = vpack.c.b16 %v1425, %v1423
    %v2230 = vpack.c.b16 %v1426, %v1424
    %v2231 = vpack.c.b16 %v1429, %v1427
    %v2232 = vpack.c.b16 %v1430, %v1428
    %v2233 = vpack.c.b16 %v1433, %v1431
    %v2234 = vpack.c.b16 %v1434, %v1432
    %v2235 = vpack.c.b16 %v1437, %v1435
    %v2236 = vpack.c.b16 %v1438, %v1436
    %v2237 = vpack.c.b16 %v1441, %v1439
    %v2238 = vpack.c.b16 %v1442, %v1440
    %v2239 = vpack.c.b16 %v1445, %v1443
    %v2240 = vpack.c.b16 %v1446, %v1444
    %v2241 = vpack.c.b16 %v1449, %v1447
    %v2242 = vpack.c.b16 %v1450, %v1448
    %v2243 = vpack.c.b16 %v1453, %v1451
    %v2244 = vpack.c.b16 %v1454, %v1452
    %v2245 = vpack.c.b16 %v1457, %v1455
    %v2246 = vpack.c.b16 %v1458, %v1456
    %v2247 = vpack.c.b16 %v1461, %v1459
    %v2248 = vpack.c.b16 %v1462, %v1460
    %v2249 = vpack.c.b16 %v1465, %v1463
    %v2250 = vpack.c.b16 %v1466, %v1464
    %v2251 = vpack.c.b16 %v1469, %v1467
    %v2252 = vpack.c.b16 %v1470, %v1468
    %v2253 = vpack.c.b16 %v1473, %v1471
    %v2254 = vpack.c.b16 %v1474, %v1472
    %v2255 = vpack.c.b16 %v1477, %v1475
    %v2256 = vpack.c.b16 %v1478, %v1476
    %v2257 = vpack.c.b16 %v1481, %v1479
    %v2258 = vpack.c.b16 %v1482, %v1480
    %v2259 = vpack.c.b16 %v1485, %v1483
    %v2260 = vpack.c.b16 %v1486, %v1484
    %v2261 = vpack.c.b16 %v1489, %v1487
    %v2262 = vpack.c.b16 %v1490, %v1488
    %v2263 = vpack.c.b16 %v1493, %v1491
    %v2264 = vpack.c.b16 %v1494, %v1492
    %v2265 = vpack.c.b16 %v1497, %v1495
    %v2266 = vpack.c.b16 %v1498, %v1496
    %v2267 = vpack.c.b16 %v1501, %v1499
    %v2268 = vpack.c.b16 %v1502, %v1500
    %v2269 = vpack.c.b16 %v1505, %v1503
    %v2270 = vpack.c.b16 %v1506, %v1504
    %v2271 = vpack.c.b16 %v1509, %v1507
    %v2272 = vpack.c.b16 %v1510, %v1508
    %v2273 = vpack.c.b16 %v1513, %v1511
    %v2274 = vpack.c.b16 %v1514, %v1512
    %v2275 = vpack.c.b16 %v1517, %v1515
    %v2276 = vpack.c.b16 %v1518, %v1516
    %v2277 = vpack.c.b16 %v1521, %v1519
    %v2278 = vpack.c.b16 %v1522, %v1520
    %v2279 = vpack.c.b16 %v1525, %v1523
    %v2280 = vpack.c.b16 %v1526, %v1524
    %v2281 = vpack.c.b16 %v1529, %v1527
    %v2282 = vpack.c.b16 %v1530, %v1528
    %v2283 = vpack.c.b16 %v1533, %v1531
    %v2284 = vpack.c.b16 %v1534, %v1532
    %v2285 = vpack.c.b16 %v1537, %v1535
    %v2286 = vpack.c.b16 %v1538, %v1536
    %v2287 = vpack.c.b16 %v1541, %v1539
    %v2288 = vpack.c.b16 %v1542, %v1540
    %v2289 = vpack.c.b16 %v1545, %v1543
    %v2290 = vpack.c.b16 %v1546, %v1544
    %v2291 = vpack.c.b16 %v1549, %v1547
    %v2292 = vpack.c.b16 %v1550, %v1548
    %v2293 = vpack.c.b16 %v1553, %v1551
    %v2294 = vpack.c.b16 %v1554, %v1552
    %v2295 = vpack.c.b16 %v1557, %v1555
    %v2296 = vpack.c.b16 %v1558, %v1556
    %v2297 = vpack.c.b16 %v1561, %v1559
    %v2298 = vpack.c.b16 %v1562, %v1560
    %v2299 = vpack.c.b16 %v1565, %v1563
    %v2300 = vpack.c.b16 %v1566, %v1564
    %v2301 = vpack.c.b16 %v1569, %v1567
    %v2302 = vpack.c.b16 %v1570, %v1568
    %v2303 = vpack.c.b16 %v1573, %v1571
    %v2304 = vpack.c.b16 %v1574, %v1572
    %v2305 = vpack.c.b16 %v1577, %v1575
    %v2306 = vpack.c.b16 %v1578, %v1576
    %v2307 = vpack.c.b16 %v1581, %v1579
    %v2308 = vpack.c.b16 %v1582, %v1580
    %v2309 = vpack.c.b16 %v1585, %v1583
    %v2310 = vpack.c.b16 %v1586, %v1584
    %v2311 = vpack.c.b16 %v1589, %v1587
    %v2312 = vpack.c.b16 %v1590, %v1588
    %v2313 = vpack.c.b16 %v1593, %v1591
    %v2314 = vpack.c.b16 %v1594, %v1592
    %v2315 = vpack.c.b16 %v1597, %v1595
    %v2316 = vpack.c.b16 %v1598, %v1596
    %v2317 = vpack.c.b16 %v1601, %v1599
    %v2318 = vpack.c.b16 %v1602, %v1600
    %v2319 = vpack.c.b16 %v1605, %v1603
    %v2320 = vpack.c.b16 %v1606, %v1604
    %v2321 = vpack.c.b16 %v1609, %v1607
    %v2322 = vpack.c.b16 %v1610, %v1608
    %v2323 = vpack.c.b16 %v1613, %v1611
    %v2324 = vpack.c.b16 %v1614, %v1612
    %v2325 = vpack.c.b16 %v1617, %v1615
    %v2326 = vpack.c.b16 %v1618, %v1616
    %v2327 = vpack.c.b16 %v1621, %v1619
    %v2328 = vpack.c.b16 %v1622, %v1620
    %v2329 = vpack.c.b16 %v1625, %v1623
    %v2330 = vpack.c.b16 %v1626, %v1624
    %v2331 = vpack.c.b16 %v1629, %v1627
    %v2332 = vpack.c.b16 %v1630, %v1628
    %v2333 = vpack.c.b16 %v1633, %v1631
    %v2334 = vpack.c.b16 %v1634, %v1632
    %v2335 = vpack.c.b16 %v1637, %v1635
    %v2336 = vpack.c.b16 %v1638, %v1636
    %v2337 = vpack.c.b16 %v1641, %v1639
    %v2338 = vpack.c.b16 %v1642, %v1640
    %v2339 = vpack.c.b16 %v1645, %v1643
    %v2340 = vpack.c.b16 %v1646, %v1644
    %v2341 = vpack.c.b16 %v1649, %v1647
    %v2342 = vpack.c.b16 %v1650, %v1648
    %v2343 = vpack.c.b16 %v1653, %v1651
    %v2344 = vpack.c.b16 %v1654, %v1652
    %v2345 = vpack.c.b16 %v1657, %v1655
    %v2346 = vpack.c.b16 %v1658, %v1656
    %v2347 = vpack.c.b16 %v1661, %v1659
    %v2348 = vpack.c.b16 %v1662, %v1660
    %v2349 = vpack.c.b16 %v1665, %v1663
    %v2350 = vpack.c.b16 %v1666, %v1664
    %v2351 = vpack.c.b16 %v1669, %v1667
    %v2352 = vpack.c.b16 %v1670, %v1668
    %v2353 = vpack.c.b16 %v1673, %v1671
    %v2354 = vpack.c.b16 %v1674, %v1672
    %v2355 = vpack.c.b16 %v1677, %v1675
    %v2356 = vpack.c.b16 %v1678, %v1676
    %v2357 = vpack.c.b16 %v1681, %v1679
    %v2358 = vpack.c.b16 %v1682, %v1680
    %v2359 = vpack.c.b16 %v1685, %v1683
    %v2360 = vpack.c.b16 %v1686, %v1684
    %v2361 = vpack.c.b16 %v1689, %v1687
    %v2362 = vpack.c.b16 %v1690, %v1688
    %v2363 = vpack.c.b16 %v1693, %v1691
    %v2364 = vpack.c.b16 %v1694, %v1692
    %v2365 = vpack.c.b16 %v1697, %v1695
    %v2366 = vpack.c.b16 %v1698, %v1696
    %v2367 = vpack.c.b16 %v1701, %v1699
    %v2368 = vpack.c.b16 %v1702, %v1700
    %v2369 = vpack.c.b16 %v1705, %v1703
    %v2370 = vpack.c.b16 %v1706, %v1704
    %v2371 = vpack.c.b16 %v1709, %v1707
    %v2372 = vpack.c.b16 %v1710, %v1708
    %v2373 = vpack.c.b16 %v1713, %v1711
    %v2374 = vpack.c.b16 %v1714, %v1712
    %v2375 = vpack.c.b16 %v1717, %v1715
    %v2376 = vpack.c.b16 %v1718, %v1716
    %v2377 = vpack.c.b16 %v1721, %v1719
    %v2378 = vpack.c.b16 %v1722, %v1720
    %v2379 = vpack.c.b16 %v1725, %v1723
    %v2380 = vpack.c.b16 %v1726, %v1724
    %v2381 = vpack.c.b16 %v1729, %v1727
    %v2382 = vpack.c.b16 %v1730, %v1728
    %v2383 = vpack.c.b16 %v1733, %v1731
    %v2384 = vpack.c.b16 %v1734, %v1732
    %v2385 = vpack.c.b16 %v1737, %v1735
    %v2386 = vpack.c.b16 %v1738, %v1736
    %v2387 = vpack.c.b16 %v1741, %v1739
    %v2388 = vpack.c.b16 %v1742, %v1740
    %v2389 = vpack.c.b16 %v1745, %v1743
    %v2390 = vpack.c.b16 %v1746, %v1744
    %v2391 = vpack.c.b16 %v1749, %v1747
    %v2392 = vpack.c.b16 %v1750, %v1748
    %v2393 = vpack.c.b16 %v1753, %v1751
    %v2394 = vpack.c.b16 %v1754, %v1752
    %v2395 = vpack.c.b16 %v1757, %v1755
    %v2396 = vpack.c.b16 %v1758, %v1756
    %v2397 = vpack.c.b16 %v1761, %v1759
    %v2398 = vpack.c.b16 %v1762, %v1760
    %v2399 = vpack.c.b16 %v1765, %v1763
    %v2400 = vpack.c.b16 %v1766, %v1764
    %v2401 = vpack.c.b16 %v1769, %v1767
    %v2402 = vpack.c.b16 %v1770, %v1768
    %v2403 = vpack.c.b16 %v1773, %v1771
    %v2404 = vpack.c.b16 %v1774, %v1772
    %v2405 = vpack.c.b16 %v1777, %v1775
    %v2406 = vpack.c.b16 %v1778, %v1776
    %v2407 = vpack.c.b16 %v1781, %v1779
    %v2408 = vpack.c.b16 %v1782, %v1780
    %v2409 = vpack.c.b16 %v1785, %v1783
    %v2410 = vpack.c.b16 %v1786, %v1784
    %v2411 = vpack.c.b16 %v1789, %v1787
    %v2412 = vpack.c.b16 %v1790, %v1788
    %v2413 = vpack.c.b16 %v1793, %v1791
    %v2414 = vpack.c.b16 %v1794, %v1792
    %v2415 = vpack.c.b16 %v1797, %v1795
    %v2416 = vpack.c.b16 %v1798, %v1796
    %v2417 = vpack.c.b16 %v1801, %v1799
    %v2418 = vpack.c.b16 %v1802, %v1800
    %v2419 = vpack.c.b16 %v1805, %v1803
    %v2420 = vpack.c.b16 %v1806, %v1804
    %v2421 = vpack.c.b16 %v1809, %v1807
    %v2422 = vpack.c.b16 %v1810, %v1808
    %v2423 = vpack.c.b16 %v1813, %v1811
    %v2424 = vpack.c.b16 %v1814, %v1812
    %v2425 = vpack.c.b16 %v1817, %v1815
    %v2426 = vpack.c.b16 %v1818, %v1816
    %v2427 = vpack.c.b16 %v1821, %v1819
    %v2428 = vpack.c.b16 %v1822, %v1820
    %v2429 = vpack.c.b16 %v1825, %v1823
    %v2430 = vpack.c.b16 %v1826, %v1824
    %v2431 = vpack.c.b16 %v1829, %v1827
    %v2432 = vpack.c.b16 %v1830, %v1828
    %v2433 = vpack.c.b16 %v1833, %v1831
    %v2434 = vpack.c.b16 %v1834, %v1832
    %v2435 = vpack.c.b16 %v1837, %v1835
    %v2436 = vpack.c.b16 %v1838, %v1836
    %v2437 = vpack.c.b16 %v1841, %v1839
    %v2438 = vpack.c.b16 %v1842, %v1840
    %v2439 = vpack.c.b16 %v1845, %v1843
    %v2440 = vpack.c.b16 %v1846, %v1844
    %v2441 = vpack.c.b16 %v1849, %v1847
    %v2442 = vpack.c.b16 %v1850, %v1848
    %v2443 = vpack.c.b16 %v1853, %v1851
    %v2444 = vpack.c.b16 %v1854, %v1852
    %v2445 = vpack.c.b16 %v1857, %v1855
    %v2446 = vpack.c.b16 %v1858, %v1856
    %v2447 = vpack.c.b16 %v1861, %v1859
    %v2448 = vpack.c.b16 %v1862, %v1860
    %v2449 = vpack.c.b16 %v1865, %v1863
    %v2450 = vpack.c.b16 %v1866, %v1864
    %v2451 = vpack.c.b16 %v1869, %v1867
    %v2452 = vpack.c.b16 %v1870, %v1868
    %v2453 = vpack.c.b16 %v1873, %v1871
    %v2454 = vpack.c.b16 %v1874, %v1872
    %v2455 = vpack.c.b16 %v1877, %v1875
    %v2456 = vpack.c.b16 %v1878, %v1876
    %v2457 = vpack.c.b16 %v1881, %v1879
    %v2458 = vpack.c.b16 %v1882, %v1880
    %v2459 = vpack.c.b16 %v1885, %v1883
    %v2460 = vpack.c.b16 %v1886, %v1884
    %v2461 = vpack.c.b16 %v1889, %v1887
    %v2462 = vpack.c.b16 %v1890, %v1888
    %v2463 = vpack.c.b16 %v1893, %v1891
    %v2464 = vpack.c.b16 %v1894, %v1892
    %v2465 = vpack.c.b16 %v1897, %v1895
    %v2466 = vpack.c.b16 %v1898, %v1896
    %v2467 = vpack.c.b16 %v1901, %v1899
    %v2468 = vpack.c.b16 %v1902, %v1900
    %v2469 = vpack.c.b16 %v1905, %v1903
    %v2470 = vpack.c.b16 %v1906, %v1904
    %v2471 = vpack.c.b16 %v1909, %v1907
    %v2472 = vpack.c.b16 %v1910, %v1908
    %v2473 = vpack.c.b16 %v1913, %v1911
    %v2474 = vpack.c.b16 %v1914, %v1912
    %v2475 = vpack.c.b16 %v1917, %v1915
    %v2476 = vpack.c.b16 %v1918, %v1916
    %v2477 = vpack.c.b16 %v1921, %v1919
    %v2478 = vpack.c.b16 %v1922, %v1920
    %v2479 = vpack.c.b16 %v1925, %v1923
    %v2480 = vpack.c.b16 %v1926, %v1924
    %v2481 = vpack.c.b16 %v1929, %v1927
    %v2482 = vpack.c.b16 %v1930, %v1928
    %v2483 = vpack.c.b16 %v1933, %v1931
    %v2484 = vpack.c.b16 %v1934, %v1932
    %v2485 = vpack.c.b16 %v1937, %v1935
    %v2486 = vpack.c.b16 %v1938, %v1936
    %v2487 = vpack.c.b16 %v1941, %v1939
    %v2488 = vpack.c.b16 %v1942, %v1940
    %v2489 = vpack.c.b16 %v1945, %v1943
    %v2490 = vpack.c.b16 %v1946, %v1944
    %v2491 = vpack.c.b16 %v1949, %v1947
    %v2492 = vpack.c.b16 %v1950, %v1948
    %v2493 = vpack.c.b16 %v1953, %v1951
    %v2494 = vpack.c.b16 %v1954, %v1952
    %v2495 = vpack.c.b16 %v1957, %v1955
    %v2496 = vpack.c.b16 %v1958, %v1956
    %v2497 = vpack.c.b16 %v1961, %v1959
    %v2498 = vpack.c.b16 %v1962, %v1960
    %v2499 = vpack.c.b16 %v1965, %v1963
    %v2500 = vpack.c.b16 %v1966, %v1964
    %v2501 = vpack.c.b16 %v1969, %v1967
    %v2502 = vpack.c.b16 %v1970, %v1968
    %v2503 = vpack.c.b16 %v1973, %v1971
    %v2504 = vpack.c.b16 %v1974, %v1972
    %v2505 = vpack.c.b16 %v1977, %v1975
    %v2506 = vpack.c.b16 %v1978, %v1976
    %v2507 = vpack.c.b16 %v1981, %v1979
    %v2508 = vpack.c.b16 %v1982, %v1980
    %v2509 = vpack.c.b16 %v1985, %v1983
    %v2510 = vpack.c.b16 %v1986, %v1984
    %v2511 = vpack.c.b16 %v1989, %v1987
    %v2512 = vpack.c.b16 %v1990, %v1988
    %v2513 = vpack.c.b16 %v1993, %v1991
    %v2514 = vpack.c.b16 %v1994, %v1992
    %v2515 = vpack.c.b16 %v1997, %v1995
    %v2516 = vpack.c.b16 %v1998, %v1996
    %v2517 = vpack.c.b16 %v2001, %v1999
    %v2518 = vpack.c.b16 %v2002, %v2000
    %v2519 = vpack.c.b16 %v2005, %v2003
    %v2520 = vpack.c.b16 %v2006, %v2004
    %v2521 = vpack.c.b16 %v2009, %v2007
    %v2522 = vpack.c.b16 %v2010, %v2008
    %v2523 = vpack.c.b16 %v2013, %v2011
    %v2524 = vpack.c.b16 %v2014, %v2012
    %v2525 = vpack.c.b16 %v2017, %v2015
    %v2526 = vpack.c.b16 %v2018, %v2016
    %v2527 = vpack.c.b16 %v2021, %v2019
    %v2528 = vpack.c.b16 %v2022, %v2020
    %v2529 = vpack.c.b16 %v2025, %v2023
    %v2530 = vpack.c.b16 %v2026, %v2024
    %v2531 = vpack.c.b16 %v2029, %v2027
    %v2532 = vpack.c.b16 %v2030, %v2028
    %v2533 = vpack.c.b16 %v2033, %v2031
    %v2534 = vpack.c.b16 %v2034, %v2032
    %v2535 = vpack.c.b16 %v2037, %v2035
    %v2536 = vpack.c.b16 %v2038, %v2036
    %v2537 = vpack.c.b16 %v2041, %v2039
    %v2538 = vpack.c.b16 %v2042, %v2040
    %v2539 = vpack.c.b16 %v2045, %v2043
    %v2540 = vpack.c.b16 %v2046, %v2044
    %v2541 = vpack.c.b16 %v2049, %v2047
    %v2542 = vpack.c.b16 %v2050, %v2048
    %v2543 = vpack.c.b16 %v2053, %v2051
    %v2544 = vpack.c.b16 %v2054, %v2052
    %v2545 = vpack.c.b16 %v2057, %v2055
    %v2546 = vpack.c.b16 %v2058, %v2056
    %v2547 = vpack.c.b16 %v2061, %v2059
    %v2548 = vpack.c.b16 %v2062, %v2060
    %v2549 = vpack.c.b16 %v2065, %v2063
    %v2550 = vpack.c.b16 %v2066, %v2064
    %v2551 = vpack.c.b16 %v2069, %v2067
    %v2552 = vpack.c.b16 %v2070, %v2068
    %v2553 = vpack.c.b16 %v2073, %v2071
    %v2554 = vpack.c.b16 %v2074, %v2072
    %v2555 = vpack.c.b16 %v2077, %v2075
    %v2556 = vpack.c.b16 %v2078, %v2076
    %v2557 = vpack.c.b16 %v2081, %v2079
    %v2558 = vpack.c.b16 %v2082, %v2080
    %v2559 = vpack.c.b16 %v2085, %v2083
    %v2560 = vpack.c.b16 %v2086, %v2084
    %v2561 = vpack.c.b16 %v2089, %v2087
    %v2562 = vpack.c.b16 %v2090, %v2088
    %v2563 = vpack.c.b16 %v2093, %v2091
    %v2564 = vpack.c.b16 %v2094, %v2092
    %v2565 = vpack.c.b16 %v2097, %v2095
    %v2566 = vpack.c.b16 %v2098, %v2096
    %v2567 = vpack.c.b16 %v2101, %v2099
    %v2568 = vpack.c.b16 %v2102, %v2100
    %v2569 = vpack.c.b16 %v2105, %v2103
    %v2570 = vpack.c.b16 %v2106, %v2104
    %3035 = vmatpush.bf16.msra.mxu0 %v2121
    %3036 = vmatpush.bf16.msra.mxu0 %v2119
    %3037 = vmatpush.bf16.msra.mxu0 %v2117
    %3038 = vmatpush.bf16.msra.mxu0 %v2115
    %3039 = vmatpush.bf16.msra.mxu0 %v2113
    %3040 = vmatpush.bf16.msra.mxu0 %v2111
    %3041 = vmatpush.bf16.msra.mxu0 %v2109
    %3042 = vmatpush.bf16.msra.mxu0 %v2107
    %3043 = vmatmul.bf16.gmra.mxu0 %v657
    %v3044 = vpop.f32.mrf.mxu0
    %v3045 = vadd.f32 %v609, %v3044
    %v3046 = vpop.f32.mrf.mxu0
    %3047 = vdwg.mxu0
    %3048 = vmatpush.bf16.msra.mxu0 %v2137
    %3049 = vmatpush.bf16.msra.mxu0 %v2135
    %3050 = vmatpush.bf16.msra.mxu0 %v2133
    %3051 = vmatpush.bf16.msra.mxu0 %v2131
    %3052 = vmatpush.bf16.msra.mxu0 %v2129
    %3053 = vmatpush.bf16.msra.mxu0 %v2127
    %3054 = vmatpush.bf16.msra.mxu0 %v2125
    %3055 = vmatpush.bf16.msra.mxu0 %v2123
    %3056 = vmatmul.bf16.gmra.mxu0 %v658
    %v3057 = vpop.f32.mrf.mxu0
    %v3058 = vadd.f32 %v3045, %v3057
    %v3059 = vpop.f32.mrf.mxu0
    %3060 = vdwg.mxu0
    %3061 = vmatpush.bf16.msra.mxu0 %v2153
    %3062 = vmatpush.bf16.msra.mxu0 %v2151
    %3063 = vmatpush.bf16.msra.mxu0 %v2149
    %3064 = vmatpush.bf16.msra.mxu0 %v2147
    %3065 = vmatpush.bf16.msra.mxu0 %v2145
    %3066 = vmatpush.bf16.msra.mxu0 %v2143
    %3067 = vmatpush.bf16.msra.mxu0 %v2141
    %3068 = vmatpush.bf16.msra.mxu0 %v2139
    %3069 = vmatmul.bf16.gmra.mxu0 %v659
    %v3070 = vpop.f32.mrf.mxu0
    %v3071 = vadd.f32 %v3058, %v3070
    %v3072 = vpop.f32.mrf.mxu0
    %3073 = vdwg.mxu0
    %3074 = vmatpush.bf16.msra.mxu0 %v2169
    %3075 = vmatpush.bf16.msra.mxu0 %v2167
    %3076 = vmatpush.bf16.msra.mxu0 %v2165
    %3077 = vmatpush.bf16.msra.mxu0 %v2163
    %3078 = vmatpush.bf16.msra.mxu0 %v2161
    %3079 = vmatpush.bf16.msra.mxu0 %v2159
    %3080 = vmatpush.bf16.msra.mxu0 %v2157
    %3081 = vmatpush.bf16.msra.mxu0 %v2155
    %3082 = vmatmul.bf16.gmra.mxu0 %v660
    %v3083 = vpop.f32.mrf.mxu0
    %v3084 = vadd.f32 %v3071, %v3083
    %v3085 = vpop.f32.mrf.mxu0
    %3086 = vdwg.mxu0
    %3087 = vmatpush.bf16.msra.mxu0 %v2185
    %3088 = vmatpush.bf16.msra.mxu0 %v2183
    %3089 = vmatpush.bf16.msra.mxu0 %v2181
    %3090 = vmatpush.bf16.msra.mxu0 %v2179
    %3091 = vmatpush.bf16.msra.mxu0 %v2177
    %3092 = vmatpush.bf16.msra.mxu0 %v2175
    %3093 = vmatpush.bf16.msra.mxu0 %v2173
    %3094 = vmatpush.bf16.msra.mxu0 %v2171
    %3095 = vmatmul.bf16.gmra.mxu0 %v661
    %v3096 = vpop.f32.mrf.mxu0
    %v3097 = vadd.f32 %v3084, %v3096
    %v3098 = vpop.f32.mrf.mxu0
    %3099 = vdwg.mxu0
    %3100 = vmatpush.bf16.msra.mxu0 %v2201
    %3101 = vmatpush.bf16.msra.mxu0 %v2199
    %3102 = vmatpush.bf16.msra.mxu0 %v2197
    %3103 = vmatpush.bf16.msra.mxu0 %v2195
    %3104 = vmatpush.bf16.msra.mxu0 %v2193
    %3105 = vmatpush.bf16.msra.mxu0 %v2191
    %3106 = vmatpush.bf16.msra.mxu0 %v2189
    %3107 = vmatpush.bf16.msra.mxu0 %v2187
    %3108 = vmatmul.bf16.gmra.mxu0 %v662
    %v3109 = vpop.f32.mrf.mxu0
    %v3110 = vadd.f32 %v3097, %v3109
    %v3111 = vpop.f32.mrf.mxu0
    %3112 = vdwg.mxu0
    %3113 = vmatpush.bf16.msra.mxu0 %v2217
    %3114 = vmatpush.bf16.msra.mxu0 %v2215
    %3115 = vmatpush.bf16.msra.mxu0 %v2213
    %3116 = vmatpush.bf16.msra.mxu0 %v2211
    %3117 = vmatpush.bf16.msra.mxu0 %v2209
    %3118 = vmatpush.bf16.msra.mxu0 %v2207
    %3119 = vmatpush.bf16.msra.mxu0 %v2205
    %3120 = vmatpush.bf16.msra.mxu0 %v2203
    %3121 = vmatmul.bf16.gmra.mxu0 %v663
    %v3122 = vpop.f32.mrf.mxu0
    %v3123 = vadd.f32 %v3110, %v3122
    %v3124 = vpop.f32.mrf.mxu0
    %3125 = vdwg.mxu0
    %3126 = vmatpush.bf16.msra.mxu0 %v2233
    %3127 = vmatpush.bf16.msra.mxu0 %v2231
    %3128 = vmatpush.bf16.msra.mxu0 %v2229
    %3129 = vmatpush.bf16.msra.mxu0 %v2227
    %3130 = vmatpush.bf16.msra.mxu0 %v2225
    %3131 = vmatpush.bf16.msra.mxu0 %v2223
    %3132 = vmatpush.bf16.msra.mxu0 %v2221
    %3133 = vmatpush.bf16.msra.mxu0 %v2219
    %3134 = vmatmul.bf16.gmra.mxu0 %v664
    %v3135 = vpop.f32.mrf.mxu0
    %v3136 = vadd.f32 %v3123, %v3135
    %v3137 = vpop.f32.mrf.mxu0
    %3138 = vdwg.mxu0
    %3139 = vmatpush.bf16.msra.mxu0 %v2249
    %3140 = vmatpush.bf16.msra.mxu0 %v2247
    %3141 = vmatpush.bf16.msra.mxu0 %v2245
    %3142 = vmatpush.bf16.msra.mxu0 %v2243
    %3143 = vmatpush.bf16.msra.mxu0 %v2241
    %3144 = vmatpush.bf16.msra.mxu0 %v2239
    %3145 = vmatpush.bf16.msra.mxu0 %v2237
    %3146 = vmatpush.bf16.msra.mxu0 %v2235
    %3147 = vmatmul.bf16.gmra.mxu0 %v665
    %v3148 = vpop.f32.mrf.mxu0
    %v3149 = vadd.f32 %v3136, %v3148
    %v3150 = vpop.f32.mrf.mxu0
    %3151 = vdwg.mxu0
    %3152 = vmatpush.bf16.msra.mxu0 %v2265
    %3153 = vmatpush.bf16.msra.mxu0 %v2263
    %3154 = vmatpush.bf16.msra.mxu0 %v2261
    %3155 = vmatpush.bf16.msra.mxu0 %v2259
    %3156 = vmatpush.bf16.msra.mxu0 %v2257
    %3157 = vmatpush.bf16.msra.mxu0 %v2255
    %3158 = vmatpush.bf16.msra.mxu0 %v2253
    %3159 = vmatpush.bf16.msra.mxu0 %v2251
    %3160 = vmatmul.bf16.gmra.mxu0 %v666
    %v3161 = vpop.f32.mrf.mxu0
    %v3162 = vadd.f32 %v3149, %v3161
    %v3163 = vpop.f32.mrf.mxu0
    %3164 = vdwg.mxu0
    %3165 = vmatpush.bf16.msra.mxu0 %v2281
    %3166 = vmatpush.bf16.msra.mxu0 %v2279
    %3167 = vmatpush.bf16.msra.mxu0 %v2277
    %3168 = vmatpush.bf16.msra.mxu0 %v2275
    %3169 = vmatpush.bf16.msra.mxu0 %v2273
    %3170 = vmatpush.bf16.msra.mxu0 %v2271
    %3171 = vmatpush.bf16.msra.mxu0 %v2269
    %3172 = vmatpush.bf16.msra.mxu0 %v2267
    %3173 = vmatmul.bf16.gmra.mxu0 %v667
    %v3174 = vpop.f32.mrf.mxu0
    %v3175 = vadd.f32 %v3162, %v3174
    %v3176 = vpop.f32.mrf.mxu0
    %3177 = vdwg.mxu0
    %3178 = vmatpush.bf16.msra.mxu0 %v2297
    %3179 = vmatpush.bf16.msra.mxu0 %v2295
    %3180 = vmatpush.bf16.msra.mxu0 %v2293
    %3181 = vmatpush.bf16.msra.mxu0 %v2291
    %3182 = vmatpush.bf16.msra.mxu0 %v2289
    %3183 = vmatpush.bf16.msra.mxu0 %v2287
    %3184 = vmatpush.bf16.msra.mxu0 %v2285
    %3185 = vmatpush.bf16.msra.mxu0 %v2283
    %3186 = vmatmul.bf16.gmra.mxu0 %v668
    %v3187 = vpop.f32.mrf.mxu0
    %v3188 = vadd.f32 %v3175, %v3187
    %v3189 = vpop.f32.mrf.mxu0
    %3190 = vdwg.mxu0
    %3191 = vmatpush.bf16.msra.mxu0 %v2313
    %3192 = vmatpush.bf16.msra.mxu0 %v2311
    %3193 = vmatpush.bf16.msra.mxu0 %v2309
    %3194 = vmatpush.bf16.msra.mxu0 %v2307
    %3195 = vmatpush.bf16.msra.mxu0 %v2305
    %3196 = vmatpush.bf16.msra.mxu0 %v2303
    %3197 = vmatpush.bf16.msra.mxu0 %v2301
    %3198 = vmatpush.bf16.msra.mxu0 %v2299
    %3199 = vmatmul.bf16.gmra.mxu0 %v669
    %v3200 = vpop.f32.mrf.mxu0
    %v3201 = vadd.f32 %v3188, %v3200
    %v3202 = vpop.f32.mrf.mxu0
    %3203 = vdwg.mxu0
    %3204 = vmatpush.bf16.msra.mxu0 %v2329
    %3205 = vmatpush.bf16.msra.mxu0 %v2327
    %3206 = vmatpush.bf16.msra.mxu0 %v2325
    %3207 = vmatpush.bf16.msra.mxu0 %v2323
    %3208 = vmatpush.bf16.msra.mxu0 %v2321
    %3209 = vmatpush.bf16.msra.mxu0 %v2319
    %3210 = vmatpush.bf16.msra.mxu0 %v2317
    %3211 = vmatpush.bf16.msra.mxu0 %v2315
    %3212 = vmatmul.bf16.gmra.mxu0 %v670
    %v3213 = vpop.f32.mrf.mxu0
    %v3214 = vadd.f32 %v3201, %v3213
    %v3215 = vpop.f32.mrf.mxu0
    %3216 = vdwg.mxu0
    %3217 = vmatpush.bf16.msra.mxu0 %v2345
    %3218 = vmatpush.bf16.msra.mxu0 %v2343
    %3219 = vmatpush.bf16.msra.mxu0 %v2341
    %3220 = vmatpush.bf16.msra.mxu0 %v2339
    %3221 = vmatpush.bf16.msra.mxu0 %v2337
    %3222 = vmatpush.bf16.msra.mxu0 %v2335
    %3223 = vmatpush.bf16.msra.mxu0 %v2333
    %3224 = vmatpush.bf16.msra.mxu0 %v2331
    %3225 = vmatmul.bf16.gmra.mxu0 %v671
    %v3226 = vpop.f32.mrf.mxu0
    %v3227 = vadd.f32 %v3214, %v3226
    %v3228 = vpop.f32.mrf.mxu0
    %3229 = vdwg.mxu0
    %3230 = vmatpush.bf16.msra.mxu0 %v2361
    %3231 = vmatpush.bf16.msra.mxu0 %v2359
    %3232 = vmatpush.bf16.msra.mxu0 %v2357
    %3233 = vmatpush.bf16.msra.mxu0 %v2355
    %3234 = vmatpush.bf16.msra.mxu0 %v2353
    %3235 = vmatpush.bf16.msra.mxu0 %v2351
    %3236 = vmatpush.bf16.msra.mxu0 %v2349
    %3237 = vmatpush.bf16.msra.mxu0 %v2347
    %3238 = vmatmul.bf16.gmra.mxu0 %v672
    %v3239 = vpop.f32.mrf.mxu0
    %v3240 = vadd.f32 %v3227, %v3239
    %v3241 = vpop.f32.mrf.mxu0
    %3242 = vdwg.mxu0
    %3243 = vmatpush.bf16.msra.mxu0 %v2377
    %3244 = vmatpush.bf16.msra.mxu0 %v2375
    %3245 = vmatpush.bf16.msra.mxu0 %v2373
    %3246 = vmatpush.bf16.msra.mxu0 %v2371
    %3247 = vmatpush.bf16.msra.mxu0 %v2369
    %3248 = vmatpush.bf16.msra.mxu0 %v2367
    %3249 = vmatpush.bf16.msra.mxu0 %v2365
    %3250 = vmatpush.bf16.msra.mxu0 %v2363
    %3251 = vmatmul.bf16.gmra.mxu0 %v673
    %v3252 = vpop.f32.mrf.mxu0
    %v3253 = vadd.f32 %v3240, %v3252
    %v3254 = vpop.f32.mrf.mxu0
    %3255 = vdwg.mxu0
    %3256 = vmatpush.bf16.msra.mxu0 %v2393
    %3257 = vmatpush.bf16.msra.mxu0 %v2391
    %3258 = vmatpush.bf16.msra.mxu0 %v2389
    %3259 = vmatpush.bf16.msra.mxu0 %v2387
    %3260 = vmatpush.bf16.msra.mxu0 %v2385
    %3261 = vmatpush.bf16.msra.mxu0 %v2383
    %3262 = vmatpush.bf16.msra.mxu0 %v2381
    %3263 = vmatpush.bf16.msra.mxu0 %v2379
    %3264 = vmatmul.bf16.gmra.mxu0 %v674
    %v3265 = vpop.f32.mrf.mxu0
    %v3266 = vadd.f32 %v3253, %v3265
    %v3267 = vpop.f32.mrf.mxu0
    %3268 = vdwg.mxu0
    %3269 = vmatpush.bf16.msra.mxu0 %v2409
    %3270 = vmatpush.bf16.msra.mxu0 %v2407
    %3271 = vmatpush.bf16.msra.mxu0 %v2405
    %3272 = vmatpush.bf16.msra.mxu0 %v2403
    %3273 = vmatpush.bf16.msra.mxu0 %v2401
    %3274 = vmatpush.bf16.msra.mxu0 %v2399
    %3275 = vmatpush.bf16.msra.mxu0 %v2397
    %3276 = vmatpush.bf16.msra.mxu0 %v2395
    %3277 = vmatmul.bf16.gmra.mxu0 %v675
    %v3278 = vpop.f32.mrf.mxu0
    %v3279 = vadd.f32 %v3266, %v3278
    %v3280 = vpop.f32.mrf.mxu0
    %3281 = vdwg.mxu0
    %3282 = vmatpush.bf16.msra.mxu0 %v2425
    %3283 = vmatpush.bf16.msra.mxu0 %v2423
    %3284 = vmatpush.bf16.msra.mxu0 %v2421
    %3285 = vmatpush.bf16.msra.mxu0 %v2419
    %3286 = vmatpush.bf16.msra.mxu0 %v2417
    %3287 = vmatpush.bf16.msra.mxu0 %v2415
    %3288 = vmatpush.bf16.msra.mxu0 %v2413
    %3289 = vmatpush.bf16.msra.mxu0 %v2411
    %3290 = vmatmul.bf16.gmra.mxu0 %v676
    %v3291 = vpop.f32.mrf.mxu0
    %v3292 = vadd.f32 %v3279, %v3291
    %v3293 = vpop.f32.mrf.mxu0
    %3294 = vdwg.mxu0
    %3295 = vmatpush.bf16.msra.mxu0 %v2441
    %3296 = vmatpush.bf16.msra.mxu0 %v2439
    %3297 = vmatpush.bf16.msra.mxu0 %v2437
    %3298 = vmatpush.bf16.msra.mxu0 %v2435
    %3299 = vmatpush.bf16.msra.mxu0 %v2433
    %3300 = vmatpush.bf16.msra.mxu0 %v2431
    %3301 = vmatpush.bf16.msra.mxu0 %v2429
    %3302 = vmatpush.bf16.msra.mxu0 %v2427
    %3303 = vmatmul.bf16.gmra.mxu0 %v677
    %v3304 = vpop.f32.mrf.mxu0
    %v3305 = vadd.f32 %v3292, %v3304
    %v3306 = vpop.f32.mrf.mxu0
    %3307 = vdwg.mxu0
    %3308 = vmatpush.bf16.msra.mxu0 %v2457
    %3309 = vmatpush.bf16.msra.mxu0 %v2455
    %3310 = vmatpush.bf16.msra.mxu0 %v2453
    %3311 = vmatpush.bf16.msra.mxu0 %v2451
    %3312 = vmatpush.bf16.msra.mxu0 %v2449
    %3313 = vmatpush.bf16.msra.mxu0 %v2447
    %3314 = vmatpush.bf16.msra.mxu0 %v2445
    %3315 = vmatpush.bf16.msra.mxu0 %v2443
    %3316 = vmatmul.bf16.gmra.mxu0 %v678
    %v3317 = vpop.f32.mrf.mxu0
    %v3318 = vadd.f32 %v3305, %v3317
    %v3319 = vpop.f32.mrf.mxu0
    %3320 = vdwg.mxu0
    %3321 = vmatpush.bf16.msra.mxu0 %v2473
    %3322 = vmatpush.bf16.msra.mxu0 %v2471
    %3323 = vmatpush.bf16.msra.mxu0 %v2469
    %3324 = vmatpush.bf16.msra.mxu0 %v2467
    %3325 = vmatpush.bf16.msra.mxu0 %v2465
    %3326 = vmatpush.bf16.msra.mxu0 %v2463
    %3327 = vmatpush.bf16.msra.mxu0 %v2461
    %3328 = vmatpush.bf16.msra.mxu0 %v2459
    %3329 = vmatmul.bf16.gmra.mxu0 %v679
    %v3330 = vpop.f32.mrf.mxu0
    %v3331 = vadd.f32 %v3318, %v3330
    %v3332 = vpop.f32.mrf.mxu0
    %3333 = vdwg.mxu0
    %3334 = vmatpush.bf16.msra.mxu0 %v2489
    %3335 = vmatpush.bf16.msra.mxu0 %v2487
    %3336 = vmatpush.bf16.msra.mxu0 %v2485
    %3337 = vmatpush.bf16.msra.mxu0 %v2483
    %3338 = vmatpush.bf16.msra.mxu0 %v2481
    %3339 = vmatpush.bf16.msra.mxu0 %v2479
    %3340 = vmatpush.bf16.msra.mxu0 %v2477
    %3341 = vmatpush.bf16.msra.mxu0 %v2475
    %3342 = vmatmul.bf16.gmra.mxu0 %v680
    %v3343 = vpop.f32.mrf.mxu0
    %v3344 = vadd.f32 %v3331, %v3343
    %v3345 = vpop.f32.mrf.mxu0
    %3346 = vdwg.mxu0
    %3347 = vmatpush.bf16.msra.mxu0 %v2505
    %3348 = vmatpush.bf16.msra.mxu0 %v2503
    %3349 = vmatpush.bf16.msra.mxu0 %v2501
    %3350 = vmatpush.bf16.msra.mxu0 %v2499
    %3351 = vmatpush.bf16.msra.mxu0 %v2497
    %3352 = vmatpush.bf16.msra.mxu0 %v2495
    %3353 = vmatpush.bf16.msra.mxu0 %v2493
    %3354 = vmatpush.bf16.msra.mxu0 %v2491
    %3355 = vmatmul.bf16.gmra.mxu0 %v681
    %v3356 = vpop.f32.mrf.mxu0
    %v3357 = vadd.f32 %v3344, %v3356
    %v3358 = vpop.f32.mrf.mxu0
    %3359 = vdwg.mxu0
    %3360 = vmatpush.bf16.msra.mxu0 %v2521
    %3361 = vmatpush.bf16.msra.mxu0 %v2519
    %3362 = vmatpush.bf16.msra.mxu0 %v2517
    %3363 = vmatpush.bf16.msra.mxu0 %v2515
    %3364 = vmatpush.bf16.msra.mxu0 %v2513
    %3365 = vmatpush.bf16.msra.mxu0 %v2511
    %3366 = vmatpush.bf16.msra.mxu0 %v2509
    %3367 = vmatpush.bf16.msra.mxu0 %v2507
    %3368 = vmatmul.bf16.gmra.mxu0 %v682
    %v3369 = vpop.f32.mrf.mxu0
    %v3370 = vadd.f32 %v3357, %v3369
    %v3371 = vpop.f32.mrf.mxu0
    %3372 = vdwg.mxu0
    %3373 = vmatpush.bf16.msra.mxu0 %v2537
    %3374 = vmatpush.bf16.msra.mxu0 %v2535
    %3375 = vmatpush.bf16.msra.mxu0 %v2533
    %3376 = vmatpush.bf16.msra.mxu0 %v2531
    %3377 = vmatpush.bf16.msra.mxu0 %v2529
    %3378 = vmatpush.bf16.msra.mxu0 %v2527
    %3379 = vmatpush.bf16.msra.mxu0 %v2525
    %3380 = vmatpush.bf16.msra.mxu0 %v2523
    %3381 = vmatmul.bf16.gmra.mxu0 %v683
    %v3382 = vpop.f32.mrf.mxu0
    %v3383 = vadd.f32 %v3370, %v3382
    %v3384 = vpop.f32.mrf.mxu0
    %3385 = vdwg.mxu0
    %3386 = vmatpush.bf16.msra.mxu0 %v2553
    %3387 = vmatpush.bf16.msra.mxu0 %v2551
    %3388 = vmatpush.bf16.msra.mxu0 %v2549
    %3389 = vmatpush.bf16.msra.mxu0 %v2547
    %3390 = vmatpush.bf16.msra.mxu0 %v2545
    %3391 = vmatpush.bf16.msra.mxu0 %v2543
    %3392 = vmatpush.bf16.msra.mxu0 %v2541
    %3393 = vmatpush.bf16.msra.mxu0 %v2539
    %3394 = vmatmul.bf16.gmra.mxu0 %v684
    %v3395 = vpop.f32.mrf.mxu0
    %v3396 = vadd.f32 %v3383, %v3395
    %v3397 = vpop.f32.mrf.mxu0
    %3398 = vdwg.mxu0
    %3399 = vmatpush.bf16.msra.mxu0 %v2569
    %3400 = vmatpush.bf16.msra.mxu0 %v2567
    %3401 = vmatpush.bf16.msra.mxu0 %v2565
    %3402 = vmatpush.bf16.msra.mxu0 %v2563
    %3403 = vmatpush.bf16.msra.mxu0 %v2561
    %3404 = vmatpush.bf16.msra.mxu0 %v2559
    %3405 = vmatpush.bf16.msra.mxu0 %v2557
    %3406 = vmatpush.bf16.msra.mxu0 %v2555
    %3407 = vmatmul.bf16.gmra.mxu0 %v685
    %v3408 = vpop.f32.mrf.mxu0
    %v3409 = vadd.f32 %v3396, %v3408
    %v3410 = vpop.f32.mrf.mxu0
    %3411 = vdwg.mxu0
    %3412 = vmatpush.bf16.msra.mxu0 %v2122
    %3413 = vmatpush.bf16.msra.mxu0 %v2120
    %3414 = vmatpush.bf16.msra.mxu0 %v2118
    %3415 = vmatpush.bf16.msra.mxu0 %v2116
    %3416 = vmatpush.bf16.msra.mxu0 %v2114
    %3417 = vmatpush.bf16.msra.mxu0 %v2112
    %3418 = vmatpush.bf16.msra.mxu0 %v2110
    %3419 = vmatpush.bf16.msra.mxu0 %v2108
    %3420 = vmatmul.bf16.gmra.mxu0 %v657
    %v3421 = vpop.f32.mrf.mxu0
    %v3422 = vadd.f32 %v610, %v3421
    %v3423 = vpop.f32.mrf.mxu0
    %3424 = vdwg.mxu0
    %3425 = vmatpush.bf16.msra.mxu0 %v2138
    %3426 = vmatpush.bf16.msra.mxu0 %v2136
    %3427 = vmatpush.bf16.msra.mxu0 %v2134
    %3428 = vmatpush.bf16.msra.mxu0 %v2132
    %3429 = vmatpush.bf16.msra.mxu0 %v2130
    %3430 = vmatpush.bf16.msra.mxu0 %v2128
    %3431 = vmatpush.bf16.msra.mxu0 %v2126
    %3432 = vmatpush.bf16.msra.mxu0 %v2124
    %3433 = vmatmul.bf16.gmra.mxu0 %v658
    %v3434 = vpop.f32.mrf.mxu0
    %v3435 = vadd.f32 %v3422, %v3434
    %v3436 = vpop.f32.mrf.mxu0
    %3437 = vdwg.mxu0
    %3438 = vmatpush.bf16.msra.mxu0 %v2154
    %3439 = vmatpush.bf16.msra.mxu0 %v2152
    %3440 = vmatpush.bf16.msra.mxu0 %v2150
    %3441 = vmatpush.bf16.msra.mxu0 %v2148
    %3442 = vmatpush.bf16.msra.mxu0 %v2146
    %3443 = vmatpush.bf16.msra.mxu0 %v2144
    %3444 = vmatpush.bf16.msra.mxu0 %v2142
    %3445 = vmatpush.bf16.msra.mxu0 %v2140
    %3446 = vmatmul.bf16.gmra.mxu0 %v659
    %v3447 = vpop.f32.mrf.mxu0
    %v3448 = vadd.f32 %v3435, %v3447
    %v3449 = vpop.f32.mrf.mxu0
    %3450 = vdwg.mxu0
    %3451 = vmatpush.bf16.msra.mxu0 %v2170
    %3452 = vmatpush.bf16.msra.mxu0 %v2168
    %3453 = vmatpush.bf16.msra.mxu0 %v2166
    %3454 = vmatpush.bf16.msra.mxu0 %v2164
    %3455 = vmatpush.bf16.msra.mxu0 %v2162
    %3456 = vmatpush.bf16.msra.mxu0 %v2160
    %3457 = vmatpush.bf16.msra.mxu0 %v2158
    %3458 = vmatpush.bf16.msra.mxu0 %v2156
    %3459 = vmatmul.bf16.gmra.mxu0 %v660
    %v3460 = vpop.f32.mrf.mxu0
    %v3461 = vadd.f32 %v3448, %v3460
    %v3462 = vpop.f32.mrf.mxu0
    %3463 = vdwg.mxu0
    %3464 = vmatpush.bf16.msra.mxu0 %v2186
    %3465 = vmatpush.bf16.msra.mxu0 %v2184
    %3466 = vmatpush.bf16.msra.mxu0 %v2182
    %3467 = vmatpush.bf16.msra.mxu0 %v2180
    %3468 = vmatpush.bf16.msra.mxu0 %v2178
    %3469 = vmatpush.bf16.msra.mxu0 %v2176
    %3470 = vmatpush.bf16.msra.mxu0 %v2174
    %3471 = vmatpush.bf16.msra.mxu0 %v2172
    %3472 = vmatmul.bf16.gmra.mxu0 %v661
    %v3473 = vpop.f32.mrf.mxu0
    %v3474 = vadd.f32 %v3461, %v3473
    %v3475 = vpop.f32.mrf.mxu0
    %3476 = vdwg.mxu0
    %3477 = vmatpush.bf16.msra.mxu0 %v2202
    %3478 = vmatpush.bf16.msra.mxu0 %v2200
    %3479 = vmatpush.bf16.msra.mxu0 %v2198
    %3480 = vmatpush.bf16.msra.mxu0 %v2196
    %3481 = vmatpush.bf16.msra.mxu0 %v2194
    %3482 = vmatpush.bf16.msra.mxu0 %v2192
    %3483 = vmatpush.bf16.msra.mxu0 %v2190
    %3484 = vmatpush.bf16.msra.mxu0 %v2188
    %3485 = vmatmul.bf16.gmra.mxu0 %v662
    %v3486 = vpop.f32.mrf.mxu0
    %v3487 = vadd.f32 %v3474, %v3486
    %v3488 = vpop.f32.mrf.mxu0
    %3489 = vdwg.mxu0
    %3490 = vmatpush.bf16.msra.mxu0 %v2218
    %3491 = vmatpush.bf16.msra.mxu0 %v2216
    %3492 = vmatpush.bf16.msra.mxu0 %v2214
    %3493 = vmatpush.bf16.msra.mxu0 %v2212
    %3494 = vmatpush.bf16.msra.mxu0 %v2210
    %3495 = vmatpush.bf16.msra.mxu0 %v2208
    %3496 = vmatpush.bf16.msra.mxu0 %v2206
    %3497 = vmatpush.bf16.msra.mxu0 %v2204
    %3498 = vmatmul.bf16.gmra.mxu0 %v663
    %v3499 = vpop.f32.mrf.mxu0
    %v3500 = vadd.f32 %v3487, %v3499
    %v3501 = vpop.f32.mrf.mxu0
    %3502 = vdwg.mxu0
    %3503 = vmatpush.bf16.msra.mxu0 %v2234
    %3504 = vmatpush.bf16.msra.mxu0 %v2232
    %3505 = vmatpush.bf16.msra.mxu0 %v2230
    %3506 = vmatpush.bf16.msra.mxu0 %v2228
    %3507 = vmatpush.bf16.msra.mxu0 %v2226
    %3508 = vmatpush.bf16.msra.mxu0 %v2224
    %3509 = vmatpush.bf16.msra.mxu0 %v2222
    %3510 = vmatpush.bf16.msra.mxu0 %v2220
    %3511 = vmatmul.bf16.gmra.mxu0 %v664
    %v3512 = vpop.f32.mrf.mxu0
    %v3513 = vadd.f32 %v3500, %v3512
    %v3514 = vpop.f32.mrf.mxu0
    %3515 = vdwg.mxu0
    %3516 = vmatpush.bf16.msra.mxu0 %v2250
    %3517 = vmatpush.bf16.msra.mxu0 %v2248
    %3518 = vmatpush.bf16.msra.mxu0 %v2246
    %3519 = vmatpush.bf16.msra.mxu0 %v2244
    %3520 = vmatpush.bf16.msra.mxu0 %v2242
    %3521 = vmatpush.bf16.msra.mxu0 %v2240
    %3522 = vmatpush.bf16.msra.mxu0 %v2238
    %3523 = vmatpush.bf16.msra.mxu0 %v2236
    %3524 = vmatmul.bf16.gmra.mxu0 %v665
    %v3525 = vpop.f32.mrf.mxu0
    %v3526 = vadd.f32 %v3513, %v3525
    %v3527 = vpop.f32.mrf.mxu0
    %3528 = vdwg.mxu0
    %3529 = vmatpush.bf16.msra.mxu0 %v2266
    %3530 = vmatpush.bf16.msra.mxu0 %v2264
    %3531 = vmatpush.bf16.msra.mxu0 %v2262
    %3532 = vmatpush.bf16.msra.mxu0 %v2260
    %3533 = vmatpush.bf16.msra.mxu0 %v2258
    %3534 = vmatpush.bf16.msra.mxu0 %v2256
    %3535 = vmatpush.bf16.msra.mxu0 %v2254
    %3536 = vmatpush.bf16.msra.mxu0 %v2252
    %3537 = vmatmul.bf16.gmra.mxu0 %v666
    %v3538 = vpop.f32.mrf.mxu0
    %v3539 = vadd.f32 %v3526, %v3538
    %v3540 = vpop.f32.mrf.mxu0
    %3541 = vdwg.mxu0
    %3542 = vmatpush.bf16.msra.mxu0 %v2282
    %3543 = vmatpush.bf16.msra.mxu0 %v2280
    %3544 = vmatpush.bf16.msra.mxu0 %v2278
    %3545 = vmatpush.bf16.msra.mxu0 %v2276
    %3546 = vmatpush.bf16.msra.mxu0 %v2274
    %3547 = vmatpush.bf16.msra.mxu0 %v2272
    %3548 = vmatpush.bf16.msra.mxu0 %v2270
    %3549 = vmatpush.bf16.msra.mxu0 %v2268
    %3550 = vmatmul.bf16.gmra.mxu0 %v667
    %v3551 = vpop.f32.mrf.mxu0
    %v3552 = vadd.f32 %v3539, %v3551
    %v3553 = vpop.f32.mrf.mxu0
    %3554 = vdwg.mxu0
    %3555 = vmatpush.bf16.msra.mxu0 %v2298
    %3556 = vmatpush.bf16.msra.mxu0 %v2296
    %3557 = vmatpush.bf16.msra.mxu0 %v2294
    %3558 = vmatpush.bf16.msra.mxu0 %v2292
    %3559 = vmatpush.bf16.msra.mxu0 %v2290
    %3560 = vmatpush.bf16.msra.mxu0 %v2288
    %3561 = vmatpush.bf16.msra.mxu0 %v2286
    %3562 = vmatpush.bf16.msra.mxu0 %v2284
    %3563 = vmatmul.bf16.gmra.mxu0 %v668
    %v3564 = vpop.f32.mrf.mxu0
    %v3565 = vadd.f32 %v3552, %v3564
    %v3566 = vpop.f32.mrf.mxu0
    %3567 = vdwg.mxu0
    %3568 = vmatpush.bf16.msra.mxu0 %v2314
    %3569 = vmatpush.bf16.msra.mxu0 %v2312
    %3570 = vmatpush.bf16.msra.mxu0 %v2310
    %3571 = vmatpush.bf16.msra.mxu0 %v2308
    %3572 = vmatpush.bf16.msra.mxu0 %v2306
    %3573 = vmatpush.bf16.msra.mxu0 %v2304
    %3574 = vmatpush.bf16.msra.mxu0 %v2302
    %3575 = vmatpush.bf16.msra.mxu0 %v2300
    %3576 = vmatmul.bf16.gmra.mxu0 %v669
    %v3577 = vpop.f32.mrf.mxu0
    %v3578 = vadd.f32 %v3565, %v3577
    %v3579 = vpop.f32.mrf.mxu0
    %3580 = vdwg.mxu0
    %3581 = vmatpush.bf16.msra.mxu0 %v2330
    %3582 = vmatpush.bf16.msra.mxu0 %v2328
    %3583 = vmatpush.bf16.msra.mxu0 %v2326
    %3584 = vmatpush.bf16.msra.mxu0 %v2324
    %3585 = vmatpush.bf16.msra.mxu0 %v2322
    %3586 = vmatpush.bf16.msra.mxu0 %v2320
    %3587 = vmatpush.bf16.msra.mxu0 %v2318
    %3588 = vmatpush.bf16.msra.mxu0 %v2316
    %3589 = vmatmul.bf16.gmra.mxu0 %v670
    %v3590 = vpop.f32.mrf.mxu0
    %v3591 = vadd.f32 %v3578, %v3590
    %v3592 = vpop.f32.mrf.mxu0
    %3593 = vdwg.mxu0
    %3594 = vmatpush.bf16.msra.mxu0 %v2346
    %3595 = vmatpush.bf16.msra.mxu0 %v2344
    %3596 = vmatpush.bf16.msra.mxu0 %v2342
    %3597 = vmatpush.bf16.msra.mxu0 %v2340
    %3598 = vmatpush.bf16.msra.mxu0 %v2338
    %3599 = vmatpush.bf16.msra.mxu0 %v2336
    %3600 = vmatpush.bf16.msra.mxu0 %v2334
    %3601 = vmatpush.bf16.msra.mxu0 %v2332
    %3602 = vmatmul.bf16.gmra.mxu0 %v671
    %v3603 = vpop.f32.mrf.mxu0
    %v3604 = vadd.f32 %v3591, %v3603
    %v3605 = vpop.f32.mrf.mxu0
    %3606 = vdwg.mxu0
    %3607 = vmatpush.bf16.msra.mxu0 %v2362
    %3608 = vmatpush.bf16.msra.mxu0 %v2360
    %3609 = vmatpush.bf16.msra.mxu0 %v2358
    %3610 = vmatpush.bf16.msra.mxu0 %v2356
    %3611 = vmatpush.bf16.msra.mxu0 %v2354
    %3612 = vmatpush.bf16.msra.mxu0 %v2352
    %3613 = vmatpush.bf16.msra.mxu0 %v2350
    %3614 = vmatpush.bf16.msra.mxu0 %v2348
    %3615 = vmatmul.bf16.gmra.mxu0 %v672
    %v3616 = vpop.f32.mrf.mxu0
    %v3617 = vadd.f32 %v3604, %v3616
    %v3618 = vpop.f32.mrf.mxu0
    %3619 = vdwg.mxu0
    %3620 = vmatpush.bf16.msra.mxu0 %v2378
    %3621 = vmatpush.bf16.msra.mxu0 %v2376
    %3622 = vmatpush.bf16.msra.mxu0 %v2374
    %3623 = vmatpush.bf16.msra.mxu0 %v2372
    %3624 = vmatpush.bf16.msra.mxu0 %v2370
    %3625 = vmatpush.bf16.msra.mxu0 %v2368
    %3626 = vmatpush.bf16.msra.mxu0 %v2366
    %3627 = vmatpush.bf16.msra.mxu0 %v2364
    %3628 = vmatmul.bf16.gmra.mxu0 %v673
    %v3629 = vpop.f32.mrf.mxu0
    %v3630 = vadd.f32 %v3617, %v3629
    %v3631 = vpop.f32.mrf.mxu0
    %3632 = vdwg.mxu0
    %3633 = vmatpush.bf16.msra.mxu0 %v2394
    %3634 = vmatpush.bf16.msra.mxu0 %v2392
    %3635 = vmatpush.bf16.msra.mxu0 %v2390
    %3636 = vmatpush.bf16.msra.mxu0 %v2388
    %3637 = vmatpush.bf16.msra.mxu0 %v2386
    %3638 = vmatpush.bf16.msra.mxu0 %v2384
    %3639 = vmatpush.bf16.msra.mxu0 %v2382
    %3640 = vmatpush.bf16.msra.mxu0 %v2380
    %3641 = vmatmul.bf16.gmra.mxu0 %v674
    %v3642 = vpop.f32.mrf.mxu0
    %v3643 = vadd.f32 %v3630, %v3642
    %v3644 = vpop.f32.mrf.mxu0
    %3645 = vdwg.mxu0
    %3646 = vmatpush.bf16.msra.mxu0 %v2410
    %3647 = vmatpush.bf16.msra.mxu0 %v2408
    %3648 = vmatpush.bf16.msra.mxu0 %v2406
    %3649 = vmatpush.bf16.msra.mxu0 %v2404
    %3650 = vmatpush.bf16.msra.mxu0 %v2402
    %3651 = vmatpush.bf16.msra.mxu0 %v2400
    %3652 = vmatpush.bf16.msra.mxu0 %v2398
    %3653 = vmatpush.bf16.msra.mxu0 %v2396
    %3654 = vmatmul.bf16.gmra.mxu0 %v675
    %v3655 = vpop.f32.mrf.mxu0
    %v3656 = vadd.f32 %v3643, %v3655
    %v3657 = vpop.f32.mrf.mxu0
    %3658 = vdwg.mxu0
    %3659 = vmatpush.bf16.msra.mxu0 %v2426
    %3660 = vmatpush.bf16.msra.mxu0 %v2424
    %3661 = vmatpush.bf16.msra.mxu0 %v2422
    %3662 = vmatpush.bf16.msra.mxu0 %v2420
    %3663 = vmatpush.bf16.msra.mxu0 %v2418
    %3664 = vmatpush.bf16.msra.mxu0 %v2416
    %3665 = vmatpush.bf16.msra.mxu0 %v2414
    %3666 = vmatpush.bf16.msra.mxu0 %v2412
    %3667 = vmatmul.bf16.gmra.mxu0 %v676
    %v3668 = vpop.f32.mrf.mxu0
    %v3669 = vadd.f32 %v3656, %v3668
    %v3670 = vpop.f32.mrf.mxu0
    %3671 = vdwg.mxu0
    %3672 = vmatpush.bf16.msra.mxu0 %v2442
    %3673 = vmatpush.bf16.msra.mxu0 %v2440
    %3674 = vmatpush.bf16.msra.mxu0 %v2438
    %3675 = vmatpush.bf16.msra.mxu0 %v2436
    %3676 = vmatpush.bf16.msra.mxu0 %v2434
    %3677 = vmatpush.bf16.msra.mxu0 %v2432
    %3678 = vmatpush.bf16.msra.mxu0 %v2430
    %3679 = vmatpush.bf16.msra.mxu0 %v2428
    %3680 = vmatmul.bf16.gmra.mxu0 %v677
    %v3681 = vpop.f32.mrf.mxu0
    %v3682 = vadd.f32 %v3669, %v3681
    %v3683 = vpop.f32.mrf.mxu0
    %3684 = vdwg.mxu0
    %3685 = vmatpush.bf16.msra.mxu0 %v2458
    %3686 = vmatpush.bf16.msra.mxu0 %v2456
    %3687 = vmatpush.bf16.msra.mxu0 %v2454
    %3688 = vmatpush.bf16.msra.mxu0 %v2452
    %3689 = vmatpush.bf16.msra.mxu0 %v2450
    %3690 = vmatpush.bf16.msra.mxu0 %v2448
    %3691 = vmatpush.bf16.msra.mxu0 %v2446
    %3692 = vmatpush.bf16.msra.mxu0 %v2444
    %3693 = vmatmul.bf16.gmra.mxu0 %v678
    %v3694 = vpop.f32.mrf.mxu0
    %v3695 = vadd.f32 %v3682, %v3694
    %v3696 = vpop.f32.mrf.mxu0
    %3697 = vdwg.mxu0
    %3698 = vmatpush.bf16.msra.mxu0 %v2474
    %3699 = vmatpush.bf16.msra.mxu0 %v2472
    %3700 = vmatpush.bf16.msra.mxu0 %v2470
    %3701 = vmatpush.bf16.msra.mxu0 %v2468
    %3702 = vmatpush.bf16.msra.mxu0 %v2466
    %3703 = vmatpush.bf16.msra.mxu0 %v2464
    %3704 = vmatpush.bf16.msra.mxu0 %v2462
    %3705 = vmatpush.bf16.msra.mxu0 %v2460
    %3706 = vmatmul.bf16.gmra.mxu0 %v679
    %v3707 = vpop.f32.mrf.mxu0
    %v3708 = vadd.f32 %v3695, %v3707
    %v3709 = vpop.f32.mrf.mxu0
    %3710 = vdwg.mxu0
    %3711 = vmatpush.bf16.msra.mxu0 %v2490
    %3712 = vmatpush.bf16.msra.mxu0 %v2488
    %3713 = vmatpush.bf16.msra.mxu0 %v2486
    %3714 = vmatpush.bf16.msra.mxu0 %v2484
    %3715 = vmatpush.bf16.msra.mxu0 %v2482
    %3716 = vmatpush.bf16.msra.mxu0 %v2480
    %3717 = vmatpush.bf16.msra.mxu0 %v2478
    %3718 = vmatpush.bf16.msra.mxu0 %v2476
    %3719 = vmatmul.bf16.gmra.mxu0 %v680
    %v3720 = vpop.f32.mrf.mxu0
    %v3721 = vadd.f32 %v3708, %v3720
    %v3722 = vpop.f32.mrf.mxu0
    %3723 = vdwg.mxu0
    %3724 = vmatpush.bf16.msra.mxu0 %v2506
    %3725 = vmatpush.bf16.msra.mxu0 %v2504
    %3726 = vmatpush.bf16.msra.mxu0 %v2502
    %3727 = vmatpush.bf16.msra.mxu0 %v2500
    %3728 = vmatpush.bf16.msra.mxu0 %v2498
    %3729 = vmatpush.bf16.msra.mxu0 %v2496
    %3730 = vmatpush.bf16.msra.mxu0 %v2494
    %3731 = vmatpush.bf16.msra.mxu0 %v2492
    %3732 = vmatmul.bf16.gmra.mxu0 %v681
    %v3733 = vpop.f32.mrf.mxu0
    %v3734 = vadd.f32 %v3721, %v3733
    %v3735 = vpop.f32.mrf.mxu0
    %3736 = vdwg.mxu0
    %3737 = vmatpush.bf16.msra.mxu0 %v2522
    %3738 = vmatpush.bf16.msra.mxu0 %v2520
    %3739 = vmatpush.bf16.msra.mxu0 %v2518
    %3740 = vmatpush.bf16.msra.mxu0 %v2516
    %3741 = vmatpush.bf16.msra.mxu0 %v2514
    %3742 = vmatpush.bf16.msra.mxu0 %v2512
    %3743 = vmatpush.bf16.msra.mxu0 %v2510
    %3744 = vmatpush.bf16.msra.mxu0 %v2508
    %3745 = vmatmul.bf16.gmra.mxu0 %v682
    %v3746 = vpop.f32.mrf.mxu0
    %v3747 = vadd.f32 %v3734, %v3746
    %v3748 = vpop.f32.mrf.mxu0
    %3749 = vdwg.mxu0
    %3750 = vmatpush.bf16.msra.mxu0 %v2538
    %3751 = vmatpush.bf16.msra.mxu0 %v2536
    %3752 = vmatpush.bf16.msra.mxu0 %v2534
    %3753 = vmatpush.bf16.msra.mxu0 %v2532
    %3754 = vmatpush.bf16.msra.mxu0 %v2530
    %3755 = vmatpush.bf16.msra.mxu0 %v2528
    %3756 = vmatpush.bf16.msra.mxu0 %v2526
    %3757 = vmatpush.bf16.msra.mxu0 %v2524
    %3758 = vmatmul.bf16.gmra.mxu0 %v683
    %v3759 = vpop.f32.mrf.mxu0
    %v3760 = vadd.f32 %v3747, %v3759
    %v3761 = vpop.f32.mrf.mxu0
    %3762 = vdwg.mxu0
    %3763 = vmatpush.bf16.msra.mxu0 %v2554
    %3764 = vmatpush.bf16.msra.mxu0 %v2552
    %3765 = vmatpush.bf16.msra.mxu0 %v2550
    %3766 = vmatpush.bf16.msra.mxu0 %v2548
    %3767 = vmatpush.bf16.msra.mxu0 %v2546
    %3768 = vmatpush.bf16.msra.mxu0 %v2544
    %3769 = vmatpush.bf16.msra.mxu0 %v2542
    %3770 = vmatpush.bf16.msra.mxu0 %v2540
    %3771 = vmatmul.bf16.gmra.mxu0 %v684
    %v3772 = vpop.f32.mrf.mxu0
    %v3773 = vadd.f32 %v3760, %v3772
    %v3774 = vpop.f32.mrf.mxu0
    %3775 = vdwg.mxu0
    %3776 = vmatpush.bf16.msra.mxu0 %v2570
    %3777 = vmatpush.bf16.msra.mxu0 %v2568
    %3778 = vmatpush.bf16.msra.mxu0 %v2566
    %3779 = vmatpush.bf16.msra.mxu0 %v2564
    %3780 = vmatpush.bf16.msra.mxu0 %v2562
    %3781 = vmatpush.bf16.msra.mxu0 %v2560
    %3782 = vmatpush.bf16.msra.mxu0 %v2558
    %3783 = vmatpush.bf16.msra.mxu0 %v2556
    %3784 = vmatmul.bf16.gmra.mxu0 %v685
    %v3785 = vpop.f32.mrf.mxu0
    %v3786 = vadd.f32 %v3773, %v3785
    %v3787 = vpop.f32.mrf.mxu0
    %3788 = vdwg.mxu0
    %v3789 = vmax.f32 %v3409, 0.0
    %v3790 = vmax.f32 %v3786, 0.0
    %v3791 = vpack.c.bf16 %v3789, %v3789
    %v3792 = vpack.c.bf16 %v3790, %v3790
    %v3793 = vld [vmem:[#allocation8] sm:$0xff]
    %v3794 = vld [vmem:[#allocation8 + $0x8] sm:$0xff]
    %v3795 = vld [vmem:[#allocation8 + $0x10] sm:$0xff]
    %v3796 = vld [vmem:[#allocation8 + $0x18] sm:$0xff]
    %v3797 = vld [vmem:[#allocation8 + $0x20] sm:$0xff]
    %v3798 = vld [vmem:[#allocation8 + $0x28] sm:$0xff]
    %v3799 = vld [vmem:[#allocation8 + $0x30] sm:$0xff]
    %v3800 = vld [vmem:[#allocation8 + $0x38] sm:$0xff]
    %v3801 = vld [vmem:[#allocation8 + $0x40] sm:$0xff]
    %v3802 = vld [vmem:[#allocation8 + $0x48] sm:$0xff]
    %v3803 = vld [vmem:[#allocation8 + $0x50] sm:$0xff]
    %v3804 = vld [vmem:[#allocation8 + $0x58] sm:$0xff]
    %v3805 = vld [vmem:[#allocation8 + $0x60] sm:$0xff]
    %v3806 = vld [vmem:[#allocation8 + $0x68] sm:$0xff]
    %v3807 = vld [vmem:[#allocation8 + $0x70] sm:$0xff]
    %v3808 = vld [vmem:[#allocation8 + $0x78] sm:$0xff]
    %v3809 = vld [vmem:[#allocation8 + $0x80] sm:$0xff]
    %v3810 = vld [vmem:[#allocation8 + $0x88] sm:$0xff]
    %v3811 = vld [vmem:[#allocation8 + $0x90] sm:$0xff]
    %v3812 = vld [vmem:[#allocation8 + $0x98] sm:$0xff]
    %v3813 = vld [vmem:[#allocation8 + $0xa0] sm:$0xff]
    %v3814 = vld [vmem:[#allocation8 + $0xa8] sm:$0xff]
    %v3815 = vld [vmem:[#allocation8 + $0xb0] sm:$0xff]
    %v3816 = vld [vmem:[#allocation8 + $0xb8] sm:$0xff]
    %v3817 = vld [vmem:[#allocation8 + $0xc0] sm:$0xff]
    %v3818 = vld [vmem:[#allocation8 + $0xc8] sm:$0xff]
    %v3819 = vld [vmem:[#allocation8 + $0xd0] sm:$0xff]
    %v3820 = vld [vmem:[#allocation8 + $0xd8] sm:$0xff]
    %v3821 = vld [vmem:[#allocation8 + $0xe0] sm:$0xff]
    %v3822 = vld [vmem:[#allocation8 + $0xe8] sm:$0xff]
    %v3823 = vld [vmem:[#allocation8 + $0xf0] sm:$0xff]
    %v3824 = vld [vmem:[#allocation8 + $0xf8] sm:$0xff]
    %v3825 = vld [vmem:[#allocation10] sm:$0x3]
    %v3827 = vperm.slane %v3825, 0
    %v3828 = vperm.slane %v3825, 1
    %v3863 = vunpack.c.l.b16 %v3793
    %v3864 = vunpack.c.h.b16 %v3793
    %v3865 = vunpack.c.l.b16 %v3794
    %v3866 = vunpack.c.h.b16 %v3794
    %v3867 = vunpack.c.l.b16 %v3795
    %v3868 = vunpack.c.h.b16 %v3795
    %v3869 = vunpack.c.l.b16 %v3796
    %v3870 = vunpack.c.h.b16 %v3796
    %v3871 = vunpack.c.l.b16 %v3797
    %v3872 = vunpack.c.h.b16 %v3797
    %v3873 = vunpack.c.l.b16 %v3798
    %v3874 = vunpack.c.h.b16 %v3798
    %v3875 = vunpack.c.l.b16 %v3799
    %v3876 = vunpack.c.h.b16 %v3799
    %v3877 = vunpack.c.l.b16 %v3800
    %v3878 = vunpack.c.h.b16 %v3800
    %v3879 = vunpack.c.l.b16 %v3801
    %v3880 = vunpack.c.h.b16 %v3801
    %v3881 = vunpack.c.l.b16 %v3802
    %v3882 = vunpack.c.h.b16 %v3802
    %v3883 = vunpack.c.l.b16 %v3803
    %v3884 = vunpack.c.h.b16 %v3803
    %v3885 = vunpack.c.l.b16 %v3804
    %v3886 = vunpack.c.h.b16 %v3804
    %v3887 = vunpack.c.l.b16 %v3805
    %v3888 = vunpack.c.h.b16 %v3805
    %v3889 = vunpack.c.l.b16 %v3806
    %v3890 = vunpack.c.h.b16 %v3806
    %v3891 = vunpack.c.l.b16 %v3807
    %v3892 = vunpack.c.h.b16 %v3807
    %v3893 = vunpack.c.l.b16 %v3808
    %v3894 = vunpack.c.h.b16 %v3808
    %v3895 = vunpack.c.l.b16 %v3809
    %v3896 = vunpack.c.h.b16 %v3809
    %v3897 = vunpack.c.l.b16 %v3810
    %v3898 = vunpack.c.h.b16 %v3810
    %v3899 = vunpack.c.l.b16 %v3811
    %v3900 = vunpack.c.h.b16 %v3811
    %v3901 = vunpack.c.l.b16 %v3812
    %v3902 = vunpack.c.h.b16 %v3812
    %v3903 = vunpack.c.l.b16 %v3813
    %v3904 = vunpack.c.h.b16 %v3813
    %v3905 = vunpack.c.l.b16 %v3814
    %v3906 = vunpack.c.h.b16 %v3814
    %v3907 = vunpack.c.l.b16 %v3815
    %v3908 = vunpack.c.h.b16 %v3815
    %v3909 = vunpack.c.l.b16 %v3816
    %v3910 = vunpack.c.h.b16 %v3816
    %v3911 = vunpack.c.l.b16 %v3817
    %v3912 = vunpack.c.h.b16 %v3817
    %v3913 = vunpack.c.l.b16 %v3818
    %v3914 = vunpack.c.h.b16 %v3818
    %v3915 = vunpack.c.l.b16 %v3819
    %v3916 = vunpack.c.h.b16 %v3819
    %v3917 = vunpack.c.l.b16 %v3820
    %v3918 = vunpack.c.h.b16 %v3820
    %v3919 = vunpack.c.l.b16 %v3821
    %v3920 = vunpack.c.h.b16 %v3821
    %v3921 = vunpack.c.l.b16 %v3822
    %v3922 = vunpack.c.h.b16 %v3822
    %v3923 = vunpack.c.l.b16 %v3823
    %v3924 = vunpack.c.h.b16 %v3823
    %v3925 = vunpack.c.l.b16 %v3824
    %v3926 = vunpack.c.h.b16 %v3824
    %v3927 = vpack.c.b16 %v3865, %v3863
    %v3928 = vpack.c.b16 %v3866, %v3864
    %v3929 = vpack.c.b16 %v3869, %v3867
    %v3930 = vpack.c.b16 %v3870, %v3868
    %v3931 = vpack.c.b16 %v3873, %v3871
    %v3932 = vpack.c.b16 %v3874, %v3872
    %v3933 = vpack.c.b16 %v3877, %v3875
    %v3934 = vpack.c.b16 %v3878, %v3876
    %v3935 = vpack.c.b16 %v3881, %v3879
    %v3936 = vpack.c.b16 %v3882, %v3880
    %v3937 = vpack.c.b16 %v3885, %v3883
    %v3938 = vpack.c.b16 %v3886, %v3884
    %v3939 = vpack.c.b16 %v3889, %v3887
    %v3940 = vpack.c.b16 %v3890, %v3888
    %v3941 = vpack.c.b16 %v3893, %v3891
    %v3942 = vpack.c.b16 %v3894, %v3892
    %v3943 = vpack.c.b16 %v3897, %v3895
    %v3944 = vpack.c.b16 %v3898, %v3896
    %v3945 = vpack.c.b16 %v3901, %v3899
    %v3946 = vpack.c.b16 %v3902, %v3900
    %v3947 = vpack.c.b16 %v3905, %v3903
    %v3948 = vpack.c.b16 %v3906, %v3904
    %v3949 = vpack.c.b16 %v3909, %v3907
    %v3950 = vpack.c.b16 %v3910, %v3908
    %v3951 = vpack.c.b16 %v3913, %v3911
    %v3952 = vpack.c.b16 %v3914, %v3912
    %v3953 = vpack.c.b16 %v3917, %v3915
    %v3954 = vpack.c.b16 %v3918, %v3916
    %v3955 = vpack.c.b16 %v3921, %v3919
    %v3956 = vpack.c.b16 %v3922, %v3920
    %v3957 = vpack.c.b16 %v3925, %v3923
    %v3958 = vpack.c.b16 %v3926, %v3924
    %3991 = vmatpush.bf16.msra.mxu0 %v3941
    %3992 = vmatpush.bf16.msra.mxu0 %v3939
    %3993 = vmatpush.bf16.msra.mxu0 %v3937
    %3994 = vmatpush.bf16.msra.mxu0 %v3935
    %3995 = vmatpush.bf16.msra.mxu0 %v3933
    %3996 = vmatpush.bf16.msra.mxu0 %v3931
    %3997 = vmatpush.bf16.msra.mxu0 %v3929
    %3998 = vmatpush.bf16.msra.mxu0 %v3927
    %3999 = vmatmul.bf16.gmra.mxu0 %v3791
    %v4000 = vpop.f32.mrf.mxu0
    %v4001 = vadd.f32 %v3827, %v4000
    %v4002 = vpop.f32.mrf.mxu0
    %4003 = vdwg.mxu0
    %4004 = vmatpush.bf16.msra.mxu0 %v3957
    %4005 = vmatpush.bf16.msra.mxu0 %v3955
    %4006 = vmatpush.bf16.msra.mxu0 %v3953
    %4007 = vmatpush.bf16.msra.mxu0 %v3951
    %4008 = vmatpush.bf16.msra.mxu0 %v3949
    %4009 = vmatpush.bf16.msra.mxu0 %v3947
    %4010 = vmatpush.bf16.msra.mxu0 %v3945
    %4011 = vmatpush.bf16.msra.mxu0 %v3943
    %4012 = vmatmul.bf16.gmra.mxu0 %v3792
    %v4013 = vpop.f32.mrf.mxu0
    %v4014 = vadd.f32 %v4001, %v4013
    %v4015 = vpop.f32.mrf.mxu0
    %4016 = vdwg.mxu0
    %4017 = vmatpush.bf16.msra.mxu0 %v3942
    %4018 = vmatpush.bf16.msra.mxu0 %v3940
    %4019 = vmatpush.bf16.msra.mxu0 %v3938
    %4020 = vmatpush.bf16.msra.mxu0 %v3936
    %4021 = vmatpush.bf16.msra.mxu0 %v3934
    %4022 = vmatpush.bf16.msra.mxu0 %v3932
    %4023 = vmatpush.bf16.msra.mxu0 %v3930
    %4024 = vmatpush.bf16.msra.mxu0 %v3928
    %4025 = vmatmul.bf16.gmra.mxu0 %v3791
    %v4026 = vpop.f32.mrf.mxu0
    %v4027 = vadd.f32 %v3828, %v4026
    %v4028 = vpop.f32.mrf.mxu0
    %4029 = vdwg.mxu0
    %4030 = vmatpush.bf16.msra.mxu0 %v3958
    %4031 = vmatpush.bf16.msra.mxu0 %v3956
    %4032 = vmatpush.bf16.msra.mxu0 %v3954
    %4033 = vmatpush.bf16.msra.mxu0 %v3952
    %4034 = vmatpush.bf16.msra.mxu0 %v3950
    %4035 = vmatpush.bf16.msra.mxu0 %v3948
    %4036 = vmatpush.bf16.msra.mxu0 %v3946
    %4037 = vmatpush.bf16.msra.mxu0 %v3944
    %4038 = vmatmul.bf16.gmra.mxu0 %v3792
    %v4039 = vpop.f32.mrf.mxu0
    %v4040 = vadd.f32 %v4027, %v4039
    %v4041 = vpop.f32.mrf.mxu0
    %4042 = vdwg.mxu0
    %v4043 = vmax.f32 %v4014, 0.0
    %v4044 = vmax.f32 %v4040, 0.0
    %v4045 = vrot.slane %v4043, 4
    %v4046 = vadd.f32 %v4043, %v4045
    %v4047 = vrot.slane %v4046, 2
    %v4048 = vadd.f32 %v4046, %v4047
    %v4049 = vrot.slane %v4048, 1
    %v4050 = vadd.f32 %v4048, %v4049
    %v4051 = vrot.slane %v4044, 4
    %v4052 = vadd.f32 %v4044, %v4051
    %v4053 = vrot.slane %v4052, 2
    %v4054 = vadd.f32 %v4052, %v4053
    %v4055 = vrot.slane %v4054, 1
    %v4056 = vadd.f32 %v4054, %v4055
    %v4057 = vrcp.pop 8.0
    %v4058 = vmul.f32 8.0, %v4057
    %v4059 = vsub.f32 1.0, %v4058
    %v4060 = vmul.f32 %v4057, %v4059
    %v4061 = vadd.f32 %v4057, %v4060
    %vm4062 = vweird.f32 %v4057
    %v4063 = vsel %vm4062, %v4057, %v4061
    %v4064 = vmul.f32 %v4050, %v4063
    %v4065 = vmul.f32 %v4056, %v4063
    %v4066 = vpack.c.bf16 %v4064, %v4064
    %v4067 = vpack.c.bf16 %v4065, %v4065
    %v4068 = vld [vmem:[#allocation11] sm:$0xf]
    %v4069 = vld [vmem:[#allocation11 + $0x4] sm:$0xf]
    %v4070 = vld [vmem:[#allocation11 + $0x8] sm:$0xf]
    %v4071 = vld [vmem:[#allocation11 + $0xc] sm:$0xf]
    %v4072 = vld [vmem:[#allocation11 + $0x10] sm:$0xf]
    %v4073 = vld [vmem:[#allocation11 + $0x14] sm:$0xf]
    %v4074 = vld [vmem:[#allocation11 + $0x18] sm:$0xf]
    %v4075 = vld [vmem:[#allocation11 + $0x1c] sm:$0xf]
    %v4076 = vld [vmem:[#allocation11 + $0x20] sm:$0xf]
    %v4077 = vld [vmem:[#allocation11 + $0x24] sm:$0xf]
    %v4078 = vld [vmem:[#allocation11 + $0x28] sm:$0xf]
    %v4079 = vld [vmem:[#allocation11 + $0x2c] sm:$0xf]
    %v4080 = vld [vmem:[#allocation11 + $0x30] sm:$0xf]
    %v4081 = vld [vmem:[#allocation11 + $0x34] sm:$0xf]
    %v4082 = vld [vmem:[#allocation11 + $0x38] sm:$0xf]
    %v4083 = vld [vmem:[#allocation11 + $0x3c] sm:$0xf]
    %v4084 = vld [vmem:[#allocation11 + $0x40] sm:$0xf]
    %v4085 = vld [vmem:[#allocation11 + $0x44] sm:$0xf]
    %v4086 = vld [vmem:[#allocation11 + $0x48] sm:$0xf]
    %v4087 = vld [vmem:[#allocation11 + $0x4c] sm:$0xf]
    %v4088 = vld [vmem:[#allocation11 + $0x50] sm:$0xf]
    %v4089 = vld [vmem:[#allocation11 + $0x54] sm:$0xf]
    %v4090 = vld [vmem:[#allocation11 + $0x58] sm:$0xf]
    %v4091 = vld [vmem:[#allocation11 + $0x5c] sm:$0xf]
    %v4092 = vld [vmem:[#allocation11 + $0x60] sm:$0xf]
    %v4093 = vld [vmem:[#allocation11 + $0x64] sm:$0xf]
    %v4094 = vld [vmem:[#allocation11 + $0x68] sm:$0xf]
    %v4095 = vld [vmem:[#allocation11 + $0x6c] sm:$0xf]
    %v4096 = vld [vmem:[#allocation11 + $0x70] sm:$0xf]
    %v4097 = vld [vmem:[#allocation11 + $0x74] sm:$0xf]
    %v4098 = vld [vmem:[#allocation11 + $0x78] sm:$0xf]
    %v4099 = vld [vmem:[#allocation11 + $0x7c] sm:$0xf]
    %v4100 = vld [vmem:[#allocation13] sm:$0x1]
    %v4133 = vunpack.c.l.b16 %v4068
    %v4134 = vunpack.c.l.b16 %v4069
    %v4135 = vunpack.c.l.b16 %v4070
    %v4136 = vunpack.c.l.b16 %v4071
    %v4137 = vunpack.c.l.b16 %v4072
    %v4138 = vunpack.c.l.b16 %v4073
    %v4139 = vunpack.c.l.b16 %v4074
    %v4140 = vunpack.c.l.b16 %v4075
    %v4141 = vunpack.c.l.b16 %v4076
    %v4142 = vunpack.c.l.b16 %v4077
    %v4143 = vunpack.c.l.b16 %v4078
    %v4144 = vunpack.c.l.b16 %v4079
    %v4145 = vunpack.c.l.b16 %v4080
    %v4146 = vunpack.c.l.b16 %v4081
    %v4147 = vunpack.c.l.b16 %v4082
    %v4148 = vunpack.c.l.b16 %v4083
    %v4149 = vunpack.c.l.b16 %v4084
    %v4150 = vunpack.c.l.b16 %v4085
    %v4151 = vunpack.c.l.b16 %v4086
    %v4152 = vunpack.c.l.b16 %v4087
    %v4153 = vunpack.c.l.b16 %v4088
    %v4154 = vunpack.c.l.b16 %v4089
    %v4155 = vunpack.c.l.b16 %v4090
    %v4156 = vunpack.c.l.b16 %v4091
    %v4157 = vunpack.c.l.b16 %v4092
    %v4158 = vunpack.c.l.b16 %v4093
    %v4159 = vunpack.c.l.b16 %v4094
    %v4160 = vunpack.c.l.b16 %v4095
    %v4161 = vunpack.c.l.b16 %v4096
    %v4162 = vunpack.c.l.b16 %v4097
    %v4163 = vunpack.c.l.b16 %v4098
    %v4164 = vunpack.c.l.b16 %v4099
    %v4165 = vpack.c.b16 %v4134, %v4133
    %v4166 = vpack.c.b16 %v4136, %v4135
    %v4167 = vpack.c.b16 %v4138, %v4137
    %v4168 = vpack.c.b16 %v4140, %v4139
    %v4169 = vpack.c.b16 %v4142, %v4141
    %v4170 = vpack.c.b16 %v4144, %v4143
    %v4171 = vpack.c.b16 %v4146, %v4145
    %v4172 = vpack.c.b16 %v4148, %v4147
    %v4173 = vpack.c.b16 %v4150, %v4149
    %v4174 = vpack.c.b16 %v4152, %v4151
    %v4175 = vpack.c.b16 %v4154, %v4153
    %v4176 = vpack.c.b16 %v4156, %v4155
    %v4177 = vpack.c.b16 %v4158, %v4157
    %v4178 = vpack.c.b16 %v4160, %v4159
    %v4179 = vpack.c.b16 %v4162, %v4161
    %v4180 = vpack.c.b16 %v4164, %v4163
    %4197 = vmatpush.bf16.msra.mxu0 %v4172
    %4198 = vmatpush.bf16.msra.mxu0 %v4171
    %4199 = vmatpush.bf16.msra.mxu0 %v4170
    %4200 = vmatpush.bf16.msra.mxu0 %v4169
    %4201 = vmatpush.bf16.msra.mxu0 %v4168
    %4202 = vmatpush.bf16.msra.mxu0 %v4167
    %4203 = vmatpush.bf16.msra.mxu0 %v4166
    %4204 = vmatpush.bf16.msra.mxu0 %v4165
    %4205 = vmatmul.bf16.gmra.mxu0 %v4066
    %v4206 = vpop.f32.mrf.mxu0
    %v4207 = vadd.f32 %v4100, %v4206
    %v4208 = vpop.f32.mrf.mxu0
    %4209 = vdwg.mxu0
    %4210 = vmatpush.bf16.msra.mxu0 %v4180
    %4211 = vmatpush.bf16.msra.mxu0 %v4179
    %4212 = vmatpush.bf16.msra.mxu0 %v4178
    %4213 = vmatpush.bf16.msra.mxu0 %v4177
    %4214 = vmatpush.bf16.msra.mxu0 %v4176
    %4215 = vmatpush.bf16.msra.mxu0 %v4175
    %4216 = vmatpush.bf16.msra.mxu0 %v4174
    %4217 = vmatpush.bf16.msra.mxu0 %v4173
    %4218 = vmatmul.bf16.gmra.mxu0 %v4067
    %v4219 = vpop.f32.mrf.mxu0
    %v4220 = vadd.f32 %v4207, %v4219
    %v4221 = vpop.f32.mrf.mxu0
    %4222 = vdwg.mxu0
    %4223 = vst [vmem:[#allocation14] sm:$0x1] %v4220
    // Predicated region
    $region58: #{tpu_custom_call.1} parent=1 // pred_check
      _
    $region59: #{tpu_custom_call.1} parent=1 // pred_check_branch
      %4225 = sbr.rel (0) target = $region61
    $region60: #{tpu_custom_call.1} parent=1 // pred_region
      %4227 = vsyncadd [#allocation4], 0
      %s4229 = sshll.u32 [#allocation14], 4
      %s4230 = int_to_ptr.vmem [resolvable:$true] %s4229
      %s4231 = sshll.u32 %s7, 4
      %s4232 = int_to_ptr.hbm [resolvable:$true] %s4231
      %4234 = dma.vmem_to_hbm [thread:$0]  %s4230, 16, %s4232, [#allocation4]
    $region61: #{tpu_custom_call.1} parent=1 // pred_fallthru
      _
    // Predicated region
    $region62: #{tpu_custom_call.1} parent=1 // pred_check
      _
    $region63: #{tpu_custom_call.1} parent=1 // pred_check_branch
      %4236 = sbr.rel (0) target = $region65
    $region64: #{tpu_custom_call.1} parent=1 // pred_region
      %4238 = dma.done [#allocation4], 16
    $region65: #{tpu_custom_call.1} parent=1 // pred_fallthru
      _
    %4239 = vsyncpa [#allocation3], 1
    %4240 = vsyncpa [#allocation6], 1
    %4241 = vsyncpa [#allocation9], 1
    %4242 = vsyncpa [#allocation12], 1
    %4243 = vsyncpa [#allocation4], 1

</llo_original>
